<compile_context>
chip_gen: v6e
topology: v6e:2x2x1
jax: 0.10.0
libtpu: 0.0.40
codegen_flags: <defaults>
</compile_context>

<pallas_src>
import functools
import math

import jax
import jax.numpy as jnp
from jax import lax
from jax.experimental import pallas as pl
from jax.experimental.pallas import tpu as pltpu

_NEG = -1e18
_GELU_C = 0.7978845608028654


def _round_up(x, m):
    return ((x + m - 1) // m) * m


def _chip_caps():
    """Generation-aware (max query tile, VMEM-limit cap). v5e/v6e: 128 MiB phys; v7x: 64 MiB."""
    kind = ""
    try:
        kind = jax.devices()[0].device_kind.lower()
    except Exception:
        pass
    if "v7" in kind:
        return 256, 56 * 2 ** 20
    if "v6" in kind:
        return 256, 100 * 2 ** 20
    return 128, 100 * 2 ** 20


def _decoder_layer_psa_kernel(
        heads, d_ff_chunk,
        xt_ref, mem_ref, tpad_ref, spad_ref,
        ln1_g, ln1_b,
        wq, bq, wk, bk, wv, bv,
        wck, bck, wcv, bcv,
        wo, bo,
        ln2_g, ln2_b,
        w1, b1, w2, b2,
        out_ref, attn_ref,
        ks_s, vs_s, kc_s, vc_s, ho_s):
    f32 = jnp.float32
    bf16 = jnp.bfloat16

    qi = pl.program_id(1)
    tq, D = xt_ref.shape[1], xt_ref.shape[2]
    Tp = ks_s.shape[0]
    dh = D // heads

    def layer_norm(v, g_ref, b_ref):
        mu = jnp.mean(v, axis=-1, keepdims=True)
        var = jnp.mean(jnp.square(v - mu), axis=-1, keepdims=True)
        return (v - mu) * lax.rsqrt(var + 1e-5) * g_ref[...] + b_ref[...]

    def dense(v_bf16, w_ref, b_ref):
        return jnp.dot(v_bf16, w_ref[...], preferred_element_type=f32) + b_ref[...]

    # ---- once per batch element: ctx K/V + zero the (causally masked) stale self-KV rows ----
    @pl.when(qi == 0)
    def _init():
        ks_s[...] = jnp.zeros_like(ks_s)
        vs_s[...] = jnp.zeros_like(vs_s)
        mem_b = mem_ref[0]                                             # (Sp, D) bf16
        kc_s[...] = dense(mem_b, wck, bck).astype(bf16)
        vc_s[...] = dense(mem_b, wcv, bcv).astype(bf16)

    # ---- per query tile: LN1, append this tile's self K/V rows, query projection ----
    x_t = xt_ref[0]                                                    # (tq, D) f32
    xn_b = layer_norm(x_t, ln1_g, ln1_b).astype(bf16)
    row0 = pl.multiple_of(qi * tq, tq)
    ks_s[pl.ds(row0, tq), :] = dense(xn_b, wk, bk).astype(bf16)
    vs_s[pl.ds(row0, tq), :] = dense(xn_b, wv, bv).astype(bf16)
    q_t = dense(xn_b, wq, bq).astype(bf16)                             # 1/sqrt(dh) folded in wq/bq

    # ---- additive mask biases built in-kernel (f32), no dense mask HBM traffic ----
    row = row0 + lax.broadcasted_iota(jnp.int32, (tq, Tp), 0)
    col = lax.broadcasted_iota(jnp.int32, (tq, Tp), 1)
    tpad = tpad_ref[0]                                                 # (1, Tp) int32
    self_bias = jnp.where(jnp.logical_or(col > row, tpad > 0), _NEG, 0.0).astype(f32)
    ctx_bias = jnp.where(spad_ref[0] > 0, _NEG, 0.0).astype(f32)       # (1, Sp)

    trans_b = (((1,), (1,)), ((), ()))                                 # contract last dims

    for h in range(heads):
        lo = h * dh
        qh = q_t[:, lo:lo + dh]                                        # (tq, dh) bf16
        s_self = lax.dot_general(qh, ks_s[:, lo:lo + dh], trans_b,
                                 preferred_element_type=f32) + self_bias
        s_ctx = lax.dot_general(qh, kc_s[:, lo:lo + dh], trans_b,
                                preferred_element_type=f32) + ctx_bias
        # joint softmax over [ctx ; self] without materializing the concat (f32)
        m = jnp.maximum(jnp.max(s_ctx, axis=-1, keepdims=True),
                        jnp.max(s_self, axis=-1, keepdims=True))
        e_ctx = jnp.exp(s_ctx - m)
        e_self = jnp.exp(s_self - m)
        inv = pl.reciprocal(jnp.sum(e_ctx, axis=-1, keepdims=True)
                            + jnp.sum(e_self, axis=-1, keepdims=True))  # exact: feeds attn output
        p_ctx = e_ctx * inv
        p_self = e_self * inv
        if h == 0:
            attn_ref[0] = p_ctx                                        # head-0 ctx attention
        head_out = (jnp.dot(p_ctx.astype(bf16), vc_s[:, lo:lo + dh],
                            preferred_element_type=f32)
                    + jnp.dot(p_self.astype(bf16), vs_s[:, lo:lo + dh],
                              preferred_element_type=f32))
        ho_s[:, lo:lo + dh] = head_out                                 # f32 head-output slab

    # single K=D output projection over the concatenated head outputs
    attn_out = jnp.dot(ho_s[...].astype(bf16), wo[...], preferred_element_type=f32) + bo[...]

    # ---- residual + LayerNorm2 + d_ff-chunked MLP (GPT-2 gelu) + residual ----
    query = attn_out + x_t                                             # dropout == identity (eval)
    qn_b = layer_norm(query, ln2_g, ln2_b).astype(bf16)

    d_ff = w1.shape[1]
    mlp = jnp.zeros((tq, D), f32)
    for c0 in range(0, d_ff, d_ff_chunk):
        hid = (jnp.dot(qn_b, w1[:, c0:c0 + d_ff_chunk], preferred_element_type=f32)
               + b1[:, c0:c0 + d_ff_chunk])
        hid = 0.5 * hid * (1.0 + jnp.tanh(_GELU_C * (hid + 0.044715 * hid * hid * hid)))
        mlp = mlp + jnp.dot(hid.astype(bf16), w2[c0:c0 + d_ff_chunk, :],
                            preferred_element_type=f32)
    out_ref[0] = mlp + b2[...] + query


def init_params(key, d_model):
    d_ff = 4 * d_model
    keys = jax.random.split(key, 24)

    def dense(kw, kb, din, dout):
        w = 0.02 * jax.random.normal(kw, (din, dout), jnp.float32)
        b = 0.02 * jax.random.normal(kb, (1, dout), jnp.float32)
        return w, b

    ln1_g = 1.0 + 0.1 * jax.random.normal(keys[0], (1, d_model), jnp.float32)
    ln1_b = 0.1 * jax.random.normal(keys[1], (1, d_model), jnp.float32)
    wq, bq = dense(keys[2], keys[3], d_model, d_model)
    wk, bk = dense(keys[4], keys[5], d_model, d_model)
    wv, bv = dense(keys[6], keys[7], d_model, d_model)
    wck, bck = dense(keys[8], keys[9], d_model, d_model)
    wcv, bcv = dense(keys[10], keys[11], d_model, d_model)
    wo, bo = dense(keys[12], keys[13], d_model, d_model)
    ln2_g = 1.0 + 0.1 * jax.random.normal(keys[14], (1, d_model), jnp.float32)
    ln2_b = 0.1 * jax.random.normal(keys[15], (1, d_model), jnp.float32)
    w1, b1 = dense(keys[16], keys[17], d_model, d_ff)
    w2, b2 = dense(keys[18], keys[19], d_ff, d_model)
    return [ln1_g, ln1_b,
            wq, bq, wk, bk, wv, bv, wck, bck, wcv, bcv, wo, bo,
            ln2_g, ln2_b, w1, b1, w2, b2]


def decoder_layer_psa(inputs, memory_bank, src_pad_mask, tgt_pad_mask, params, heads):
    B, T, D = inputs.shape
    S = memory_bank.shape[1]
    bf16 = jnp.bfloat16

    # --- generation-aware tiling / padding (Sp lane-dense; padded key positions are masked) ---
    max_tq, vmem_cap = _chip_caps()
    tq = min(max_tq, _round_up(T, 8))
    Tp = _round_up(T, tq)
    Sp = _round_up(S, 128)
    nq = Tp // tq

    x_p = jnp.pad(inputs.astype(jnp.float32), ((0, 0), (0, Tp - T), (0, 0)))
    mem_p = jnp.pad(memory_bank.astype(jnp.float32),
                    ((0, 0), (0, Sp - S), (0, 0))).astype(bf16)
    tpad = jnp.pad(tgt_pad_mask.reshape(B, 1, T).astype(jnp.int32),
                   ((0, 0), (0, 0), (0, Tp - T)), constant_values=1)
    spad = jnp.pad(src_pad_mask.reshape(B, 1, S).astype(jnp.int32),
                   ((0, 0), (0, 0), (0, Sp - S)), constant_values=1)

    # --- parameter prep: bf16 weights (f32 biases / LN), fold 1/sqrt(dh) into wq/bq ---
    (ln1_g, ln1_b, wq, bq, wk, bk, wv, bv, wck, bck, wcv, bcv,
     wo, bo, ln2_g, ln2_b, w1, b1, w2, b2) = params
    scale = 1.0 / math.sqrt(D // heads)
    kparams = [
        ln1_g, ln1_b,
        (wq * scale).astype(bf16), (bq * scale).astype(jnp.float32),
        wk.astype(bf16), bk, wv.astype(bf16), bv,
        wck.astype(bf16), bck, wcv.astype(bf16), bcv,
        wo.astype(bf16), bo, ln2_g, ln2_b,
        w1.astype(bf16), b1, w2.astype(bf16), b2,
    ]

    d_ff = w1.shape[1]
    d_ff_chunk = 512 if (d_ff > 512 and d_ff % 512 == 0) else d_ff

    kernel = functools.partial(_decoder_layer_psa_kernel, heads, d_ff_chunk)

    data_specs = [
        pl.BlockSpec((1, tq, D), lambda b, q: (b, q, 0)),   # inputs (query tile, f32)
        pl.BlockSpec((1, Sp, D), lambda b, q: (b, 0, 0)),   # memory_bank (bf16)
        pl.BlockSpec((1, 1, Tp), lambda b, q: (b, 0, 0)),   # tgt pad mask (int32)
        pl.BlockSpec((1, 1, Sp), lambda b, q: (b, 0, 0)),   # src pad mask (int32)
    ]
    # grid-invariant params: whole-array, single-buffered VMEM residents (no pipeline buffers)
    param_specs = [pl.BlockSpec(memory_space=pltpu.MemorySpace.VMEM) for _ in kparams]

    out_shape = (jax.ShapeDtypeStruct((B, Tp, D), jnp.float32),
                 jax.ShapeDtypeStruct((B, Tp, Sp), jnp.float32))
    out_specs = (pl.BlockSpec((1, tq, D), lambda b, q: (b, q, 0)),
                 pl.BlockSpec((1, tq, Sp), lambda b, q: (b, q, 0)))

    scratch_shapes = [
        pltpu.VMEM((Tp, D), bf16), pltpu.VMEM((Tp, D), bf16),   # self K, V cache
        pltpu.VMEM((Sp, D), bf16), pltpu.VMEM((Sp, D), bf16),   # ctx  K, V cache
        pltpu.VMEM((tq, D), jnp.float32),                       # head-output slab
    ]

    # --- VMEM budget: single-copy params + double-buffered streaming blocks + scratch + temps ---
    param_bytes = sum(int(p.size) * p.dtype.itemsize for p in kparams)
    stream_bytes = 2 * (tq * D * 4 + Sp * D * 2 + Tp * 4 + Sp * 4)      # pipelined inputs (2-buf)
    out_bytes = 2 * (tq * D * 4 + tq * Sp * 4)                          # pipelined outputs (2-buf)
    scratch_bytes = 2 * 2 * (Tp + Sp) * D + 4 * tq * D                  # bf16 KV caches + f32 slab
    tmp_bytes = 4 * (2 * tq * Tp + 3 * tq * Sp + 2 * tq * d_ff_chunk + 6 * tq * D)
    est = param_bytes + stream_bytes + out_bytes + scratch_bytes + tmp_bytes
    vmem_limit = int(min(vmem_cap, max(32 * 2 ** 20, int(1.25 * est))))

    out, attn = pl.pallas_call(
        kernel,
        out_shape=out_shape,
        grid=(B, nq),
        in_specs=data_specs + param_specs,
        out_specs=out_specs,
        scratch_shapes=scratch_shapes,
        compiler_params=pltpu.CompilerParams(
            dimension_semantics=("parallel", "arbitrary"),
            vmem_limit_bytes=vmem_limit),
    )(x_p, mem_p, tpad, spad, *kparams)

    return out[:, :T, :], attn[:, :T, :S]


if __name__ == "__main__":
    B, T, S, D, H = 2, 8, 8, 32, 4
    key = jax.random.PRNGKey(0)
    k_in, k_mem, k_par = jax.random.split(key, 3)

    inputs = jax.random.normal(k_in, (B, T, D), jnp.float32)
    memory_bank = jax.random.normal(k_mem, (B, S, D), jnp.float32)
    # pad masks: 1 == padded position
    src_pad_mask = jnp.zeros((B, 1, S), jnp.int32).at[1, 0, S - 2:].set(1)
    tgt_pad_mask = jnp.zeros((B, 1, T), jnp.int32).at[1, 0, T - 1:].set(1)

    params = init_params(k_par, D)

    out, attn = decoder_layer_psa(inputs, memory_bank, src_pad_mask,
                                  tgt_pad_mask, params, heads=H)
    jax.block_until_ready((out, attn))
    assert out.shape == (B, T, D) and attn.shape == (B, T, S)
    assert bool(jnp.all(jnp.isfinite(out))) and bool(jnp.all(jnp.isfinite(attn)))
    print("KERNEL_OK")
</pallas_src>

<mosaic_0001>
module attributes {stable_mosaic.version = 11 : i64} {
  func.func @_decoder_layer_psa_kernel(%arg0: i32, %arg1: i32, %arg2: memref<1x8x32xf32, #tpu.memory_space<vmem>>, %arg3: memref<1x128x32xbf16, #tpu.memory_space<vmem>>, %arg4: memref<1x1x8xi32, #tpu.memory_space<vmem>>, %arg5: memref<1x1x128xi32, #tpu.memory_space<vmem>>, %arg6: memref<1x32xf32, #tpu.memory_space<vmem>>, %arg7: memref<1x32xf32, #tpu.memory_space<vmem>>, %arg8: memref<32x32xbf16, #tpu.memory_space<vmem>>, %arg9: memref<1x32xf32, #tpu.memory_space<vmem>>, %arg10: memref<32x32xbf16, #tpu.memory_space<vmem>>, %arg11: memref<1x32xf32, #tpu.memory_space<vmem>>, %arg12: memref<32x32xbf16, #tpu.memory_space<vmem>>, %arg13: memref<1x32xf32, #tpu.memory_space<vmem>>, %arg14: memref<32x32xbf16, #tpu.memory_space<vmem>>, %arg15: memref<1x32xf32, #tpu.memory_space<vmem>>, %arg16: memref<32x32xbf16, #tpu.memory_space<vmem>>, %arg17: memref<1x32xf32, #tpu.memory_space<vmem>>, %arg18: memref<32x32xbf16, #tpu.memory_space<vmem>>, %arg19: memref<1x32xf32, #tpu.memory_space<vmem>>, %arg20: memref<1x32xf32, #tpu.memory_space<vmem>>, %arg21: memref<1x32xf32, #tpu.memory_space<vmem>>, %arg22: memref<32x128xbf16, #tpu.memory_space<vmem>>, %arg23: memref<1x128xf32, #tpu.memory_space<vmem>>, %arg24: memref<128x32xbf16, #tpu.memory_space<vmem>>, %arg25: memref<1x32xf32, #tpu.memory_space<vmem>>, %arg26: memref<1x8x32xf32, #tpu.memory_space<vmem>>, %arg27: memref<1x8x128xf32, #tpu.memory_space<vmem>>, %arg28: memref<8x32xbf16, #tpu.memory_space<vmem>>, %arg29: memref<8x32xbf16, #tpu.memory_space<vmem>>, %arg30: memref<128x32xbf16, #tpu.memory_space<vmem>>, %arg31: memref<128x32xbf16, #tpu.memory_space<vmem>>, %arg32: memref<8x32xf32, #tpu.memory_space<vmem>>) attributes {dimension_semantics = [#tpu.dimension_semantics<parallel>, #tpu.dimension_semantics<arbitrary>], iteration_bounds = array<i64: 2, 1>, scalar_prefetch = 0 : i64, scratch_operands = 5 : i64, tpu.core_type = #tpu.core_type<tc>, window_params = [{transform_indices = @transform_0, window_bounds = array<i64: 1, 8, 32>}, {transform_indices = @transform_1, window_bounds = array<i64: 1, 128, 32>}, {transform_indices = @transform_2, window_bounds = array<i64: 1, 1, 8>}, {transform_indices = @transform_3, window_bounds = array<i64: 1, 1, 128>}, {pipeline_mode = #tpu.pipeline_mode<synchronous>, transform_indices = @transform_4, window_bounds = array<i64: 1, 32>}, {pipeline_mode = #tpu.pipeline_mode<synchronous>, transform_indices = @transform_5, window_bounds = array<i64: 1, 32>}, {pipeline_mode = #tpu.pipeline_mode<synchronous>, transform_indices = @transform_6, window_bounds = array<i64: 32, 32>}, {pipeline_mode = #tpu.pipeline_mode<synchronous>, transform_indices = @transform_7, window_bounds = array<i64: 1, 32>}, {pipeline_mode = #tpu.pipeline_mode<synchronous>, transform_indices = @transform_8, window_bounds = array<i64: 32, 32>}, {pipeline_mode = #tpu.pipeline_mode<synchronous>, transform_indices = @transform_9, window_bounds = array<i64: 1, 32>}, {pipeline_mode = #tpu.pipeline_mode<synchronous>, transform_indices = @transform_10, window_bounds = array<i64: 32, 32>}, {pipeline_mode = #tpu.pipeline_mode<synchronous>, transform_indices = @transform_11, window_bounds = array<i64: 1, 32>}, {pipeline_mode = #tpu.pipeline_mode<synchronous>, transform_indices = @transform_12, window_bounds = array<i64: 32, 32>}, {pipeline_mode = #tpu.pipeline_mode<synchronous>, transform_indices = @transform_13, window_bounds = array<i64: 1, 32>}, {pipeline_mode = #tpu.pipeline_mode<synchronous>, transform_indices = @transform_14, window_bounds = array<i64: 32, 32>}, {pipeline_mode = #tpu.pipeline_mode<synchronous>, transform_indices = @transform_15, window_bounds = array<i64: 1, 32>}, {pipeline_mode = #tpu.pipeline_mode<synchronous>, transform_indices = @transform_16, window_bounds = array<i64: 32, 32>}, {pipeline_mode = #tpu.pipeline_mode<synchronous>, transform_indices = @transform_17, window_bounds = array<i64: 1, 32>}, {pipeline_mode = #tpu.pipeline_mode<synchronous>, transform_indices = @transform_18, window_bounds = array<i64: 1, 32>}, {pipeline_mode = #tpu.pipeline_mode<synchronous>, transform_indices = @transform_19, window_bounds = array<i64: 1, 32>}, {pipeline_mode = #tpu.pipeline_mode<synchronous>, transform_indices = @transform_20, window_bounds = array<i64: 32, 128>}, {pipeline_mode = #tpu.pipeline_mode<synchronous>, transform_indices = @transform_21, window_bounds = array<i64: 1, 128>}, {pipeline_mode = #tpu.pipeline_mode<synchronous>, transform_indices = @transform_22, window_bounds = array<i64: 128, 32>}, {pipeline_mode = #tpu.pipeline_mode<synchronous>, transform_indices = @transform_23, window_bounds = array<i64: 1, 32>}, {transform_indices = @transform_24, window_bounds = array<i64: 1, 8, 32>}, {transform_indices = @transform_25, window_bounds = array<i64: 1, 8, 128>}]} {
    %c0_i32 = arith.constant 0 : i32
    %0 = arith.cmpi eq, %arg1, %c0_i32 : i32
    %1 = arith.extui %0 : i1 to i32
    %c0_i32_0 = arith.constant 0 : i32
    %2 = arith.cmpi ne, %1, %c0_i32_0 : i32
    scf.if %2 {
      %cst_146 = arith.constant 0.000000e+00 : bf16
      %289 = vector.broadcast %cst_146 : bf16 to vector<8x32xbf16>
      %c0_147 = arith.constant 0 : index
      %c0_148 = arith.constant 0 : index
      %290 = vector.load %arg28[%c0_147, %c0_148] : memref<8x32xbf16, #tpu.memory_space<vmem>>, vector<8x32xbf16>
      tpu.vector_store %arg28[%c0_147, %c0_148], %289 {strides = array<i32>} : memref<8x32xbf16, #tpu.memory_space<vmem>>, vector<8x32xbf16>,
      %cst_149 = arith.constant 0.000000e+00 : bf16
      %291 = vector.broadcast %cst_149 : bf16 to vector<8x32xbf16>
      %c0_150 = arith.constant 0 : index
      %c0_151 = arith.constant 0 : index
      %292 = vector.load %arg29[%c0_150, %c0_151] : memref<8x32xbf16, #tpu.memory_space<vmem>>, vector<8x32xbf16>
      tpu.vector_store %arg29[%c0_150, %c0_151], %291 {strides = array<i32>} : memref<8x32xbf16, #tpu.memory_space<vmem>>, vector<8x32xbf16>,
      %c0_152 = arith.constant 0 : index
      %c0_153 = arith.constant 0 : index
      %c0_154 = arith.constant 0 : index
      %293 = vector.load %arg3[%c0_152, %c0_153, %c0_154] : memref<1x128x32xbf16, #tpu.memory_space<vmem>>, vector<1x128x32xbf16>
      %294 = vector.shape_cast %293 : vector<1x128x32xbf16> to vector<128x32xbf16>
      %c0_155 = arith.constant 0 : index
      %c0_156 = arith.constant 0 : index
      %295 = vector.load %arg14[%c0_155, %c0_156] : memref<32x32xbf16, #tpu.memory_space<vmem>>, vector<32x32xbf16>
      %cst_157 = arith.constant dense<0.000000e+00> : vector<128x32xf32>
      %296 = tpu.matmul %294, %295, %cst_157 {dimension_numbers = #tpu.dot_dimension_numbers<[1], [0], [0], [1], [0, 0, 1, 1], [], []>} : vector<128x32xbf16>, vector<32x32xbf16>, vector<128x32xf32> -> vector<128x32xf32>
      %c0_158 = arith.constant 0 : index
      %c0_159 = arith.constant 0 : index
      %297 = vector.load %arg15[%c0_158, %c0_159] : memref<1x32xf32, #tpu.memory_space<vmem>>, vector<1x32xf32>
      %298 = vector.broadcast %297 : vector<1x32xf32> to vector<128x32xf32>
      %299 = arith.addf %296, %298 : vector<128x32xf32>
      %300 = arith.truncf %299 : vector<128x32xf32> to vector<128x32xbf16>
      %c0_160 = arith.constant 0 : index
      %c0_161 = arith.constant 0 : index
      %301 = vector.load %arg30[%c0_160, %c0_161] : memref<128x32xbf16, #tpu.memory_space<vmem>>, vector<128x32xbf16>
      tpu.vector_store %arg30[%c0_160, %c0_161], %300 {strides = array<i32>} : memref<128x32xbf16, #tpu.memory_space<vmem>>, vector<128x32xbf16>,
      %c0_162 = arith.constant 0 : index
      %c0_163 = arith.constant 0 : index
      %302 = vector.load %arg16[%c0_162, %c0_163] : memref<32x32xbf16, #tpu.memory_space<vmem>>, vector<32x32xbf16>
      %cst_164 = arith.constant dense<0.000000e+00> : vector<128x32xf32>
      %303 = tpu.matmul %294, %302, %cst_164 {dimension_numbers = #tpu.dot_dimension_numbers<[1], [0], [0], [1], [0, 0, 1, 1], [], []>} : vector<128x32xbf16>, vector<32x32xbf16>, vector<128x32xf32> -> vector<128x32xf32>
      %c0_165 = arith.constant 0 : index
      %c0_166 = arith.constant 0 : index
      %304 = vector.load %arg17[%c0_165, %c0_166] : memref<1x32xf32, #tpu.memory_space<vmem>>, vector<1x32xf32>
      %305 = vector.broadcast %304 : vector<1x32xf32> to vector<128x32xf32>
      %306 = arith.addf %303, %305 : vector<128x32xf32>
      %307 = arith.truncf %306 : vector<128x32xf32> to vector<128x32xbf16>
      %c0_167 = arith.constant 0 : index
      %c0_168 = arith.constant 0 : index
      %308 = vector.load %arg31[%c0_167, %c0_168] : memref<128x32xbf16, #tpu.memory_space<vmem>>, vector<128x32xbf16>
      tpu.vector_store %arg31[%c0_167, %c0_168], %307 {strides = array<i32>} : memref<128x32xbf16, #tpu.memory_space<vmem>>, vector<128x32xbf16>,
    } else {
    }
    %c0 = arith.constant 0 : index
    %c0_1 = arith.constant 0 : index
    %c0_2 = arith.constant 0 : index
    %3 = vector.load %arg2[%c0, %c0_1, %c0_2] : memref<1x8x32xf32, #tpu.memory_space<vmem>>, vector<1x8x32xf32>
    %4 = vector.shape_cast %3 : vector<1x8x32xf32> to vector<8x32xf32>
    %cst = arith.constant dense<0.000000e+00> : vector<8xf32>
    %5 = vector.multi_reduction <add>, %4, %cst [1] : vector<8x32xf32> to vector<8xf32>
    %6 = vector.shape_cast %5 : vector<8xf32> to vector<8x1xf32>
    %cst_3 = arith.constant 3.200000e+01 : f32
    %7 = vector.broadcast %cst_3 : f32 to vector<8x1xf32>
    %8 = arith.divf %6, %7 : vector<8x1xf32>
    %9 = vector.broadcast %8 : vector<8x1xf32> to vector<8x32xf32>
    %10 = arith.subf %4, %9 : vector<8x32xf32>
    %11 = arith.mulf %10, %10 : vector<8x32xf32>
    %cst_4 = arith.constant dense<0.000000e+00> : vector<8xf32>
    %12 = vector.multi_reduction <add>, %11, %cst_4 [1] : vector<8x32xf32> to vector<8xf32>
    %13 = vector.shape_cast %12 : vector<8xf32> to vector<8x1xf32>
    %cst_5 = arith.constant 3.200000e+01 : f32
    %14 = vector.broadcast %cst_5 : f32 to vector<8x1xf32>
    %15 = arith.divf %13, %14 : vector<8x1xf32>
    %16 = vector.broadcast %8 : vector<8x1xf32> to vector<8x32xf32>
    %17 = arith.subf %4, %16 : vector<8x32xf32>
    %cst_6 = arith.constant 9.99999974E-6 : f32
    %18 = vector.broadcast %cst_6 : f32 to vector<8x1xf32>
    %19 = arith.addf %15, %18 : vector<8x1xf32>
    %20 = math.rsqrt %19 : vector<8x1xf32>
    %21 = vector.broadcast %20 : vector<8x1xf32> to vector<8x32xf32>
    %22 = arith.mulf %17, %21 : vector<8x32xf32>
    %c0_7 = arith.constant 0 : index
    %c0_8 = arith.constant 0 : index
    %23 = vector.load %arg6[%c0_7, %c0_8] : memref<1x32xf32, #tpu.memory_space<vmem>>, vector<1x32xf32>
    %24 = vector.broadcast %23 : vector<1x32xf32> to vector<8x32xf32>
    %25 = arith.mulf %22, %24 : vector<8x32xf32>
    %c0_9 = arith.constant 0 : index
    %c0_10 = arith.constant 0 : index
    %26 = vector.load %arg7[%c0_9, %c0_10] : memref<1x32xf32, #tpu.memory_space<vmem>>, vector<1x32xf32>
    %27 = vector.broadcast %26 : vector<1x32xf32> to vector<8x32xf32>
    %28 = arith.addf %25, %27 : vector<8x32xf32>
    %29 = arith.truncf %28 : vector<8x32xf32> to vector<8x32xbf16>
    %c8_i32 = arith.constant 8 : i32
    %30 = arith.muli %arg1, %c8_i32 : i32
    %31 = tpu.assume_multiple %30, 8 : i32
    %c0_11 = arith.constant 0 : index
    %c0_12 = arith.constant 0 : index
    %32 = vector.load %arg10[%c0_11, %c0_12] : memref<32x32xbf16, #tpu.memory_space<vmem>>, vector<32x32xbf16>
    %cst_13 = arith.constant dense<0.000000e+00> : vector<8x32xf32>
    %33 = tpu.matmul %29, %32, %cst_13 {dimension_numbers = #tpu.dot_dimension_numbers<[1], [0], [0], [1], [0, 0, 1, 1], [], []>} : vector<8x32xbf16>, vector<32x32xbf16>, vector<8x32xf32> -> vector<8x32xf32>
    %c0_14 = arith.constant 0 : index
    %c0_15 = arith.constant 0 : index
    %34 = vector.load %arg11[%c0_14, %c0_15] : memref<1x32xf32, #tpu.memory_space<vmem>>, vector<1x32xf32>
    %35 = vector.broadcast %34 : vector<1x32xf32> to vector<8x32xf32>
    %36 = arith.addf %33, %35 : vector<8x32xf32>
    %37 = arith.truncf %36 : vector<8x32xf32> to vector<8x32xbf16>
    %38 = arith.index_cast %31 : i32 to index
    %c0_16 = arith.constant 0 : index
    %39 = vector.load %arg28[%38, %c0_16] : memref<8x32xbf16, #tpu.memory_space<vmem>>, vector<8x32xbf16>
    tpu.vector_store %arg28[%38, %c0_16], %37 {strides = array<i32>} : memref<8x32xbf16, #tpu.memory_space<vmem>>, vector<8x32xbf16>,
    %c0_17 = arith.constant 0 : index
    %c0_18 = arith.constant 0 : index
    %40 = vector.load %arg12[%c0_17, %c0_18] : memref<32x32xbf16, #tpu.memory_space<vmem>>, vector<32x32xbf16>
    %cst_19 = arith.constant dense<0.000000e+00> : vector<8x32xf32>
    %41 = tpu.matmul %29, %40, %cst_19 {dimension_numbers = #tpu.dot_dimension_numbers<[1], [0], [0], [1], [0, 0, 1, 1], [], []>} : vector<8x32xbf16>, vector<32x32xbf16>, vector<8x32xf32> -> vector<8x32xf32>
    %c0_20 = arith.constant 0 : index
    %c0_21 = arith.constant 0 : index
    %42 = vector.load %arg13[%c0_20, %c0_21] : memref<1x32xf32, #tpu.memory_space<vmem>>, vector<1x32xf32>
    %43 = vector.broadcast %42 : vector<1x32xf32> to vector<8x32xf32>
    %44 = arith.addf %41, %43 : vector<8x32xf32>
    %45 = arith.truncf %44 : vector<8x32xf32> to vector<8x32xbf16>
    %46 = arith.index_cast %31 : i32 to index
    %c0_22 = arith.constant 0 : index
    %47 = vector.load %arg29[%46, %c0_22] : memref<8x32xbf16, #tpu.memory_space<vmem>>, vector<8x32xbf16>
    tpu.vector_store %arg29[%46, %c0_22], %45 {strides = array<i32>} : memref<8x32xbf16, #tpu.memory_space<vmem>>, vector<8x32xbf16>,
    %c0_23 = arith.constant 0 : index
    %c0_24 = arith.constant 0 : index
    %48 = vector.load %arg8[%c0_23, %c0_24] : memref<32x32xbf16, #tpu.memory_space<vmem>>, vector<32x32xbf16>
    %cst_25 = arith.constant dense<0.000000e+00> : vector<8x32xf32>
    %49 = tpu.matmul %29, %48, %cst_25 {dimension_numbers = #tpu.dot_dimension_numbers<[1], [0], [0], [1], [0, 0, 1, 1], [], []>} : vector<8x32xbf16>, vector<32x32xbf16>, vector<8x32xf32> -> vector<8x32xf32>
    %c0_26 = arith.constant 0 : index
    %c0_27 = arith.constant 0 : index
    %50 = vector.load %arg9[%c0_26, %c0_27] : memref<1x32xf32, #tpu.memory_space<vmem>>, vector<1x32xf32>
    %51 = vector.broadcast %50 : vector<1x32xf32> to vector<8x32xf32>
    %52 = arith.addf %49, %51 : vector<8x32xf32>
    %53 = arith.truncf %52 : vector<8x32xf32> to vector<8x32xbf16>
    %54 = tpu.iota {dimensions = array<i32: 0>} : vector<8x8xi32>
    %55 = vector.broadcast %31 : i32 to vector<8x8xi32>
    %56 = arith.addi %55, %54 : vector<8x8xi32>
    %57 = tpu.iota {dimensions = array<i32: 1>} : vector<8x8xi32>
    %c0_28 = arith.constant 0 : index
    %c0_29 = arith.constant 0 : index
    %c0_30 = arith.constant 0 : index
    %58 = vector.load %arg4[%c0_28, %c0_29, %c0_30] : memref<1x1x8xi32, #tpu.memory_space<vmem>>, vector<1x1x8xi32>
    %59 = vector.shape_cast %58 : vector<1x1x8xi32> to vector<1x8xi32>
    %60 = arith.cmpi sgt, %57, %56 : vector<8x8xi32>
    %c0_i32_31 = arith.constant 0 : i32
    %61 = vector.broadcast %c0_i32_31 : i32 to vector<1x8xi32>
    %62 = arith.cmpi sgt, %59, %61 : vector<1x8xi32>
    %63 = vector.broadcast %62 : vector<1x8xi1> to vector<8x8xi1>
    %64 = arith.ori %60, %63 : vector<8x8xi1>
    %cst_32 = arith.constant -9.99999984E+17 : f32
    %cst_33 = arith.constant 0.000000e+00 : f32
    %65 = vector.broadcast %cst_32 : f32 to vector<8x8xf32>
    %66 = vector.broadcast %cst_33 : f32 to vector<8x8xf32>
    %67 = arith.select %64, %65, %66 : vector<8x8xi1>, vector<8x8xf32>
    %c0_34 = arith.constant 0 : index
    %c0_35 = arith.constant 0 : index
    %c0_36 = arith.constant 0 : index
    %68 = vector.load %arg5[%c0_34, %c0_35, %c0_36] : memref<1x1x128xi32, #tpu.memory_space<vmem>>, vector<1x1x128xi32>
    %69 = vector.shape_cast %68 : vector<1x1x128xi32> to vector<1x128xi32>
    %c0_i32_37 = arith.constant 0 : i32
    %70 = vector.broadcast %c0_i32_37 : i32 to vector<1x128xi32>
    %71 = arith.cmpi sgt, %69, %70 : vector<1x128xi32>
    %cst_38 = arith.constant -9.99999984E+17 : f32
    %cst_39 = arith.constant 0.000000e+00 : f32
    %72 = vector.broadcast %cst_38 : f32 to vector<1x128xf32>
    %73 = vector.broadcast %cst_39 : f32 to vector<1x128xf32>
    %74 = arith.select %71, %72, %73 : vector<1x128xi1>, vector<1x128xf32>
    %75 = vector.extract_strided_slice %53 {offsets = [0, 0], sizes = [8, 8], strides = [1, 1]} : vector<8x32xbf16> to vector<8x8xbf16>
    %c0_40 = arith.constant 0 : index
    %c0_41 = arith.constant 0 : index
    %76 = vector.load %arg28[%c0_40, %c0_41] : memref<8x32xbf16, #tpu.memory_space<vmem>>, vector<8x8xbf16>
    %cst_42 = arith.constant dense<0.000000e+00> : vector<8x8xf32>
    %77 = tpu.matmul %75, %76, %cst_42 {dimension_numbers = #tpu.dot_dimension_numbers<[1], [1], [0], [0], [0, 0, 1, 0], [], []>} : vector<8x8xbf16>, vector<8x8xbf16>, vector<8x8xf32> -> vector<8x8xf32>
    %78 = arith.addf %77, %67 : vector<8x8xf32>
    %c0_43 = arith.constant 0 : index
    %c0_44 = arith.constant 0 : index
    %79 = vector.load %arg30[%c0_43, %c0_44] : memref<128x32xbf16, #tpu.memory_space<vmem>>, vector<128x8xbf16>
    %cst_45 = arith.constant dense<0.000000e+00> : vector<8x128xf32>
    %80 = tpu.matmul %75, %79, %cst_45 {dimension_numbers = #tpu.dot_dimension_numbers<[1], [1], [0], [0], [0, 0, 1, 0], [], []>} : vector<8x8xbf16>, vector<128x8xbf16>, vector<8x128xf32> -> vector<8x128xf32>
    %81 = vector.broadcast %74 : vector<1x128xf32> to vector<8x128xf32>
    %82 = arith.addf %80, %81 : vector<8x128xf32>
    %cst_46 = arith.constant dense<0xFF800000> : vector<8xf32>
    %83 = vector.multi_reduction <maximumf>, %82, %cst_46 [1] : vector<8x128xf32> to vector<8xf32>
    %84 = vector.shape_cast %83 : vector<8xf32> to vector<8x1xf32>
    %cst_47 = arith.constant dense<0xFF800000> : vector<8xf32>
    %85 = vector.multi_reduction <maximumf>, %78, %cst_47 [1] : vector<8x8xf32> to vector<8xf32>
    %86 = vector.shape_cast %85 : vector<8xf32> to vector<8x1xf32>
    %87 = arith.maximumf %84, %86 : vector<8x1xf32>
    %88 = vector.broadcast %87 : vector<8x1xf32> to vector<8x128xf32>
    %89 = arith.subf %82, %88 : vector<8x128xf32>
    %90 = math.exp %89 : vector<8x128xf32>
    %91 = vector.broadcast %87 : vector<8x1xf32> to vector<8x8xf32>
    %92 = arith.subf %78, %91 : vector<8x8xf32>
    %93 = math.exp %92 : vector<8x8xf32>
    %cst_48 = arith.constant dense<0.000000e+00> : vector<8xf32>
    %94 = vector.multi_reduction <add>, %90, %cst_48 [1] : vector<8x128xf32> to vector<8xf32>
    %95 = vector.shape_cast %94 : vector<8xf32> to vector<8x1xf32>
    %cst_49 = arith.constant dense<0.000000e+00> : vector<8xf32>
    %96 = vector.multi_reduction <add>, %93, %cst_49 [1] : vector<8x8xf32> to vector<8xf32>
    %97 = vector.shape_cast %96 : vector<8xf32> to vector<8x1xf32>
    %98 = arith.addf %95, %97 : vector<8x1xf32>
    %99 = tpu.reciprocal %98 : vector<8x1xf32> -> vector<8x1xf32>
    %100 = vector.broadcast %99 : vector<8x1xf32> to vector<8x128xf32>
    %101 = arith.mulf %90, %100 : vector<8x128xf32>
    %102 = vector.broadcast %99 : vector<8x1xf32> to vector<8x8xf32>
    %103 = arith.mulf %93, %102 : vector<8x8xf32>
    %c0_50 = arith.constant 0 : index
    %c0_51 = arith.constant 0 : index
    %c0_52 = arith.constant 0 : index
    %104 = vector.load %arg27[%c0_50, %c0_51, %c0_52] : memref<1x8x128xf32, #tpu.memory_space<vmem>>, vector<1x8x128xf32>
    %105 = vector.shape_cast %104 : vector<1x8x128xf32> to vector<8x128xf32>
    %106 = vector.shape_cast %101 : vector<8x128xf32> to vector<1x8x128xf32>
    tpu.vector_store %arg27[%c0_50, %c0_51, %c0_52], %106 {strides = array<i32>} : memref<1x8x128xf32, #tpu.memory_space<vmem>>, vector<1x8x128xf32>,
    %107 = arith.truncf %101 : vector<8x128xf32> to vector<8x128xbf16>
    %c0_53 = arith.constant 0 : index
    %c0_54 = arith.constant 0 : index
    %108 = vector.load %arg31[%c0_53, %c0_54] : memref<128x32xbf16, #tpu.memory_space<vmem>>, vector<128x8xbf16>
    %cst_55 = arith.constant dense<0.000000e+00> : vector<8x8xf32>
    %109 = tpu.matmul %107, %108, %cst_55 {dimension_numbers = #tpu.dot_dimension_numbers<[1], [0], [0], [1], [0, 0, 1, 1], [], []>} : vector<8x128xbf16>, vector<128x8xbf16>, vector<8x8xf32> -> vector<8x8xf32>
    %110 = arith.truncf %103 : vector<8x8xf32> to vector<8x8xbf16>
    %c0_56 = arith.constant 0 : index
    %c0_57 = arith.constant 0 : index
    %111 = vector.load %arg29[%c0_56, %c0_57] : memref<8x32xbf16, #tpu.memory_space<vmem>>, vector<8x8xbf16>
    %cst_58 = arith.constant dense<0.000000e+00> : vector<8x8xf32>
    %112 = tpu.matmul %110, %111, %cst_58 {dimension_numbers = #tpu.dot_dimension_numbers<[1], [0], [0], [1], [0, 0, 1, 1], [], []>} : vector<8x8xbf16>, vector<8x8xbf16>, vector<8x8xf32> -> vector<8x8xf32>
    %113 = arith.addf %109, %112 : vector<8x8xf32>
    %c0_59 = arith.constant 0 : index
    %c0_60 = arith.constant 0 : index
    %114 = vector.load %arg32[%c0_59, %c0_60] : memref<8x32xf32, #tpu.memory_space<vmem>>, vector<8x8xf32>
    tpu.vector_store %arg32[%c0_59, %c0_60], %113 {strides = array<i32>} : memref<8x32xf32, #tpu.memory_space<vmem>>, vector<8x8xf32>,
    %115 = vector.extract_strided_slice %53 {offsets = [0, 8], sizes = [8, 8], strides = [1, 1]} : vector<8x32xbf16> to vector<8x8xbf16>
    %c0_61 = arith.constant 0 : index
    %c8 = arith.constant 8 : index
    %116 = vector.load %arg28[%c0_61, %c8] : memref<8x32xbf16, #tpu.memory_space<vmem>>, vector<8x8xbf16>
    %cst_62 = arith.constant dense<0.000000e+00> : vector<8x8xf32>
    %117 = tpu.matmul %115, %116, %cst_62 {dimension_numbers = #tpu.dot_dimension_numbers<[1], [1], [0], [0], [0, 0, 1, 0], [], []>} : vector<8x8xbf16>, vector<8x8xbf16>, vector<8x8xf32> -> vector<8x8xf32>
    %118 = arith.addf %117, %67 : vector<8x8xf32>
    %c0_63 = arith.constant 0 : index
    %c8_64 = arith.constant 8 : index
    %119 = vector.load %arg30[%c0_63, %c8_64] : memref<128x32xbf16, #tpu.memory_space<vmem>>, vector<128x8xbf16>
    %cst_65 = arith.constant dense<0.000000e+00> : vector<8x128xf32>
    %120 = tpu.matmul %115, %119, %cst_65 {dimension_numbers = #tpu.dot_dimension_numbers<[1], [1], [0], [0], [0, 0, 1, 0], [], []>} : vector<8x8xbf16>, vector<128x8xbf16>, vector<8x128xf32> -> vector<8x128xf32>
    %121 = vector.broadcast %74 : vector<1x128xf32> to vector<8x128xf32>
    %122 = arith.addf %120, %121 : vector<8x128xf32>
    %cst_66 = arith.constant dense<0xFF800000> : vector<8xf32>
    %123 = vector.multi_reduction <maximumf>, %122, %cst_66 [1] : vector<8x128xf32> to vector<8xf32>
    %124 = vector.shape_cast %123 : vector<8xf32> to vector<8x1xf32>
    %cst_67 = arith.constant dense<0xFF800000> : vector<8xf32>
    %125 = vector.multi_reduction <maximumf>, %118, %cst_67 [1] : vector<8x8xf32> to vector<8xf32>
    %126 = vector.shape_cast %125 : vector<8xf32> to vector<8x1xf32>
    %127 = arith.maximumf %124, %126 : vector<8x1xf32>
    %128 = vector.broadcast %127 : vector<8x1xf32> to vector<8x128xf32>
    %129 = arith.subf %122, %128 : vector<8x128xf32>
    %130 = math.exp %129 : vector<8x128xf32>
    %131 = vector.broadcast %127 : vector<8x1xf32> to vector<8x8xf32>
    %132 = arith.subf %118, %131 : vector<8x8xf32>
    %133 = math.exp %132 : vector<8x8xf32>
    %cst_68 = arith.constant dense<0.000000e+00> : vector<8xf32>
    %134 = vector.multi_reduction <add>, %130, %cst_68 [1] : vector<8x128xf32> to vector<8xf32>
    %135 = vector.shape_cast %134 : vector<8xf32> to vector<8x1xf32>
    %cst_69 = arith.constant dense<0.000000e+00> : vector<8xf32>
    %136 = vector.multi_reduction <add>, %133, %cst_69 [1] : vector<8x8xf32> to vector<8xf32>
    %137 = vector.shape_cast %136 : vector<8xf32> to vector<8x1xf32>
    %138 = arith.addf %135, %137 : vector<8x1xf32>
    %139 = tpu.reciprocal %138 : vector<8x1xf32> -> vector<8x1xf32>
    %140 = vector.broadcast %139 : vector<8x1xf32> to vector<8x128xf32>
    %141 = arith.mulf %130, %140 : vector<8x128xf32>
    %142 = vector.broadcast %139 : vector<8x1xf32> to vector<8x8xf32>
    %143 = arith.mulf %133, %142 : vector<8x8xf32>
    %144 = arith.truncf %141 : vector<8x128xf32> to vector<8x128xbf16>
    %c0_70 = arith.constant 0 : index
    %c8_71 = arith.constant 8 : index
    %145 = vector.load %arg31[%c0_70, %c8_71] : memref<128x32xbf16, #tpu.memory_space<vmem>>, vector<128x8xbf16>
    %cst_72 = arith.constant dense<0.000000e+00> : vector<8x8xf32>
    %146 = tpu.matmul %144, %145, %cst_72 {dimension_numbers = #tpu.dot_dimension_numbers<[1], [0], [0], [1], [0, 0, 1, 1], [], []>} : vector<8x128xbf16>, vector<128x8xbf16>, vector<8x8xf32> -> vector<8x8xf32>
    %147 = arith.truncf %143 : vector<8x8xf32> to vector<8x8xbf16>
    %c0_73 = arith.constant 0 : index
    %c8_74 = arith.constant 8 : index
    %148 = vector.load %arg29[%c0_73, %c8_74] : memref<8x32xbf16, #tpu.memory_space<vmem>>, vector<8x8xbf16>
    %cst_75 = arith.constant dense<0.000000e+00> : vector<8x8xf32>
    %149 = tpu.matmul %147, %148, %cst_75 {dimension_numbers = #tpu.dot_dimension_numbers<[1], [0], [0], [1], [0, 0, 1, 1], [], []>} : vector<8x8xbf16>, vector<8x8xbf16>, vector<8x8xf32> -> vector<8x8xf32>
    %150 = arith.addf %146, %149 : vector<8x8xf32>
    %c0_76 = arith.constant 0 : index
    %c8_77 = arith.constant 8 : index
    %151 = vector.load %arg32[%c0_76, %c8_77] : memref<8x32xf32, #tpu.memory_space<vmem>>, vector<8x8xf32>
    tpu.vector_store %arg32[%c0_76, %c8_77], %150 {strides = array<i32>} : memref<8x32xf32, #tpu.memory_space<vmem>>, vector<8x8xf32>,
    %152 = vector.extract_strided_slice %53 {offsets = [0, 16], sizes = [8, 8], strides = [1, 1]} : vector<8x32xbf16> to vector<8x8xbf16>
    %c0_78 = arith.constant 0 : index
    %c16 = arith.constant 16 : index
    %153 = vector.load %arg28[%c0_78, %c16] : memref<8x32xbf16, #tpu.memory_space<vmem>>, vector<8x8xbf16>
    %cst_79 = arith.constant dense<0.000000e+00> : vector<8x8xf32>
    %154 = tpu.matmul %152, %153, %cst_79 {dimension_numbers = #tpu.dot_dimension_numbers<[1], [1], [0], [0], [0, 0, 1, 0], [], []>} : vector<8x8xbf16>, vector<8x8xbf16>, vector<8x8xf32> -> vector<8x8xf32>
    %155 = arith.addf %154, %67 : vector<8x8xf32>
    %c0_80 = arith.constant 0 : index
    %c16_81 = arith.constant 16 : index
    %156 = vector.load %arg30[%c0_80, %c16_81] : memref<128x32xbf16, #tpu.memory_space<vmem>>, vector<128x8xbf16>
    %cst_82 = arith.constant dense<0.000000e+00> : vector<8x128xf32>
    %157 = tpu.matmul %152, %156, %cst_82 {dimension_numbers = #tpu.dot_dimension_numbers<[1], [1], [0], [0], [0, 0, 1, 0], [], []>} : vector<8x8xbf16>, vector<128x8xbf16>, vector<8x128xf32> -> vector<8x128xf32>
    %158 = vector.broadcast %74 : vector<1x128xf32> to vector<8x128xf32>
    %159 = arith.addf %157, %158 : vector<8x128xf32>
    %cst_83 = arith.constant dense<0xFF800000> : vector<8xf32>
    %160 = vector.multi_reduction <maximumf>, %159, %cst_83 [1] : vector<8x128xf32> to vector<8xf32>
    %161 = vector.shape_cast %160 : vector<8xf32> to vector<8x1xf32>
    %cst_84 = arith.constant dense<0xFF800000> : vector<8xf32>
    %162 = vector.multi_reduction <maximumf>, %155, %cst_84 [1] : vector<8x8xf32> to vector<8xf32>
    %163 = vector.shape_cast %162 : vector<8xf32> to vector<8x1xf32>
    %164 = arith.maximumf %161, %163 : vector<8x1xf32>
    %165 = vector.broadcast %164 : vector<8x1xf32> to vector<8x128xf32>
    %166 = arith.subf %159, %165 : vector<8x128xf32>
    %167 = math.exp %166 : vector<8x128xf32>
    %168 = vector.broadcast %164 : vector<8x1xf32> to vector<8x8xf32>
    %169 = arith.subf %155, %168 : vector<8x8xf32>
    %170 = math.exp %169 : vector<8x8xf32>
    %cst_85 = arith.constant dense<0.000000e+00> : vector<8xf32>
    %171 = vector.multi_reduction <add>, %167, %cst_85 [1] : vector<8x128xf32> to vector<8xf32>
    %172 = vector.shape_cast %171 : vector<8xf32> to vector<8x1xf32>
    %cst_86 = arith.constant dense<0.000000e+00> : vector<8xf32>
    %173 = vector.multi_reduction <add>, %170, %cst_86 [1] : vector<8x8xf32> to vector<8xf32>
    %174 = vector.shape_cast %173 : vector<8xf32> to vector<8x1xf32>
    %175 = arith.addf %172, %174 : vector<8x1xf32>
    %176 = tpu.reciprocal %175 : vector<8x1xf32> -> vector<8x1xf32>
    %177 = vector.broadcast %176 : vector<8x1xf32> to vector<8x128xf32>
    %178 = arith.mulf %167, %177 : vector<8x128xf32>
    %179 = vector.broadcast %176 : vector<8x1xf32> to vector<8x8xf32>
    %180 = arith.mulf %170, %179 : vector<8x8xf32>
    %181 = arith.truncf %178 : vector<8x128xf32> to vector<8x128xbf16>
    %c0_87 = arith.constant 0 : index
    %c16_88 = arith.constant 16 : index
    %182 = vector.load %arg31[%c0_87, %c16_88] : memref<128x32xbf16, #tpu.memory_space<vmem>>, vector<128x8xbf16>
    %cst_89 = arith.constant dense<0.000000e+00> : vector<8x8xf32>
    %183 = tpu.matmul %181, %182, %cst_89 {dimension_numbers = #tpu.dot_dimension_numbers<[1], [0], [0], [1], [0, 0, 1, 1], [], []>} : vector<8x128xbf16>, vector<128x8xbf16>, vector<8x8xf32> -> vector<8x8xf32>
    %184 = arith.truncf %180 : vector<8x8xf32> to vector<8x8xbf16>
    %c0_90 = arith.constant 0 : index
    %c16_91 = arith.constant 16 : index
    %185 = vector.load %arg29[%c0_90, %c16_91] : memref<8x32xbf16, #tpu.memory_space<vmem>>, vector<8x8xbf16>
    %cst_92 = arith.constant dense<0.000000e+00> : vector<8x8xf32>
    %186 = tpu.matmul %184, %185, %cst_92 {dimension_numbers = #tpu.dot_dimension_numbers<[1], [0], [0], [1], [0, 0, 1, 1], [], []>} : vector<8x8xbf16>, vector<8x8xbf16>, vector<8x8xf32> -> vector<8x8xf32>
    %187 = arith.addf %183, %186 : vector<8x8xf32>
    %c0_93 = arith.constant 0 : index
    %c16_94 = arith.constant 16 : index
    %188 = vector.load %arg32[%c0_93, %c16_94] : memref<8x32xf32, #tpu.memory_space<vmem>>, vector<8x8xf32>
    tpu.vector_store %arg32[%c0_93, %c16_94], %187 {strides = array<i32>} : memref<8x32xf32, #tpu.memory_space<vmem>>, vector<8x8xf32>,
    %189 = vector.extract_strided_slice %53 {offsets = [0, 24], sizes = [8, 8], strides = [1, 1]} : vector<8x32xbf16> to vector<8x8xbf16>
    %c0_95 = arith.constant 0 : index
    %c24 = arith.constant 24 : index
    %190 = vector.load %arg28[%c0_95, %c24] : memref<8x32xbf16, #tpu.memory_space<vmem>>, vector<8x8xbf16>
    %cst_96 = arith.constant dense<0.000000e+00> : vector<8x8xf32>
    %191 = tpu.matmul %189, %190, %cst_96 {dimension_numbers = #tpu.dot_dimension_numbers<[1], [1], [0], [0], [0, 0, 1, 0], [], []>} : vector<8x8xbf16>, vector<8x8xbf16>, vector<8x8xf32> -> vector<8x8xf32>
    %192 = arith.addf %191, %67 : vector<8x8xf32>
    %c0_97 = arith.constant 0 : index
    %c24_98 = arith.constant 24 : index
    %193 = vector.load %arg30[%c0_97, %c24_98] : memref<128x32xbf16, #tpu.memory_space<vmem>>, vector<128x8xbf16>
    %cst_99 = arith.constant dense<0.000000e+00> : vector<8x128xf32>
    %194 = tpu.matmul %189, %193, %cst_99 {dimension_numbers = #tpu.dot_dimension_numbers<[1], [1], [0], [0], [0, 0, 1, 0], [], []>} : vector<8x8xbf16>, vector<128x8xbf16>, vector<8x128xf32> -> vector<8x128xf32>
    %195 = vector.broadcast %74 : vector<1x128xf32> to vector<8x128xf32>
    %196 = arith.addf %194, %195 : vector<8x128xf32>
    %cst_100 = arith.constant dense<0xFF800000> : vector<8xf32>
    %197 = vector.multi_reduction <maximumf>, %196, %cst_100 [1] : vector<8x128xf32> to vector<8xf32>
    %198 = vector.shape_cast %197 : vector<8xf32> to vector<8x1xf32>
    %cst_101 = arith.constant dense<0xFF800000> : vector<8xf32>
    %199 = vector.multi_reduction <maximumf>, %192, %cst_101 [1] : vector<8x8xf32> to vector<8xf32>
    %200 = vector.shape_cast %199 : vector<8xf32> to vector<8x1xf32>
    %201 = arith.maximumf %198, %200 : vector<8x1xf32>
    %202 = vector.broadcast %201 : vector<8x1xf32> to vector<8x128xf32>
    %203 = arith.subf %196, %202 : vector<8x128xf32>
    %204 = math.exp %203 : vector<8x128xf32>
    %205 = vector.broadcast %201 : vector<8x1xf32> to vector<8x8xf32>
    %206 = arith.subf %192, %205 : vector<8x8xf32>
    %207 = math.exp %206 : vector<8x8xf32>
    %cst_102 = arith.constant dense<0.000000e+00> : vector<8xf32>
    %208 = vector.multi_reduction <add>, %204, %cst_102 [1] : vector<8x128xf32> to vector<8xf32>
    %209 = vector.shape_cast %208 : vector<8xf32> to vector<8x1xf32>
    %cst_103 = arith.constant dense<0.000000e+00> : vector<8xf32>
    %210 = vector.multi_reduction <add>, %207, %cst_103 [1] : vector<8x8xf32> to vector<8xf32>
    %211 = vector.shape_cast %210 : vector<8xf32> to vector<8x1xf32>
    %212 = arith.addf %209, %211 : vector<8x1xf32>
    %213 = tpu.reciprocal %212 : vector<8x1xf32> -> vector<8x1xf32>
    %214 = vector.broadcast %213 : vector<8x1xf32> to vector<8x128xf32>
    %215 = arith.mulf %204, %214 : vector<8x128xf32>
    %216 = vector.broadcast %213 : vector<8x1xf32> to vector<8x8xf32>
    %217 = arith.mulf %207, %216 : vector<8x8xf32>
    %218 = arith.truncf %215 : vector<8x128xf32> to vector<8x128xbf16>
    %c0_104 = arith.constant 0 : index
    %c24_105 = arith.constant 24 : index
    %219 = vector.load %arg31[%c0_104, %c24_105] : memref<128x32xbf16, #tpu.memory_space<vmem>>, vector<128x8xbf16>
    %cst_106 = arith.constant dense<0.000000e+00> : vector<8x8xf32>
    %220 = tpu.matmul %218, %219, %cst_106 {dimension_numbers = #tpu.dot_dimension_numbers<[1], [0], [0], [1], [0, 0, 1, 1], [], []>} : vector<8x128xbf16>, vector<128x8xbf16>, vector<8x8xf32> -> vector<8x8xf32>
    %221 = arith.truncf %217 : vector<8x8xf32> to vector<8x8xbf16>
    %c0_107 = arith.constant 0 : index
    %c24_108 = arith.constant 24 : index
    %222 = vector.load %arg29[%c0_107, %c24_108] : memref<8x32xbf16, #tpu.memory_space<vmem>>, vector<8x8xbf16>
    %cst_109 = arith.constant dense<0.000000e+00> : vector<8x8xf32>
    %223 = tpu.matmul %221, %222, %cst_109 {dimension_numbers = #tpu.dot_dimension_numbers<[1], [0], [0], [1], [0, 0, 1, 1], [], []>} : vector<8x8xbf16>, vector<8x8xbf16>, vector<8x8xf32> -> vector<8x8xf32>
    %224 = arith.addf %220, %223 : vector<8x8xf32>
    %c0_110 = arith.constant 0 : index
    %c24_111 = arith.constant 24 : index
    %225 = vector.load %arg32[%c0_110, %c24_111] : memref<8x32xf32, #tpu.memory_space<vmem>>, vector<8x8xf32>
    tpu.vector_store %arg32[%c0_110, %c24_111], %224 {strides = array<i32>} : memref<8x32xf32, #tpu.memory_space<vmem>>, vector<8x8xf32>,
    %c0_112 = arith.constant 0 : index
    %c0_113 = arith.constant 0 : index
    %226 = vector.load %arg32[%c0_112, %c0_113] : memref<8x32xf32, #tpu.memory_space<vmem>>, vector<8x32xf32>
    %227 = arith.truncf %226 : vector<8x32xf32> to vector<8x32xbf16>
    %c0_114 = arith.constant 0 : index
    %c0_115 = arith.constant 0 : index
    %228 = vector.load %arg18[%c0_114, %c0_115] : memref<32x32xbf16, #tpu.memory_space<vmem>>, vector<32x32xbf16>
    %cst_116 = arith.constant dense<0.000000e+00> : vector<8x32xf32>
    %229 = tpu.matmul %227, %228, %cst_116 {dimension_numbers = #tpu.dot_dimension_numbers<[1], [0], [0], [1], [0, 0, 1, 1], [], []>} : vector<8x32xbf16>, vector<32x32xbf16>, vector<8x32xf32> -> vector<8x32xf32>
    %c0_117 = arith.constant 0 : index
    %c0_118 = arith.constant 0 : index
    %230 = vector.load %arg19[%c0_117, %c0_118] : memref<1x32xf32, #tpu.memory_space<vmem>>, vector<1x32xf32>
    %231 = vector.broadcast %230 : vector<1x32xf32> to vector<8x32xf32>
    %232 = arith.addf %229, %231 : vector<8x32xf32>
    %233 = arith.addf %232, %4 : vector<8x32xf32>
    %cst_119 = arith.constant dense<0.000000e+00> : vector<8xf32>
    %234 = vector.multi_reduction <add>, %233, %cst_119 [1] : vector<8x32xf32> to vector<8xf32>
    %235 = vector.shape_cast %234 : vector<8xf32> to vector<8x1xf32>
    %cst_120 = arith.constant 3.200000e+01 : f32
    %236 = vector.broadcast %cst_120 : f32 to vector<8x1xf32>
    %237 = arith.divf %235, %236 : vector<8x1xf32>
    %238 = vector.broadcast %237 : vector<8x1xf32> to vector<8x32xf32>
    %239 = arith.subf %233, %238 : vector<8x32xf32>
    %240 = arith.mulf %239, %239 : vector<8x32xf32>
    %cst_121 = arith.constant dense<0.000000e+00> : vector<8xf32>
    %241 = vector.multi_reduction <add>, %240, %cst_121 [1] : vector<8x32xf32> to vector<8xf32>
    %242 = vector.shape_cast %241 : vector<8xf32> to vector<8x1xf32>
    %cst_122 = arith.constant 3.200000e+01 : f32
    %243 = vector.broadcast %cst_122 : f32 to vector<8x1xf32>
    %244 = arith.divf %242, %243 : vector<8x1xf32>
    %245 = vector.broadcast %237 : vector<8x1xf32> to vector<8x32xf32>
    %246 = arith.subf %233, %245 : vector<8x32xf32>
    %cst_123 = arith.constant 9.99999974E-6 : f32
    %247 = vector.broadcast %cst_123 : f32 to vector<8x1xf32>
    %248 = arith.addf %244, %247 : vector<8x1xf32>
    %249 = math.rsqrt %248 : vector<8x1xf32>
    %250 = vector.broadcast %249 : vector<8x1xf32> to vector<8x32xf32>
    %251 = arith.mulf %246, %250 : vector<8x32xf32>
    %c0_124 = arith.constant 0 : index
    %c0_125 = arith.constant 0 : index
    %252 = vector.load %arg20[%c0_124, %c0_125] : memref<1x32xf32, #tpu.memory_space<vmem>>, vector<1x32xf32>
    %253 = vector.broadcast %252 : vector<1x32xf32> to vector<8x32xf32>
    %254 = arith.mulf %251, %253 : vector<8x32xf32>
    %c0_126 = arith.constant 0 : index
    %c0_127 = arith.constant 0 : index
    %255 = vector.load %arg21[%c0_126, %c0_127] : memref<1x32xf32, #tpu.memory_space<vmem>>, vector<1x32xf32>
    %256 = vector.broadcast %255 : vector<1x32xf32> to vector<8x32xf32>
    %257 = arith.addf %254, %256 : vector<8x32xf32>
    %258 = arith.truncf %257 : vector<8x32xf32> to vector<8x32xbf16>
    %cst_128 = arith.constant 0.000000e+00 : f32
    %259 = vector.broadcast %cst_128 : f32 to vector<8x32xf32>
    %c0_129 = arith.constant 0 : index
    %c0_130 = arith.constant 0 : index
    %260 = vector.load %arg22[%c0_129, %c0_130] : memref<32x128xbf16, #tpu.memory_space<vmem>>, vector<32x128xbf16>
    %cst_131 = arith.constant dense<0.000000e+00> : vector<8x128xf32>
    %261 = tpu.matmul %258, %260, %cst_131 {dimension_numbers = #tpu.dot_dimension_numbers<[1], [0], [0], [1], [0, 0, 1, 1], [], []>} : vector<8x32xbf16>, vector<32x128xbf16>, vector<8x128xf32> -> vector<8x128xf32>
    %c0_132 = arith.constant 0 : index
    %c0_133 = arith.constant 0 : index
    %262 = vector.load %arg23[%c0_132, %c0_133] : memref<1x128xf32, #tpu.memory_space<vmem>>, vector<1x128xf32>
    %263 = vector.broadcast %262 : vector<1x128xf32> to vector<8x128xf32>
    %264 = arith.addf %261, %263 : vector<8x128xf32>
    %cst_134 = arith.constant 5.000000e-01 : f32
    %265 = vector.broadcast %cst_134 : f32 to vector<8x128xf32>
    %266 = arith.mulf %265, %264 : vector<8x128xf32>
    %cst_135 = arith.constant 4.471500e-02 : f32
    %267 = vector.broadcast %cst_135 : f32 to vector<8x128xf32>
    %268 = arith.mulf %267, %264 : vector<8x128xf32>
    %269 = arith.mulf %268, %264 : vector<8x128xf32>
    %270 = arith.mulf %269, %264 : vector<8x128xf32>
    %271 = arith.addf %264, %270 : vector<8x128xf32>
    %cst_136 = arith.constant 0.797884583 : f32
    %272 = vector.broadcast %cst_136 : f32 to vector<8x128xf32>
    %273 = arith.mulf %272, %271 : vector<8x128xf32>
    %274 = math.tanh %273 : vector<8x128xf32>
    %cst_137 = arith.constant 1.000000e+00 : f32
    %275 = vector.broadcast %cst_137 : f32 to vector<8x128xf32>
    %276 = arith.addf %275, %274 : vector<8x128xf32>
    %277 = arith.mulf %266, %276 : vector<8x128xf32>
    %278 = arith.truncf %277 : vector<8x128xf32> to vector<8x128xbf16>
    %c0_138 = arith.constant 0 : index
    %c0_139 = arith.constant 0 : index
    %279 = vector.load %arg24[%c0_138, %c0_139] : memref<128x32xbf16, #tpu.memory_space<vmem>>, vector<128x32xbf16>
    %cst_140 = arith.constant dense<0.000000e+00> : vector<8x32xf32>
    %280 = tpu.matmul %278, %279, %cst_140 {dimension_numbers = #tpu.dot_dimension_numbers<[1], [0], [0], [1], [0, 0, 1, 1], [], []>} : vector<8x128xbf16>, vector<128x32xbf16>, vector<8x32xf32> -> vector<8x32xf32>
    %281 = arith.addf %259, %280 : vector<8x32xf32>
    %c0_141 = arith.constant 0 : index
    %c0_142 = arith.constant 0 : index
    %282 = vector.load %arg25[%c0_141, %c0_142] : memref<1x32xf32, #tpu.memory_space<vmem>>, vector<1x32xf32>
    %283 = vector.broadcast %282 : vector<1x32xf32> to vector<8x32xf32>
    %284 = arith.addf %281, %283 : vector<8x32xf32>
    %285 = arith.addf %284, %233 : vector<8x32xf32>
    %c0_143 = arith.constant 0 : index
    %c0_144 = arith.constant 0 : index
    %c0_145 = arith.constant 0 : index
    %286 = vector.load %arg26[%c0_143, %c0_144, %c0_145] : memref<1x8x32xf32, #tpu.memory_space<vmem>>, vector<1x8x32xf32>
    %287 = vector.shape_cast %286 : vector<1x8x32xf32> to vector<8x32xf32>
    %288 = vector.shape_cast %285 : vector<8x32xf32> to vector<1x8x32xf32>
    tpu.vector_store %arg26[%c0_143, %c0_144, %c0_145], %288 {strides = array<i32>} : memref<1x8x32xf32, #tpu.memory_space<vmem>>, vector<1x8x32xf32>,
    return
  }
  func.func @transform_0(%arg0: i32, %arg1: i32) -> (i32, i32, i32) {
    %c0_i32 = arith.constant 0 : i32
    %c0_i32_0 = arith.constant 0 : i32
    return %arg0, %arg1, %c0_i32 : i32, i32, i32
  }
  func.func @transform_1(%arg0: i32, %arg1: i32) -> (i32, i32, i32) {
    %c0_i32 = arith.constant 0 : i32
    %c0_i32_0 = arith.constant 0 : i32
    %c0_i32_1 = arith.constant 0 : i32
    return %arg0, %c0_i32, %c0_i32_0 : i32, i32, i32
  }
  func.func @transform_2(%arg0: i32, %arg1: i32) -> (i32, i32, i32) {
    %c0_i32 = arith.constant 0 : i32
    %c0_i32_0 = arith.constant 0 : i32
    %c0_i32_1 = arith.constant 0 : i32
    return %arg0, %c0_i32, %c0_i32_0 : i32, i32, i32
  }
  func.func @transform_3(%arg0: i32, %arg1: i32) -> (i32, i32, i32) {
    %c0_i32 = arith.constant 0 : i32
    %c0_i32_0 = arith.constant 0 : i32
    %c0_i32_1 = arith.constant 0 : i32
    return %arg0, %c0_i32, %c0_i32_0 : i32, i32, i32
  }
  func.func @transform_4(%arg0: i32, %arg1: i32) -> (i32, i32) {
    %c0_i32 = arith.constant 0 : i32
    %c0_i32_0 = arith.constant 0 : i32
    %c0_i32_1 = arith.constant 0 : i32
    return %c0_i32, %c0_i32_0 : i32, i32
  }
  func.func @transform_5(%arg0: i32, %arg1: i32) -> (i32, i32) {
    %c0_i32 = arith.constant 0 : i32
    %c0_i32_0 = arith.constant 0 : i32
    %c0_i32_1 = arith.constant 0 : i32
    return %c0_i32, %c0_i32_0 : i32, i32
  }
  func.func @transform_6(%arg0: i32, %arg1: i32) -> (i32, i32) {
    %c0_i32 = arith.constant 0 : i32
    %c0_i32_0 = arith.constant 0 : i32
    %c0_i32_1 = arith.constant 0 : i32
    return %c0_i32, %c0_i32_0 : i32, i32
  }
  func.func @transform_7(%arg0: i32, %arg1: i32) -> (i32, i32) {
    %c0_i32 = arith.constant 0 : i32
    %c0_i32_0 = arith.constant 0 : i32
    %c0_i32_1 = arith.constant 0 : i32
    return %c0_i32, %c0_i32_0 : i32, i32
  }
  func.func @transform_8(%arg0: i32, %arg1: i32) -> (i32, i32) {
    %c0_i32 = arith.constant 0 : i32
    %c0_i32_0 = arith.constant 0 : i32
    %c0_i32_1 = arith.constant 0 : i32
    return %c0_i32, %c0_i32_0 : i32, i32
  }
  func.func @transform_9(%arg0: i32, %arg1: i32) -> (i32, i32) {
    %c0_i32 = arith.constant 0 : i32
    %c0_i32_0 = arith.constant 0 : i32
    %c0_i32_1 = arith.constant 0 : i32
    return %c0_i32, %c0_i32_0 : i32, i32
  }
  func.func @transform_10(%arg0: i32, %arg1: i32) -> (i32, i32) {
    %c0_i32 = arith.constant 0 : i32
    %c0_i32_0 = arith.constant 0 : i32
    %c0_i32_1 = arith.constant 0 : i32
    return %c0_i32, %c0_i32_0 : i32, i32
  }
  func.func @transform_11(%arg0: i32, %arg1: i32) -> (i32, i32) {
    %c0_i32 = arith.constant 0 : i32
    %c0_i32_0 = arith.constant 0 : i32
    %c0_i32_1 = arith.constant 0 : i32
    return %c0_i32, %c0_i32_0 : i32, i32
  }
  func.func @transform_12(%arg0: i32, %arg1: i32) -> (i32, i32) {
    %c0_i32 = arith.constant 0 : i32
    %c0_i32_0 = arith.constant 0 : i32
    %c0_i32_1 = arith.constant 0 : i32
    return %c0_i32, %c0_i32_0 : i32, i32
  }
  func.func @transform_13(%arg0: i32, %arg1: i32) -> (i32, i32) {
    %c0_i32 = arith.constant 0 : i32
    %c0_i32_0 = arith.constant 0 : i32
    %c0_i32_1 = arith.constant 0 : i32
    return %c0_i32, %c0_i32_0 : i32, i32
  }
  func.func @transform_14(%arg0: i32, %arg1: i32) -> (i32, i32) {
    %c0_i32 = arith.constant 0 : i32
    %c0_i32_0 = arith.constant 0 : i32
    %c0_i32_1 = arith.constant 0 : i32
    return %c0_i32, %c0_i32_0 : i32, i32
  }
  func.func @transform_15(%arg0: i32, %arg1: i32) -> (i32, i32) {
    %c0_i32 = arith.constant 0 : i32
    %c0_i32_0 = arith.constant 0 : i32
    %c0_i32_1 = arith.constant 0 : i32
    return %c0_i32, %c0_i32_0 : i32, i32
  }
  func.func @transform_16(%arg0: i32, %arg1: i32) -> (i32, i32) {
    %c0_i32 = arith.constant 0 : i32
    %c0_i32_0 = arith.constant 0 : i32
    %c0_i32_1 = arith.constant 0 : i32
    return %c0_i32, %c0_i32_0 : i32, i32
  }
  func.func @transform_17(%arg0: i32, %arg1: i32) -> (i32, i32) {
    %c0_i32 = arith.constant 0 : i32
    %c0_i32_0 = arith.constant 0 : i32
    %c0_i32_1 = arith.constant 0 : i32
    return %c0_i32, %c0_i32_0 : i32, i32
  }
  func.func @transform_18(%arg0: i32, %arg1: i32) -> (i32, i32) {
    %c0_i32 = arith.constant 0 : i32
    %c0_i32_0 = arith.constant 0 : i32
    %c0_i32_1 = arith.constant 0 : i32
    return %c0_i32, %c0_i32_0 : i32, i32
  }
  func.func @transform_19(%arg0: i32, %arg1: i32) -> (i32, i32) {
    %c0_i32 = arith.constant 0 : i32
    %c0_i32_0 = arith.constant 0 : i32
    %c0_i32_1 = arith.constant 0 : i32
    return %c0_i32, %c0_i32_0 : i32, i32
  }
  func.func @transform_20(%arg0: i32, %arg1: i32) -> (i32, i32) {
    %c0_i32 = arith.constant 0 : i32
    %c0_i32_0 = arith.constant 0 : i32
    %c0_i32_1 = arith.constant 0 : i32
    return %c0_i32, %c0_i32_0 : i32, i32
  }
  func.func @transform_21(%arg0: i32, %arg1: i32) -> (i32, i32) {
    %c0_i32 = arith.constant 0 : i32
    %c0_i32_0 = arith.constant 0 : i32
    %c0_i32_1 = arith.constant 0 : i32
    return %c0_i32, %c0_i32_0 : i32, i32
  }
  func.func @transform_22(%arg0: i32, %arg1: i32) -> (i32, i32) {
    %c0_i32 = arith.constant 0 : i32
    %c0_i32_0 = arith.constant 0 : i32
    %c0_i32_1 = arith.constant 0 : i32
    return %c0_i32, %c0_i32_0 : i32, i32
  }
  func.func @transform_23(%arg0: i32, %arg1: i32) -> (i32, i32) {
    %c0_i32 = arith.constant 0 : i32
    %c0_i32_0 = arith.constant 0 : i32
    %c0_i32_1 = arith.constant 0 : i32
    return %c0_i32, %c0_i32_0 : i32, i32
  }
  func.func @transform_24(%arg0: i32, %arg1: i32) -> (i32, i32, i32) {
    %c0_i32 = arith.constant 0 : i32
    %c0_i32_0 = arith.constant 0 : i32
    return %arg0, %arg1, %c0_i32 : i32, i32, i32
  }
  func.func @transform_25(%arg0: i32, %arg1: i32) -> (i32, i32, i32) {
    %c0_i32 = arith.constant 0 : i32
    %c0_i32_0 = arith.constant 0 : i32
    return %arg0, %arg1, %c0_i32 : i32, i32, i32
  }
}

</mosaic_0001>

<llo_original>
// kernel: tpu_custom_call.1
$region0: #{tpu_custom_call.1}
  #allocation0 [shape = 'u32[]', space=smem, size = 0x4, offset = 0x4, fixed_abs, tag = 'smem constant byte address 0x4 - core index']
  #allocation1 [shape = 'u32[144,128]{1,0:T(1,128)}', space=vmem, size = 0x12000, scoped, tag = 'internal scratch']
  #allocation2 [shape = 'bf16[8,32]{1,0:T(8,128)(2,1)}', space=vmem, size = 0x800, scoped, tag = 'scratch operand']
  #allocation3 [shape = 'bf16[8,32]{1,0:T(8,128)(2,1)}', space=vmem, size = 0x800, scoped, tag = 'scratch operand']
  #allocation4 [shape = 'bf16[128,32]{1,0:T(8,128)(2,1)}', space=vmem, size = 0x8000, scoped, tag = 'scratch operand']
  #allocation5 [shape = 'bf16[128,32]{1,0:T(8,128)(2,1)}', space=vmem, size = 0x8000, scoped, tag = 'scratch operand']
  #allocation6 [shape = 'f32[8,32]{1,0:T(8,128)}', space=vmem, size = 0x1000, scoped, tag = 'scratch operand']
  %s0 = inlined_call_operand.vmem [shape: f32[2,8,32], index: 0, kind: input, shape index: {}]
  %s1 = inlined_call_operand.vmem [shape: bf16[2,128,32], index: 1, kind: input, shape index: {}]
  %s2 = inlined_call_operand.vmem [shape: s32[2,1,8], index: 2, kind: input, shape index: {}]
  %s3 = inlined_call_operand.vmem [shape: s32[2,1,128], index: 3, kind: input, shape index: {}]
  %s4 = inlined_call_operand.vmem [shape: f32[1,32], index: 4, kind: input, shape index: {}]
  %s5 = inlined_call_operand.vmem [shape: f32[1,32], index: 5, kind: input, shape index: {}]
  %s6 = inlined_call_operand.vmem [shape: bf16[32,32], index: 6, kind: input, shape index: {}]
  %s7 = inlined_call_operand.vmem [shape: f32[1,32], index: 7, kind: input, shape index: {}]
  %s8 = inlined_call_operand.vmem [shape: bf16[32,32], index: 8, kind: input, shape index: {}]
  %s9 = inlined_call_operand.vmem [shape: f32[1,32], index: 9, kind: input, shape index: {}]
  %s10 = inlined_call_operand.vmem [shape: bf16[32,32], index: 10, kind: input, shape index: {}]
  %s11 = inlined_call_operand.vmem [shape: f32[1,32], index: 11, kind: input, shape index: {}]
  %s12 = inlined_call_operand.vmem [shape: bf16[32,32], index: 12, kind: input, shape index: {}]
  %s13 = inlined_call_operand.vmem [shape: f32[1,32], index: 13, kind: input, shape index: {}]
  %s14 = inlined_call_operand.vmem [shape: bf16[32,32], index: 14, kind: input, shape index: {}]
  %s15 = inlined_call_operand.vmem [shape: f32[1,32], index: 15, kind: input, shape index: {}]
  %s16 = inlined_call_operand.vmem [shape: bf16[32,32], index: 16, kind: input, shape index: {}]
  %s17 = inlined_call_operand.vmem [shape: f32[1,32], index: 17, kind: input, shape index: {}]
  %s18 = inlined_call_operand.vmem [shape: f32[1,32], index: 18, kind: input, shape index: {}]
  %s19 = inlined_call_operand.vmem [shape: f32[1,32], index: 19, kind: input, shape index: {}]
  %s20 = inlined_call_operand.vmem [shape: bf16[32,128], index: 20, kind: input, shape index: {}]
  %s21 = inlined_call_operand.vmem [shape: f32[1,128], index: 21, kind: input, shape index: {}]
  %s22 = inlined_call_operand.vmem [shape: bf16[128,32], index: 22, kind: input, shape index: {}]
  %s23 = inlined_call_operand.vmem [shape: f32[1,32], index: 23, kind: input, shape index: {}]
  %s24 = inlined_call_operand.hbm [shape: f32[2,8,32], index: 24, kind: output, shape index: {0}]
  %s25 = inlined_call_operand.hbm [shape: f32[2,8,128], index: 25, kind: output, shape index: {1}]
  %26 = xla_tuple %s24, %s25
  %s27 = sld [smem:[#allocation0]]
  $region141: #{tpu_custom_call.1} parent=0
    _
  %s29 = ssub.s32 1, %s27
  %s30 = scalar_select 0, %s29, %s27
  $region1: #{tpu_custom_call.1} parent=0
    #allocation7 [shape = 'u8[8192]{0}', space=vmem, size = 0x2000, scoped, tag = 'output window, operand 0']
    #allocation8 [shape = 's32[2]{0}', space=sflag, size = 0x8, scoped, tag = 'scoped memory for tpu_custom_call.1']
    #allocation9 [shape = 'u8[8192]{0}', space=vmem, size = 0x2000, scoped, tag = 'output window, operand 1']
    #allocation10 [shape = 's32[2]{0}', space=sflag, size = 0x8, scoped, tag = 'scoped memory for tpu_custom_call.1']
    %31 = vsyncpa [#allocation8], 0
    %s32 = scalar_lea.sflag [#allocation8], 1
    %33 = vsyncpa %s32, 0
    %34 = vsyncpa [#allocation10], 0
    %s35 = scalar_lea.sflag [#allocation10], 1
    %36 = vsyncpa %s35, 0
    loop: start=0, step=1, limit=4
    $region2: #{tpu_custom_call.1} parent=1 // loop_pre_header
      _
    $region3: #{tpu_custom_call.1} parent=1 // loop_header
      %s38 = sphi 0, %s42
      %p39 = scmp.ge.s32.totalorder %s38, 4
      %s45 = sphi 0, %s57
      %s46 = sphi 0, %s53
      %s47 = sphi 0, %s45
      %s48 = sphi 0, %s46
      %s49 = sphi 0, %s47
      %s50 = sphi 0, %s48
      %s62 = sphi 0, %s64
      %s65 = sphi 0, %s62
      %s66 = sphi 0, %s65
      %s82 = sphi 0, %s66
      %s88 = sphi 0, %s90
      %s91 = sphi 0, %s88
      %s92 = sphi 0, %s91
      %s108 = sphi 0, %s92
      %s114 = sphi 0, %s116
      %s117 = sphi 0, %s114
      %s118 = sphi 0, %s117
      %s134 = sphi 0, %s118
      %s140 = sphi 0, %s142
      %s143 = sphi 0, %s140
      %s144 = sphi 0, %s143
      %s160 = sphi 0, %s144
      %s164 = sphi 0, %s164
      %s166 = sphi 0, %s164
      %s167 = sphi 0, %s166
      %s181 = sphi 0, %s167
      %s185 = sphi 0, %s185
      %s187 = sphi 0, %s185
      %s188 = sphi 0, %s187
      %s202 = sphi 0, %s188
      %s206 = sphi 0, %s206
      %s208 = sphi 0, %s206
      %s209 = sphi 0, %s208
      %s223 = sphi 0, %s209
      %s227 = sphi 0, %s227
      %s229 = sphi 0, %s227
      %s230 = sphi 0, %s229
      %s244 = sphi 0, %s230
      %s248 = sphi 0, %s248
      %s250 = sphi 0, %s248
      %s251 = sphi 0, %s250
      %s265 = sphi 0, %s251
      %s269 = sphi 0, %s269
      %s271 = sphi 0, %s269
      %s272 = sphi 0, %s271
      %s286 = sphi 0, %s272
      %s290 = sphi 0, %s290
      %s292 = sphi 0, %s290
      %s293 = sphi 0, %s292
      %s307 = sphi 0, %s293
      %s311 = sphi 0, %s311
      %s313 = sphi 0, %s311
      %s314 = sphi 0, %s313
      %s328 = sphi 0, %s314
      %s332 = sphi 0, %s332
      %s334 = sphi 0, %s332
      %s335 = sphi 0, %s334
      %s349 = sphi 0, %s335
      %s353 = sphi 0, %s353
      %s355 = sphi 0, %s353
      %s356 = sphi 0, %s355
      %s370 = sphi 0, %s356
      %s374 = sphi 0, %s374
      %s376 = sphi 0, %s374
      %s377 = sphi 0, %s376
      %s391 = sphi 0, %s377
      %s395 = sphi 0, %s395
      %s397 = sphi 0, %s395
      %s398 = sphi 0, %s397
      %s412 = sphi 0, %s398
      %s416 = sphi 0, %s416
      %s418 = sphi 0, %s416
      %s419 = sphi 0, %s418
      %s433 = sphi 0, %s419
      %s437 = sphi 0, %s437
      %s439 = sphi 0, %s437
      %s440 = sphi 0, %s439
      %s454 = sphi 0, %s440
      %s458 = sphi 0, %s458
      %s460 = sphi 0, %s458
      %s461 = sphi 0, %s460
      %s475 = sphi 0, %s461
      %s479 = sphi 0, %s479
      %s481 = sphi 0, %s479
      %s482 = sphi 0, %s481
      %s496 = sphi 0, %s482
      %s500 = sphi 0, %s500
      %s502 = sphi 0, %s500
      %s503 = sphi 0, %s502
      %s517 = sphi 0, %s503
      %s521 = sphi 0, %s521
      %s523 = sphi 0, %s521
      %s524 = sphi 0, %s523
      %s538 = sphi 0, %s524
      %s542 = sphi 0, %s542
      %s544 = sphi 0, %s542
      %s545 = sphi 0, %s544
      %s559 = sphi 0, %s545
      %s563 = sphi 0, %s563
      %s565 = sphi 0, %s563
      %s566 = sphi 0, %s565
      %s580 = sphi 0, %s566
      %s588 = sphi 0, %s590
      %s591 = sphi 0, %s588
      %s592 = sphi 0, %s591
      %s608 = sphi 0, %s592
      %s616 = sphi 0, %s618
      %s619 = sphi 0, %s616
      %s620 = sphi 0, %s619
      %s636 = sphi 0, %s620
    $region4: #{tpu_custom_call.1} parent=1 // loop_header_branch
      %41 = sbr.rel (%p39) target = $region8
    $region5: #{tpu_custom_call.1} parent=1 // loop_body
      %s43 = ssub.s32 %s38, 1
      %s44 = ssub.s32 %s38, 2
      %s51 = sadd.s32 1, %s46
      %p52 = scmp.ge.s32.totalorder %s51, 1
      %s53 = scalar_select %p52, 0, %s51
      %s54 = sadd.s32 1, %s45
      %s55 = scalar_select %p52, %s54, %s45
      %p56 = scmp.ge.s32.totalorder %s55, 2
      %s57 = scalar_select %p56, 0, %s55
      %s58 = ssub.s32 %s45, %s57
      %s59 = ssub.s32 %s46, %s53
      %s60 = sor.u32 %s58, %s59
      %p61 = scmp.eq.s32.totalorder %s60, 0
      %s63 = sadd.s32 %s62, 1
      %s64 = scalar_select %p61, %s62, %s63
      %p67 = pneg %p61
      %p68 = scmp.eq.s32.totalorder %s38, 1
      %p69 = por %p67, %p68
      %p70 = scmp.ne.s32.totalorder %s62, %s65
      %p71 = scmp.eq.s32.totalorder %s38, 0
      %p72 = por %p70, %p71
      %p73 = scmp.ne.s32.totalorder %s62, %s65
      %p74 = scmp.eq.s32.totalorder %s43, 1
      %p75 = por %p73, %p74
      %p76 = scmp.ne.s32.totalorder %s65, %s66
      %p77 = scmp.eq.s32.totalorder %s43, 0
      %p78 = por %p76, %p77
      %p79 = scmp.ne.s32.totalorder %s65, %s66
      %p80 = scmp.eq.s32.totalorder %s44, 1
      %p81 = por %p79, %p80
      %p83 = scmp.ne.s32.totalorder %s66, %s82
      %p84 = scmp.eq.s32.totalorder %s44, 0
      %p85 = por %p83, %p84
      %s86 = ssub.s32 %s45, %s57
      %p87 = scmp.eq.s32.totalorder %s86, 0
      %s89 = sadd.s32 %s88, 1
      %s90 = scalar_select %p87, %s88, %s89
      %p93 = pneg %p87
      %p94 = scmp.eq.s32.totalorder %s38, 1
      %p95 = por %p93, %p94
      %p96 = scmp.ne.s32.totalorder %s88, %s91
      %p97 = scmp.eq.s32.totalorder %s38, 0
      %p98 = por %p96, %p97
      %p99 = scmp.ne.s32.totalorder %s88, %s91
      %p100 = scmp.eq.s32.totalorder %s43, 1
      %p101 = por %p99, %p100
      %p102 = scmp.ne.s32.totalorder %s91, %s92
      %p103 = scmp.eq.s32.totalorder %s43, 0
      %p104 = por %p102, %p103
      %p105 = scmp.ne.s32.totalorder %s91, %s92
      %p106 = scmp.eq.s32.totalorder %s44, 1
      %p107 = por %p105, %p106
      %p109 = scmp.ne.s32.totalorder %s92, %s108
      %p110 = scmp.eq.s32.totalorder %s44, 0
      %p111 = por %p109, %p110
      %s112 = ssub.s32 %s45, %s57
      %p113 = scmp.eq.s32.totalorder %s112, 0
      %s115 = sadd.s32 %s114, 1
      %s116 = scalar_select %p113, %s114, %s115
      %p119 = pneg %p113
      %p120 = scmp.eq.s32.totalorder %s38, 1
      %p121 = por %p119, %p120
      %p122 = scmp.ne.s32.totalorder %s114, %s117
      %p123 = scmp.eq.s32.totalorder %s38, 0
      %p124 = por %p122, %p123
      %p125 = scmp.ne.s32.totalorder %s114, %s117
      %p126 = scmp.eq.s32.totalorder %s43, 1
      %p127 = por %p125, %p126
      %p128 = scmp.ne.s32.totalorder %s117, %s118
      %p129 = scmp.eq.s32.totalorder %s43, 0
      %p130 = por %p128, %p129
      %p131 = scmp.ne.s32.totalorder %s117, %s118
      %p132 = scmp.eq.s32.totalorder %s44, 1
      %p133 = por %p131, %p132
      %p135 = scmp.ne.s32.totalorder %s118, %s134
      %p136 = scmp.eq.s32.totalorder %s44, 0
      %p137 = por %p135, %p136
      %s138 = ssub.s32 %s45, %s57
      %p139 = scmp.eq.s32.totalorder %s138, 0
      %s141 = sadd.s32 %s140, 1
      %s142 = scalar_select %p139, %s140, %s141
      %p145 = pneg %p139
      %p146 = scmp.eq.s32.totalorder %s38, 1
      %p147 = por %p145, %p146
      %p148 = scmp.ne.s32.totalorder %s140, %s143
      %p149 = scmp.eq.s32.totalorder %s38, 0
      %p150 = por %p148, %p149
      %p151 = scmp.ne.s32.totalorder %s140, %s143
      %p152 = scmp.eq.s32.totalorder %s43, 1
      %p153 = por %p151, %p152
      %p154 = scmp.ne.s32.totalorder %s143, %s144
      %p155 = scmp.eq.s32.totalorder %s43, 0
      %p156 = por %p154, %p155
      %p157 = scmp.ne.s32.totalorder %s143, %s144
      %p158 = scmp.eq.s32.totalorder %s44, 1
      %p159 = por %p157, %p158
      %p161 = scmp.ne.s32.totalorder %s144, %s160
      %p162 = scmp.eq.s32.totalorder %s44, 0
      %p163 = por %p161, %p162
      %s165 = sadd.s32 %s164, 1
      %p168 = scmp.eq.s32.totalorder %s38, 1
      %p169 = scmp.ne.s32.totalorder %s164, %s166
      %p170 = scmp.eq.s32.totalorder %s38, 0
      %p171 = por %p169, %p170
      %p172 = scmp.ne.s32.totalorder %s164, %s166
      %p173 = scmp.eq.s32.totalorder %s43, 1
      %p174 = por %p172, %p173
      %p175 = scmp.ne.s32.totalorder %s166, %s167
      %p176 = scmp.eq.s32.totalorder %s43, 0
      %p177 = por %p175, %p176
      %p178 = scmp.ne.s32.totalorder %s166, %s167
      %p179 = scmp.eq.s32.totalorder %s44, 1
      %p180 = por %p178, %p179
      %p182 = scmp.ne.s32.totalorder %s167, %s181
      %p183 = scmp.eq.s32.totalorder %s44, 0
      %p184 = por %p182, %p183
      %s186 = sadd.s32 %s185, 1
      %p189 = scmp.eq.s32.totalorder %s38, 1
      %p190 = scmp.ne.s32.totalorder %s185, %s187
      %p191 = scmp.eq.s32.totalorder %s38, 0
      %p192 = por %p190, %p191
      %p193 = scmp.ne.s32.totalorder %s185, %s187
      %p194 = scmp.eq.s32.totalorder %s43, 1
      %p195 = por %p193, %p194
      %p196 = scmp.ne.s32.totalorder %s187, %s188
      %p197 = scmp.eq.s32.totalorder %s43, 0
      %p198 = por %p196, %p197
      %p199 = scmp.ne.s32.totalorder %s187, %s188
      %p200 = scmp.eq.s32.totalorder %s44, 1
      %p201 = por %p199, %p200
      %p203 = scmp.ne.s32.totalorder %s188, %s202
      %p204 = scmp.eq.s32.totalorder %s44, 0
      %p205 = por %p203, %p204
      %s207 = sadd.s32 %s206, 1
      %p210 = scmp.eq.s32.totalorder %s38, 1
      %p211 = scmp.ne.s32.totalorder %s206, %s208
      %p212 = scmp.eq.s32.totalorder %s38, 0
      %p213 = por %p211, %p212
      %p214 = scmp.ne.s32.totalorder %s206, %s208
      %p215 = scmp.eq.s32.totalorder %s43, 1
      %p216 = por %p214, %p215
      %p217 = scmp.ne.s32.totalorder %s208, %s209
      %p218 = scmp.eq.s32.totalorder %s43, 0
      %p219 = por %p217, %p218
      %p220 = scmp.ne.s32.totalorder %s208, %s209
      %p221 = scmp.eq.s32.totalorder %s44, 1
      %p222 = por %p220, %p221
      %p224 = scmp.ne.s32.totalorder %s209, %s223
      %p225 = scmp.eq.s32.totalorder %s44, 0
      %p226 = por %p224, %p225
      %s228 = sadd.s32 %s227, 1
      %p231 = scmp.eq.s32.totalorder %s38, 1
      %p232 = scmp.ne.s32.totalorder %s227, %s229
      %p233 = scmp.eq.s32.totalorder %s38, 0
      %p234 = por %p232, %p233
      %p235 = scmp.ne.s32.totalorder %s227, %s229
      %p236 = scmp.eq.s32.totalorder %s43, 1
      %p237 = por %p235, %p236
      %p238 = scmp.ne.s32.totalorder %s229, %s230
      %p239 = scmp.eq.s32.totalorder %s43, 0
      %p240 = por %p238, %p239
      %p241 = scmp.ne.s32.totalorder %s229, %s230
      %p242 = scmp.eq.s32.totalorder %s44, 1
      %p243 = por %p241, %p242
      %p245 = scmp.ne.s32.totalorder %s230, %s244
      %p246 = scmp.eq.s32.totalorder %s44, 0
      %p247 = por %p245, %p246
      %s249 = sadd.s32 %s248, 1
      %p252 = scmp.eq.s32.totalorder %s38, 1
      %p253 = scmp.ne.s32.totalorder %s248, %s250
      %p254 = scmp.eq.s32.totalorder %s38, 0
      %p255 = por %p253, %p254
      %p256 = scmp.ne.s32.totalorder %s248, %s250
      %p257 = scmp.eq.s32.totalorder %s43, 1
      %p258 = por %p256, %p257
      %p259 = scmp.ne.s32.totalorder %s250, %s251
      %p260 = scmp.eq.s32.totalorder %s43, 0
      %p261 = por %p259, %p260
      %p262 = scmp.ne.s32.totalorder %s250, %s251
      %p263 = scmp.eq.s32.totalorder %s44, 1
      %p264 = por %p262, %p263
      %p266 = scmp.ne.s32.totalorder %s251, %s265
      %p267 = scmp.eq.s32.totalorder %s44, 0
      %p268 = por %p266, %p267
      %s270 = sadd.s32 %s269, 1
      %p273 = scmp.eq.s32.totalorder %s38, 1
      %p274 = scmp.ne.s32.totalorder %s269, %s271
      %p275 = scmp.eq.s32.totalorder %s38, 0
      %p276 = por %p274, %p275
      %p277 = scmp.ne.s32.totalorder %s269, %s271
      %p278 = scmp.eq.s32.totalorder %s43, 1
      %p279 = por %p277, %p278
      %p280 = scmp.ne.s32.totalorder %s271, %s272
      %p281 = scmp.eq.s32.totalorder %s43, 0
      %p282 = por %p280, %p281
      %p283 = scmp.ne.s32.totalorder %s271, %s272
      %p284 = scmp.eq.s32.totalorder %s44, 1
      %p285 = por %p283, %p284
      %p287 = scmp.ne.s32.totalorder %s272, %s286
      %p288 = scmp.eq.s32.totalorder %s44, 0
      %p289 = por %p287, %p288
      %s291 = sadd.s32 %s290, 1
      %p294 = scmp.eq.s32.totalorder %s38, 1
      %p295 = scmp.ne.s32.totalorder %s290, %s292
      %p296 = scmp.eq.s32.totalorder %s38, 0
      %p297 = por %p295, %p296
      %p298 = scmp.ne.s32.totalorder %s290, %s292
      %p299 = scmp.eq.s32.totalorder %s43, 1
      %p300 = por %p298, %p299
      %p301 = scmp.ne.s32.totalorder %s292, %s293
      %p302 = scmp.eq.s32.totalorder %s43, 0
      %p303 = por %p301, %p302
      %p304 = scmp.ne.s32.totalorder %s292, %s293
      %p305 = scmp.eq.s32.totalorder %s44, 1
      %p306 = por %p304, %p305
      %p308 = scmp.ne.s32.totalorder %s293, %s307
      %p309 = scmp.eq.s32.totalorder %s44, 0
      %p310 = por %p308, %p309
      %s312 = sadd.s32 %s311, 1
      %p315 = scmp.eq.s32.totalorder %s38, 1
      %p316 = scmp.ne.s32.totalorder %s311, %s313
      %p317 = scmp.eq.s32.totalorder %s38, 0
      %p318 = por %p316, %p317
      %p319 = scmp.ne.s32.totalorder %s311, %s313
      %p320 = scmp.eq.s32.totalorder %s43, 1
      %p321 = por %p319, %p320
      %p322 = scmp.ne.s32.totalorder %s313, %s314
      %p323 = scmp.eq.s32.totalorder %s43, 0
      %p324 = por %p322, %p323
      %p325 = scmp.ne.s32.totalorder %s313, %s314
      %p326 = scmp.eq.s32.totalorder %s44, 1
      %p327 = por %p325, %p326
      %p329 = scmp.ne.s32.totalorder %s314, %s328
      %p330 = scmp.eq.s32.totalorder %s44, 0
      %p331 = por %p329, %p330
      %s333 = sadd.s32 %s332, 1
      %p336 = scmp.eq.s32.totalorder %s38, 1
      %p337 = scmp.ne.s32.totalorder %s332, %s334
      %p338 = scmp.eq.s32.totalorder %s38, 0
      %p339 = por %p337, %p338
      %p340 = scmp.ne.s32.totalorder %s332, %s334
      %p341 = scmp.eq.s32.totalorder %s43, 1
      %p342 = por %p340, %p341
      %p343 = scmp.ne.s32.totalorder %s334, %s335
      %p344 = scmp.eq.s32.totalorder %s43, 0
      %p345 = por %p343, %p344
      %p346 = scmp.ne.s32.totalorder %s334, %s335
      %p347 = scmp.eq.s32.totalorder %s44, 1
      %p348 = por %p346, %p347
      %p350 = scmp.ne.s32.totalorder %s335, %s349
      %p351 = scmp.eq.s32.totalorder %s44, 0
      %p352 = por %p350, %p351
      %s354 = sadd.s32 %s353, 1
      %p357 = scmp.eq.s32.totalorder %s38, 1
      %p358 = scmp.ne.s32.totalorder %s353, %s355
      %p359 = scmp.eq.s32.totalorder %s38, 0
      %p360 = por %p358, %p359
      %p361 = scmp.ne.s32.totalorder %s353, %s355
      %p362 = scmp.eq.s32.totalorder %s43, 1
      %p363 = por %p361, %p362
      %p364 = scmp.ne.s32.totalorder %s355, %s356
      %p365 = scmp.eq.s32.totalorder %s43, 0
      %p366 = por %p364, %p365
      %p367 = scmp.ne.s32.totalorder %s355, %s356
      %p368 = scmp.eq.s32.totalorder %s44, 1
      %p369 = por %p367, %p368
      %p371 = scmp.ne.s32.totalorder %s356, %s370
      %p372 = scmp.eq.s32.totalorder %s44, 0
      %p373 = por %p371, %p372
      %s375 = sadd.s32 %s374, 1
      %p378 = scmp.eq.s32.totalorder %s38, 1
      %p379 = scmp.ne.s32.totalorder %s374, %s376
      %p380 = scmp.eq.s32.totalorder %s38, 0
      %p381 = por %p379, %p380
      %p382 = scmp.ne.s32.totalorder %s374, %s376
      %p383 = scmp.eq.s32.totalorder %s43, 1
      %p384 = por %p382, %p383
      %p385 = scmp.ne.s32.totalorder %s376, %s377
      %p386 = scmp.eq.s32.totalorder %s43, 0
      %p387 = por %p385, %p386
      %p388 = scmp.ne.s32.totalorder %s376, %s377
      %p389 = scmp.eq.s32.totalorder %s44, 1
      %p390 = por %p388, %p389
      %p392 = scmp.ne.s32.totalorder %s377, %s391
      %p393 = scmp.eq.s32.totalorder %s44, 0
      %p394 = por %p392, %p393
      %s396 = sadd.s32 %s395, 1
      %p399 = scmp.eq.s32.totalorder %s38, 1
      %p400 = scmp.ne.s32.totalorder %s395, %s397
      %p401 = scmp.eq.s32.totalorder %s38, 0
      %p402 = por %p400, %p401
      %p403 = scmp.ne.s32.totalorder %s395, %s397
      %p404 = scmp.eq.s32.totalorder %s43, 1
      %p405 = por %p403, %p404
      %p406 = scmp.ne.s32.totalorder %s397, %s398
      %p407 = scmp.eq.s32.totalorder %s43, 0
      %p408 = por %p406, %p407
      %p409 = scmp.ne.s32.totalorder %s397, %s398
      %p410 = scmp.eq.s32.totalorder %s44, 1
      %p411 = por %p409, %p410
      %p413 = scmp.ne.s32.totalorder %s398, %s412
      %p414 = scmp.eq.s32.totalorder %s44, 0
      %p415 = por %p413, %p414
      %s417 = sadd.s32 %s416, 1
      %p420 = scmp.eq.s32.totalorder %s38, 1
      %p421 = scmp.ne.s32.totalorder %s416, %s418
      %p422 = scmp.eq.s32.totalorder %s38, 0
      %p423 = por %p421, %p422
      %p424 = scmp.ne.s32.totalorder %s416, %s418
      %p425 = scmp.eq.s32.totalorder %s43, 1
      %p426 = por %p424, %p425
      %p427 = scmp.ne.s32.totalorder %s418, %s419
      %p428 = scmp.eq.s32.totalorder %s43, 0
      %p429 = por %p427, %p428
      %p430 = scmp.ne.s32.totalorder %s418, %s419
      %p431 = scmp.eq.s32.totalorder %s44, 1
      %p432 = por %p430, %p431
      %p434 = scmp.ne.s32.totalorder %s419, %s433
      %p435 = scmp.eq.s32.totalorder %s44, 0
      %p436 = por %p434, %p435
      %s438 = sadd.s32 %s437, 1
      %p441 = scmp.eq.s32.totalorder %s38, 1
      %p442 = scmp.ne.s32.totalorder %s437, %s439
      %p443 = scmp.eq.s32.totalorder %s38, 0
      %p444 = por %p442, %p443
      %p445 = scmp.ne.s32.totalorder %s437, %s439
      %p446 = scmp.eq.s32.totalorder %s43, 1
      %p447 = por %p445, %p446
      %p448 = scmp.ne.s32.totalorder %s439, %s440
      %p449 = scmp.eq.s32.totalorder %s43, 0
      %p450 = por %p448, %p449
      %p451 = scmp.ne.s32.totalorder %s439, %s440
      %p452 = scmp.eq.s32.totalorder %s44, 1
      %p453 = por %p451, %p452
      %p455 = scmp.ne.s32.totalorder %s440, %s454
      %p456 = scmp.eq.s32.totalorder %s44, 0
      %p457 = por %p455, %p456
      %s459 = sadd.s32 %s458, 1
      %p462 = scmp.eq.s32.totalorder %s38, 1
      %p463 = scmp.ne.s32.totalorder %s458, %s460
      %p464 = scmp.eq.s32.totalorder %s38, 0
      %p465 = por %p463, %p464
      %p466 = scmp.ne.s32.totalorder %s458, %s460
      %p467 = scmp.eq.s32.totalorder %s43, 1
      %p468 = por %p466, %p467
      %p469 = scmp.ne.s32.totalorder %s460, %s461
      %p470 = scmp.eq.s32.totalorder %s43, 0
      %p471 = por %p469, %p470
      %p472 = scmp.ne.s32.totalorder %s460, %s461
      %p473 = scmp.eq.s32.totalorder %s44, 1
      %p474 = por %p472, %p473
      %p476 = scmp.ne.s32.totalorder %s461, %s475
      %p477 = scmp.eq.s32.totalorder %s44, 0
      %p478 = por %p476, %p477
      %s480 = sadd.s32 %s479, 1
      %p483 = scmp.eq.s32.totalorder %s38, 1
      %p484 = scmp.ne.s32.totalorder %s479, %s481
      %p485 = scmp.eq.s32.totalorder %s38, 0
      %p486 = por %p484, %p485
      %p487 = scmp.ne.s32.totalorder %s479, %s481
      %p488 = scmp.eq.s32.totalorder %s43, 1
      %p489 = por %p487, %p488
      %p490 = scmp.ne.s32.totalorder %s481, %s482
      %p491 = scmp.eq.s32.totalorder %s43, 0
      %p492 = por %p490, %p491
      %p493 = scmp.ne.s32.totalorder %s481, %s482
      %p494 = scmp.eq.s32.totalorder %s44, 1
      %p495 = por %p493, %p494
      %p497 = scmp.ne.s32.totalorder %s482, %s496
      %p498 = scmp.eq.s32.totalorder %s44, 0
      %p499 = por %p497, %p498
      %s501 = sadd.s32 %s500, 1
      %p504 = scmp.eq.s32.totalorder %s38, 1
      %p505 = scmp.ne.s32.totalorder %s500, %s502
      %p506 = scmp.eq.s32.totalorder %s38, 0
      %p507 = por %p505, %p506
      %p508 = scmp.ne.s32.totalorder %s500, %s502
      %p509 = scmp.eq.s32.totalorder %s43, 1
      %p510 = por %p508, %p509
      %p511 = scmp.ne.s32.totalorder %s502, %s503
      %p512 = scmp.eq.s32.totalorder %s43, 0
      %p513 = por %p511, %p512
      %p514 = scmp.ne.s32.totalorder %s502, %s503
      %p515 = scmp.eq.s32.totalorder %s44, 1
      %p516 = por %p514, %p515
      %p518 = scmp.ne.s32.totalorder %s503, %s517
      %p519 = scmp.eq.s32.totalorder %s44, 0
      %p520 = por %p518, %p519
      %s522 = sadd.s32 %s521, 1
      %p525 = scmp.eq.s32.totalorder %s38, 1
      %p526 = scmp.ne.s32.totalorder %s521, %s523
      %p527 = scmp.eq.s32.totalorder %s38, 0
      %p528 = por %p526, %p527
      %p529 = scmp.ne.s32.totalorder %s521, %s523
      %p530 = scmp.eq.s32.totalorder %s43, 1
      %p531 = por %p529, %p530
      %p532 = scmp.ne.s32.totalorder %s523, %s524
      %p533 = scmp.eq.s32.totalorder %s43, 0
      %p534 = por %p532, %p533
      %p535 = scmp.ne.s32.totalorder %s523, %s524
      %p536 = scmp.eq.s32.totalorder %s44, 1
      %p537 = por %p535, %p536
      %p539 = scmp.ne.s32.totalorder %s524, %s538
      %p540 = scmp.eq.s32.totalorder %s44, 0
      %p541 = por %p539, %p540
      %s543 = sadd.s32 %s542, 1
      %p546 = scmp.eq.s32.totalorder %s38, 1
      %p547 = scmp.ne.s32.totalorder %s542, %s544
      %p548 = scmp.eq.s32.totalorder %s38, 0
      %p549 = por %p547, %p548
      %p550 = scmp.ne.s32.totalorder %s542, %s544
      %p551 = scmp.eq.s32.totalorder %s43, 1
      %p552 = por %p550, %p551
      %p553 = scmp.ne.s32.totalorder %s544, %s545
      %p554 = scmp.eq.s32.totalorder %s43, 0
      %p555 = por %p553, %p554
      %p556 = scmp.ne.s32.totalorder %s544, %s545
      %p557 = scmp.eq.s32.totalorder %s44, 1
      %p558 = por %p556, %p557
      %p560 = scmp.ne.s32.totalorder %s545, %s559
      %p561 = scmp.eq.s32.totalorder %s44, 0
      %p562 = por %p560, %p561
      %s564 = sadd.s32 %s563, 1
      %p567 = scmp.eq.s32.totalorder %s38, 1
      %p568 = scmp.ne.s32.totalorder %s563, %s565
      %p569 = scmp.eq.s32.totalorder %s38, 0
      %p570 = por %p568, %p569
      %p571 = scmp.ne.s32.totalorder %s563, %s565
      %p572 = scmp.eq.s32.totalorder %s43, 1
      %p573 = por %p571, %p572
      %p574 = scmp.ne.s32.totalorder %s565, %s566
      %p575 = scmp.eq.s32.totalorder %s43, 0
      %p576 = por %p574, %p575
      %p577 = scmp.ne.s32.totalorder %s565, %s566
      %p578 = scmp.eq.s32.totalorder %s44, 1
      %p579 = por %p577, %p578
      %p581 = scmp.ne.s32.totalorder %s566, %s580
      %p582 = scmp.eq.s32.totalorder %s44, 0
      %p583 = por %p581, %p582
      %s584 = ssub.s32 %s45, %s57
      %s585 = ssub.s32 %s46, %s53
      %s586 = sor.u32 %s584, %s585
      %p587 = scmp.eq.s32.totalorder %s586, 0
      %s589 = sadd.s32 %s588, 1
      %s590 = scalar_select %p587, %s588, %s589
      %p593 = pneg %p587
      %p594 = scmp.eq.s32.totalorder %s38, 1
      %p595 = por %p593, %p594
      %p596 = scmp.ne.s32.totalorder %s588, %s591
      %p597 = scmp.eq.s32.totalorder %s38, 0
      %p598 = por %p596, %p597
      %p599 = scmp.ne.s32.totalorder %s588, %s591
      %p600 = scmp.eq.s32.totalorder %s43, 1
      %p601 = por %p599, %p600
      %p602 = scmp.ne.s32.totalorder %s591, %s592
      %p603 = scmp.eq.s32.totalorder %s43, 0
      %p604 = por %p602, %p603
      %p605 = scmp.ne.s32.totalorder %s591, %s592
      %p606 = scmp.eq.s32.totalorder %s44, 1
      %p607 = por %p605, %p606
      %p609 = scmp.ne.s32.totalorder %s592, %s608
      %p610 = scmp.eq.s32.totalorder %s44, 0
      %p611 = por %p609, %p610
      %s612 = ssub.s32 %s45, %s57
      %s613 = ssub.s32 %s46, %s53
      %s614 = sor.u32 %s612, %s613
      %p615 = scmp.eq.s32.totalorder %s614, 0
      %s617 = sadd.s32 %s616, 1
      %s618 = scalar_select %p615, %s616, %s617
      %p621 = pneg %p615
      %p622 = scmp.eq.s32.totalorder %s38, 1
      %p623 = por %p621, %p622
      %p624 = scmp.ne.s32.totalorder %s616, %s619
      %p625 = scmp.eq.s32.totalorder %s38, 0
      %p626 = por %p624, %p625
      %p627 = scmp.ne.s32.totalorder %s616, %s619
      %p628 = scmp.eq.s32.totalorder %s43, 1
      %p629 = por %p627, %p628
      %p630 = scmp.ne.s32.totalorder %s619, %s620
      %p631 = scmp.eq.s32.totalorder %s43, 0
      %p632 = por %p630, %p631
      %p633 = scmp.ne.s32.totalorder %s619, %s620
      %p634 = scmp.eq.s32.totalorder %s44, 1
      %p635 = por %p633, %p634
      %p637 = scmp.ne.s32.totalorder %s620, %s636
      %p638 = scmp.eq.s32.totalorder %s44, 0
      %p639 = por %p637, %p638
      %p640 = scmp.le.s32.totalorder 1, %s38
      %p641 = scmp.lt.s32.totalorder %s38, 3
      %p642 = pnand %p640, %p641
      %p643 = pneg %p642
      // Predicated region
      $region9: #{tpu_custom_call.1} parent=5 // pred_check
        _
      $region10: #{tpu_custom_call.1} parent=5 // pred_check_branch
        %645 = sbr.rel (%p642) target = $region12
      $region11: #{tpu_custom_call.1} parent=5 // pred_region
        %s646 = ssub.s32 %s38, 1
        // Predicated region
        $region13: #{tpu_custom_call.1} parent=11 // pred_check
          %p647 = pneg %p177
        $region14: #{tpu_custom_call.1} parent=11 // pred_check_branch
          %649 = sbr.rel (%p647) target = $region16
        $region15: #{tpu_custom_call.1} parent=11 // pred_region
          _
        $region16: #{tpu_custom_call.1} parent=11 // pred_fallthru
          _
        // Predicated region
        $region17: #{tpu_custom_call.1} parent=11 // pred_check
          %p650 = pneg %p198
        $region18: #{tpu_custom_call.1} parent=11 // pred_check_branch
          %652 = sbr.rel (%p650) target = $region20
        $region19: #{tpu_custom_call.1} parent=11 // pred_region
          _
        $region20: #{tpu_custom_call.1} parent=11 // pred_fallthru
          _
        // Predicated region
        $region21: #{tpu_custom_call.1} parent=11 // pred_check
          %p653 = pneg %p219
        $region22: #{tpu_custom_call.1} parent=11 // pred_check_branch
          %655 = sbr.rel (%p653) target = $region24
        $region23: #{tpu_custom_call.1} parent=11 // pred_region
          _
        $region24: #{tpu_custom_call.1} parent=11 // pred_fallthru
          _
        // Predicated region
        $region25: #{tpu_custom_call.1} parent=11 // pred_check
          %p656 = pneg %p240
        $region26: #{tpu_custom_call.1} parent=11 // pred_check_branch
          %658 = sbr.rel (%p656) target = $region28
        $region27: #{tpu_custom_call.1} parent=11 // pred_region
          _
        $region28: #{tpu_custom_call.1} parent=11 // pred_fallthru
          _
        // Predicated region
        $region29: #{tpu_custom_call.1} parent=11 // pred_check
          %p659 = pneg %p261
        $region30: #{tpu_custom_call.1} parent=11 // pred_check_branch
          %661 = sbr.rel (%p659) target = $region32
        $region31: #{tpu_custom_call.1} parent=11 // pred_region
          _
        $region32: #{tpu_custom_call.1} parent=11 // pred_fallthru
          _
        // Predicated region
        $region33: #{tpu_custom_call.1} parent=11 // pred_check
          %p662 = pneg %p282
        $region34: #{tpu_custom_call.1} parent=11 // pred_check_branch
          %664 = sbr.rel (%p662) target = $region36
        $region35: #{tpu_custom_call.1} parent=11 // pred_region
          _
        $region36: #{tpu_custom_call.1} parent=11 // pred_fallthru
          _
        // Predicated region
        $region37: #{tpu_custom_call.1} parent=11 // pred_check
          %p665 = pneg %p303
        $region38: #{tpu_custom_call.1} parent=11 // pred_check_branch
          %667 = sbr.rel (%p665) target = $region40
        $region39: #{tpu_custom_call.1} parent=11 // pred_region
          _
        $region40: #{tpu_custom_call.1} parent=11 // pred_fallthru
          _
        // Predicated region
        $region41: #{tpu_custom_call.1} parent=11 // pred_check
          %p668 = pneg %p324
        $region42: #{tpu_custom_call.1} parent=11 // pred_check_branch
          %670 = sbr.rel (%p668) target = $region44
        $region43: #{tpu_custom_call.1} parent=11 // pred_region
          _
        $region44: #{tpu_custom_call.1} parent=11 // pred_fallthru
          _
        // Predicated region
        $region45: #{tpu_custom_call.1} parent=11 // pred_check
          %p671 = pneg %p345
        $region46: #{tpu_custom_call.1} parent=11 // pred_check_branch
          %673 = sbr.rel (%p671) target = $region48
        $region47: #{tpu_custom_call.1} parent=11 // pred_region
          _
        $region48: #{tpu_custom_call.1} parent=11 // pred_fallthru
          _
        // Predicated region
        $region49: #{tpu_custom_call.1} parent=11 // pred_check
          %p674 = pneg %p366
        $region50: #{tpu_custom_call.1} parent=11 // pred_check_branch
          %676 = sbr.rel (%p674) target = $region52
        $region51: #{tpu_custom_call.1} parent=11 // pred_region
          _
        $region52: #{tpu_custom_call.1} parent=11 // pred_fallthru
          _
        // Predicated region
        $region53: #{tpu_custom_call.1} parent=11 // pred_check
          %p677 = pneg %p387
        $region54: #{tpu_custom_call.1} parent=11 // pred_check_branch
          %679 = sbr.rel (%p677) target = $region56
        $region55: #{tpu_custom_call.1} parent=11 // pred_region
          _
        $region56: #{tpu_custom_call.1} parent=11 // pred_fallthru
          _
        // Predicated region
        $region57: #{tpu_custom_call.1} parent=11 // pred_check
          %p680 = pneg %p408
        $region58: #{tpu_custom_call.1} parent=11 // pred_check_branch
          %682 = sbr.rel (%p680) target = $region60
        $region59: #{tpu_custom_call.1} parent=11 // pred_region
          _
        $region60: #{tpu_custom_call.1} parent=11 // pred_fallthru
          _
        // Predicated region
        $region61: #{tpu_custom_call.1} parent=11 // pred_check
          %p683 = pneg %p429
        $region62: #{tpu_custom_call.1} parent=11 // pred_check_branch
          %685 = sbr.rel (%p683) target = $region64
        $region63: #{tpu_custom_call.1} parent=11 // pred_region
          _
        $region64: #{tpu_custom_call.1} parent=11 // pred_fallthru
          _
        // Predicated region
        $region65: #{tpu_custom_call.1} parent=11 // pred_check
          %p686 = pneg %p450
        $region66: #{tpu_custom_call.1} parent=11 // pred_check_branch
          %688 = sbr.rel (%p686) target = $region68
        $region67: #{tpu_custom_call.1} parent=11 // pred_region
          _
        $region68: #{tpu_custom_call.1} parent=11 // pred_fallthru
          _
        // Predicated region
        $region69: #{tpu_custom_call.1} parent=11 // pred_check
          %p689 = pneg %p471
        $region70: #{tpu_custom_call.1} parent=11 // pred_check_branch
          %691 = sbr.rel (%p689) target = $region72
        $region71: #{tpu_custom_call.1} parent=11 // pred_region
          _
        $region72: #{tpu_custom_call.1} parent=11 // pred_fallthru
          _
        // Predicated region
        $region73: #{tpu_custom_call.1} parent=11 // pred_check
          %p692 = pneg %p492
        $region74: #{tpu_custom_call.1} parent=11 // pred_check_branch
          %694 = sbr.rel (%p692) target = $region76
        $region75: #{tpu_custom_call.1} parent=11 // pred_region
          _
        $region76: #{tpu_custom_call.1} parent=11 // pred_fallthru
          _
        // Predicated region
        $region77: #{tpu_custom_call.1} parent=11 // pred_check
          %p695 = pneg %p513
        $region78: #{tpu_custom_call.1} parent=11 // pred_check_branch
          %697 = sbr.rel (%p695) target = $region80
        $region79: #{tpu_custom_call.1} parent=11 // pred_region
          _
        $region80: #{tpu_custom_call.1} parent=11 // pred_fallthru
          _
        // Predicated region
        $region81: #{tpu_custom_call.1} parent=11 // pred_check
          %p698 = pneg %p534
        $region82: #{tpu_custom_call.1} parent=11 // pred_check_branch
          %700 = sbr.rel (%p698) target = $region84
        $region83: #{tpu_custom_call.1} parent=11 // pred_region
          _
        $region84: #{tpu_custom_call.1} parent=11 // pred_fallthru
          _
        // Predicated region
        $region85: #{tpu_custom_call.1} parent=11 // pred_check
          %p701 = pneg %p555
        $region86: #{tpu_custom_call.1} parent=11 // pred_check_branch
          %703 = sbr.rel (%p701) target = $region88
        $region87: #{tpu_custom_call.1} parent=11 // pred_region
          _
        $region88: #{tpu_custom_call.1} parent=11 // pred_fallthru
          _
        // Predicated region
        $region89: #{tpu_custom_call.1} parent=11 // pred_check
          %p704 = pneg %p576
        $region90: #{tpu_custom_call.1} parent=11 // pred_check_branch
          %706 = sbr.rel (%p704) target = $region92
        $region91: #{tpu_custom_call.1} parent=11 // pred_region
          _
        $region92: #{tpu_custom_call.1} parent=11 // pred_fallthru
          _
      $region12: #{tpu_custom_call.1} parent=5 // pred_fallthru
        _
      %p707 = scmp.lt.s32.totalorder %s38, 2
      // Predicated region
      $region93: #{tpu_custom_call.1} parent=5 // pred_check
        %p708 = pneg %p707
      $region94: #{tpu_custom_call.1} parent=5 // pred_check_branch
        %710 = sbr.rel (%p708) target = $region96
      $region95: #{tpu_custom_call.1} parent=5 // pred_region
        // Predicated region
        $region97: #{tpu_custom_call.1} parent=95 // pred_check
          %p711 = pneg %p72
        $region98: #{tpu_custom_call.1} parent=95 // pred_check_branch
          %713 = sbr.rel (%p711) target = $region100
        $region99: #{tpu_custom_call.1} parent=95 // pred_region
          %p714 = scmp.lt.s32.totalorder %s45, 1
          %s715 = scalar_select %p714, %s45, 1
          %p716 = scmp.lt.s32.totalorder %s46, 0
          %s717 = scalar_select %p716, %s46, 0
          %s718 = sadd.s32 %s717, %s715
          %s719 = smul.addr %s718, 8
          %s720 = scalar_lea.vmem %s0, %s719
        $region100: #{tpu_custom_call.1} parent=95 // pred_fallthru
          _
        // Predicated region
        $region101: #{tpu_custom_call.1} parent=95 // pred_check
          %p721 = pneg %p98
        $region102: #{tpu_custom_call.1} parent=95 // pred_check_branch
          %723 = sbr.rel (%p721) target = $region104
        $region103: #{tpu_custom_call.1} parent=95 // pred_region
          %p724 = scmp.lt.s32.totalorder %s45, 1
          %s725 = scalar_select %p724, %s45, 1
          %s726 = smul.addr %s725, 16
          %s727 = smul.addr %s726, 4
          %s728 = scalar_lea.vmem %s1, %s727
        $region104: #{tpu_custom_call.1} parent=95 // pred_fallthru
          _
        // Predicated region
        $region105: #{tpu_custom_call.1} parent=95 // pred_check
          %p729 = pneg %p124
        $region106: #{tpu_custom_call.1} parent=95 // pred_check_branch
          %731 = sbr.rel (%p729) target = $region108
        $region107: #{tpu_custom_call.1} parent=95 // pred_region
          %p732 = scmp.lt.s32.totalorder %s45, 1
          %s733 = scalar_select %p732, %s45, 1
          %s734 = scalar_lea.vmem %s2, %s733
        $region108: #{tpu_custom_call.1} parent=95 // pred_fallthru
          _
        // Predicated region
        $region109: #{tpu_custom_call.1} parent=95 // pred_check
          %p735 = pneg %p150
        $region110: #{tpu_custom_call.1} parent=95 // pred_check_branch
          %737 = sbr.rel (%p735) target = $region112
        $region111: #{tpu_custom_call.1} parent=95 // pred_region
          %p738 = scmp.lt.s32.totalorder %s45, 1
          %s739 = scalar_select %p738, %s45, 1
          %s740 = scalar_lea.vmem %s3, %s739
        $region112: #{tpu_custom_call.1} parent=95 // pred_fallthru
          _
      $region96: #{tpu_custom_call.1} parent=5 // pred_fallthru
        _
      %p741 = scmp.le.s32.totalorder 1, %s38
      %p742 = scmp.lt.s32.totalorder %s38, 3
      %p743 = pnand %p741, %p742
      %p744 = pneg %p743
      // Predicated region
      $region113: #{tpu_custom_call.1} parent=5 // pred_check
        _
      $region114: #{tpu_custom_call.1} parent=5 // pred_check_branch
        %746 = sbr.rel (%p743) target = $region116
      $region115: #{tpu_custom_call.1} parent=5 // pred_region
        %s747 = ssub.s32 %s38, 1
        %p748 = scmp.lt.s32.totalorder %s47, 1
        %s749 = scalar_select %p748, %s47, 1
        %p750 = scmp.lt.s32.totalorder %s48, 0
        %s751 = scalar_select %p750, %s48, 0
        %s752 = sadd.s32 %s751, %s749
        %s753 = smul.addr %s752, 8
        %s754 = scalar_lea.vmem %s0, %s753
        %p755 = pneg %p78
        %p756 = pneg %p75
        %p757 = scmp.lt.s32.totalorder %s47, 1
        %s758 = scalar_select %p757, %s47, 1
        %s759 = smul.addr %s758, 16
        %s760 = smul.addr %s759, 4
        %s761 = scalar_lea.vmem %s1, %s760
        %p762 = pneg %p104
        %p763 = pneg %p101
        %p764 = scmp.lt.s32.totalorder %s47, 1
        %s765 = scalar_select %p764, %s47, 1
        %s766 = scalar_lea.vmem %s2, %s765
        %p767 = pneg %p130
        %p768 = pneg %p127
        %p769 = scmp.lt.s32.totalorder %s47, 1
        %s770 = scalar_select %p769, %s47, 1
        %s771 = scalar_lea.vmem %s3, %s770
        %p772 = pneg %p156
        %p773 = pneg %p153
        %p774 = pneg %p177
        %p775 = pneg %p174
        %p776 = pneg %p198
        %p777 = pneg %p195
        %p778 = pneg %p219
        %p779 = pneg %p216
        %p780 = pneg %p240
        %p781 = pneg %p237
        %p782 = pneg %p261
        %p783 = pneg %p258
        %p784 = pneg %p282
        %p785 = pneg %p279
        %p786 = pneg %p303
        %p787 = pneg %p300
        %p788 = pneg %p324
        %p789 = pneg %p321
        %p790 = pneg %p345
        %p791 = pneg %p342
        %p792 = pneg %p366
        %p793 = pneg %p363
        %p794 = pneg %p387
        %p795 = pneg %p384
        %p796 = pneg %p408
        %p797 = pneg %p405
        %p798 = pneg %p429
        %p799 = pneg %p426
        %p800 = pneg %p450
        %p801 = pneg %p447
        %p802 = pneg %p471
        %p803 = pneg %p468
        %p804 = pneg %p492
        %p805 = pneg %p489
        %p806 = pneg %p513
        %p807 = pneg %p510
        %p808 = pneg %p534
        %p809 = pneg %p531
        %p810 = pneg %p555
        %p811 = pneg %p552
        %p812 = pneg %p576
        %p813 = pneg %p573
        %p814 = pneg %p604
        %p815 = pneg %p601
        %s816 = sand.u32 %s591, 1
        %s817 = scalar_lea.sflag [#allocation8], %s816
        %s818 = sand.u32 %s591, 1
        %s819 = smul.addr %s818, 8
        %s820 = scalar_lea.vmem [#allocation7], %s819
        %p821 = pneg %p632
        %p822 = pneg %p629
        %s823 = sand.u32 %s619, 1
        %s824 = scalar_lea.sflag [#allocation10], %s823
        %s825 = sand.u32 %s619, 1
        %s826 = smul.addr %s825, 8
        %s827 = scalar_lea.vmem [#allocation9], %s826
        %p828 = scmp.lt.s32.totalorder %s47, 1
        %s829 = scalar_select %p828, %s47, 1
        %p830 = scmp.lt.s32.totalorder %s48, 0
        %s831 = scalar_select %p830, %s48, 0
        %s832 = sadd.s32 %s831, %s829
        %s833 = smul.addr %s832, 8
        %s834 = scalar_lea.vmem %s0, %s833
        %p835 = scmp.lt.s32.totalorder %s47, 1
        %s836 = scalar_select %p835, %s47, 1
        %s837 = smul.addr %s836, 16
        %s838 = smul.addr %s837, 4
        %s839 = scalar_lea.vmem %s1, %s838
        %p840 = scmp.lt.s32.totalorder %s47, 1
        %s841 = scalar_select %p840, %s47, 1
        %s842 = scalar_lea.vmem %s2, %s841
        %p843 = scmp.lt.s32.totalorder %s47, 1
        %s844 = scalar_select %p843, %s47, 1
        %s845 = scalar_lea.vmem %s3, %s844
        %p847 = scmp.eq.s32.totalorder %s48, 0
        // Predicated region
        $region117: #{tpu_custom_call.1} parent=115 // pred_check
          %p848 = pneg %p847
        $region118: #{tpu_custom_call.1} parent=115 // pred_check_branch
          %850 = sbr.rel (%p848) target = $region120
        $region119: #{tpu_custom_call.1} parent=115 // pred_region
          %vm851 = vcmask 257024
          %852 = vst.msk [vmem:[#allocation2] sm:$0xf] %vm851, 0
          %853 = vst.msk [vmem:[#allocation3] sm:$0xf] %vm851, 0
          %v854 = vld [vmem:[%s839] sm:$0xf]
          %v855 = vld [vmem:[%s839 + $0x4] sm:$0xf]
          %v856 = vld [vmem:[%s839 + $0x8] sm:$0xf]
          %v857 = vld [vmem:[%s839 + $0xc] sm:$0xf]
          %v858 = vld [vmem:[%s839 + $0x10] sm:$0xf]
          %v859 = vld [vmem:[%s839 + $0x14] sm:$0xf]
          %v860 = vld [vmem:[%s839 + $0x18] sm:$0xf]
          %v861 = vld [vmem:[%s839 + $0x1c] sm:$0xf]
          %v862 = vld [vmem:[%s839 + $0x20] sm:$0xf]
          %v863 = vld [vmem:[%s839 + $0x24] sm:$0xf]
          %v864 = vld [vmem:[%s839 + $0x28] sm:$0xf]
          %v865 = vld [vmem:[%s839 + $0x2c] sm:$0xf]
          %v866 = vld [vmem:[%s839 + $0x30] sm:$0xf]
          %v867 = vld [vmem:[%s839 + $0x34] sm:$0xf]
          %v868 = vld [vmem:[%s839 + $0x38] sm:$0xf]
          %v869 = vld [vmem:[%s839 + $0x3c] sm:$0xf]
          %v870 = vld [vmem:[%s12] sm:$0xf]
          %v871 = vld [vmem:[%s12 + $0x4] sm:$0xf]
          %v872 = vld [vmem:[%s12 + $0x8] sm:$0xf]
          %v873 = vld [vmem:[%s12 + $0xc] sm:$0xf]
          %v874 = vld [vmem:[%s13] sm:$0x1]
          %v876 = vlaneseq
          %v877 = vshrl.u32 %v876, 7
          %v878 = vsub.s32 0, %v877
          %v879 = vrot.slane %v874, %v878
          %v897 = vunpack.c.l.b16 %v854
          %v898 = vunpack.c.l.b16 %v855
          %v899 = vunpack.c.l.b16 %v856
          %v900 = vunpack.c.l.b16 %v857
          %v901 = vunpack.c.l.b16 %v858
          %v902 = vunpack.c.l.b16 %v859
          %v903 = vunpack.c.l.b16 %v860
          %v904 = vunpack.c.l.b16 %v861
          %v905 = vunpack.c.l.b16 %v862
          %v906 = vunpack.c.l.b16 %v863
          %v907 = vunpack.c.l.b16 %v864
          %v908 = vunpack.c.l.b16 %v865
          %v909 = vunpack.c.l.b16 %v866
          %v910 = vunpack.c.l.b16 %v867
          %v911 = vunpack.c.l.b16 %v868
          %v912 = vunpack.c.l.b16 %v869
          %v913 = vpack.c.b16 %v898, %v897
          %v914 = vpack.c.b16 %v900, %v899
          %v915 = vpack.c.b16 %v902, %v901
          %v916 = vpack.c.b16 %v904, %v903
          %v917 = vpack.c.b16 %v906, %v905
          %v918 = vpack.c.b16 %v908, %v907
          %v919 = vpack.c.b16 %v910, %v909
          %v920 = vpack.c.b16 %v912, %v911
          %v925 = vunpack.c.l.b16 %v870
          %v926 = vunpack.c.l.b16 %v871
          %v927 = vunpack.c.l.b16 %v872
          %v928 = vunpack.c.l.b16 %v873
          %v929 = vpack.c.b16 %v926, %v925
          %v930 = vpack.c.b16 %v928, %v927
          %vm933 = vcmask 261120
          %v935 = vsel %vm933, %v913, 0
          %v938 = vsel %vm933, %v914, 0
          %v941 = vsel %vm933, %v915, 0
          %v944 = vsel %vm933, %v916, 0
          %v947 = vsel %vm933, %v917, 0
          %v950 = vsel %vm933, %v918, 0
          %v953 = vsel %vm933, %v919, 0
          %v956 = vsel %vm933, %v920, 0
          %958 = vmatprep.subr.bf16.mxu0 0
          %959 = vmatpush1.bf16.msra.mxu0 0
          %960 = vmatprep.subr.bf16.mxu0 0
          %961 = vmatpush1.bf16.msra.mxu0 0
          %962 = vmatprep.subr.bf16.mxu0 0
          %963 = vmatpush1.bf16.msra.mxu0 0
          %964 = vmatprep.subr.bf16.mxu0 0
          %965 = vmatpush1.bf16.msra.mxu0 0
          %966 = vmatprep.subr.bf16.mxu0 0
          %967 = vmatpush1.bf16.msra.mxu0 0
          %968 = vmatprep.subr.bf16.mxu0 0
          %969 = vmatpush1.bf16.msra.mxu0 0
          %970 = vmatprep.subr.bf16.mxu0 0
          %971 = vmatpush1.bf16.msra.mxu0 %v930
          %972 = vmatprep.subr.bf16.mxu0 0
          %973 = vmatpush1.bf16.msra.mxu0 %v929
          %974 = vmatprep.subr.bf16.mxu0 0
          %975 = vmatpush2.bf16.msra.mxu0 0
          %976 = vmatprep.subr.bf16.mxu0 0
          %977 = vmatpush2.bf16.msra.mxu0 0
          %978 = vmatprep.subr.bf16.mxu0 0
          %979 = vmatpush2.bf16.msra.mxu0 0
          %980 = vmatprep.subr.bf16.mxu0 0
          %981 = vmatpush2.bf16.msra.mxu0 0
          %982 = vmatprep.subr.bf16.mxu0 0
          %983 = vmatpush2.bf16.msra.mxu0 0
          %984 = vmatprep.subr.bf16.mxu0 0
          %985 = vmatpush2.bf16.msra.mxu0 0
          %986 = vmatprep.subr.bf16.mxu0 0
          %987 = vmatpush2.bf16.msra.mxu0 0
          %988 = vmatprep.subr.bf16.mxu0 0
          %989 = vmatpush2.bf16.msra.mxu0 0
          %990 = vmatprep.mubr.bf16.mxu0 0
          %991 = vmatmul.mubr.bf16.gmra.mxu0 %v935
          %v992 = vpop.f32.mrf.mxu0
          %v993 = vadd.f32 %v879, %v992
          %v994 = vpop.f32.mrf.mxu0
          %v995 = vpop.f32.mrf.mxu0
          %v996 = vadd.f32 %v879, %v995
          %v997 = vpop.f32.mrf.mxu0
          %998 = vmatprep.mubr.bf16.mxu0 0
          %999 = vmatmul.mubr.bf16.gmra.mxu0 %v938
          %v1000 = vpop.f32.mrf.mxu0
          %v1001 = vadd.f32 %v879, %v1000
          %v1002 = vpop.f32.mrf.mxu0
          %v1003 = vpop.f32.mrf.mxu0
          %v1004 = vadd.f32 %v879, %v1003
          %v1005 = vpop.f32.mrf.mxu0
          %1006 = vmatprep.mubr.bf16.mxu0 0
          %1007 = vmatmul.mubr.bf16.gmra.mxu0 %v941
          %v1008 = vpop.f32.mrf.mxu0
          %v1009 = vadd.f32 %v879, %v1008
          %v1010 = vpop.f32.mrf.mxu0
          %v1011 = vpop.f32.mrf.mxu0
          %v1012 = vadd.f32 %v879, %v1011
          %v1013 = vpop.f32.mrf.mxu0
          %1014 = vmatprep.mubr.bf16.mxu0 0
          %1015 = vmatmul.mubr.bf16.gmra.mxu0 %v944
          %v1016 = vpop.f32.mrf.mxu0
          %v1017 = vadd.f32 %v879, %v1016
          %v1018 = vpop.f32.mrf.mxu0
          %v1019 = vpop.f32.mrf.mxu0
          %v1020 = vadd.f32 %v879, %v1019
          %v1021 = vpop.f32.mrf.mxu0
          %1022 = vmatprep.mubr.bf16.mxu0 0
          %1023 = vmatmul.mubr.bf16.gmra.mxu0 %v947
          %v1024 = vpop.f32.mrf.mxu0
          %v1025 = vadd.f32 %v879, %v1024
          %v1026 = vpop.f32.mrf.mxu0
          %v1027 = vpop.f32.mrf.mxu0
          %v1028 = vadd.f32 %v879, %v1027
          %v1029 = vpop.f32.mrf.mxu0
          %1030 = vmatprep.mubr.bf16.mxu0 0
          %1031 = vmatmul.mubr.bf16.gmra.mxu0 %v950
          %v1032 = vpop.f32.mrf.mxu0
          %v1033 = vadd.f32 %v879, %v1032
          %v1034 = vpop.f32.mrf.mxu0
          %v1035 = vpop.f32.mrf.mxu0
          %v1036 = vadd.f32 %v879, %v1035
          %v1037 = vpop.f32.mrf.mxu0
          %1038 = vmatprep.mubr.bf16.mxu0 0
          %1039 = vmatmul.mubr.bf16.gmra.mxu0 %v953
          %v1040 = vpop.f32.mrf.mxu0
          %v1041 = vadd.f32 %v879, %v1040
          %v1042 = vpop.f32.mrf.mxu0
          %v1043 = vpop.f32.mrf.mxu0
          %v1044 = vadd.f32 %v879, %v1043
          %v1045 = vpop.f32.mrf.mxu0
          %1046 = vmatprep.mubr.bf16.mxu0 0
          %1047 = vmatmul.mubr.bf16.gmra.mxu0 %v956
          %v1048 = vpop.f32.mrf.mxu0
          %v1049 = vadd.f32 %v879, %v1048
          %v1050 = vpop.f32.mrf.mxu0
          %v1051 = vpop.f32.mrf.mxu0
          %v1052 = vadd.f32 %v879, %v1051
          %v1053 = vpop.f32.mrf.mxu0
          %1054 = vdwg.mxu0
          %v1055 = vpack.c.bf16 %v996, %v993
          %v1056 = vpack.c.bf16 %v1004, %v1001
          %v1057 = vpack.c.bf16 %v1012, %v1009
          %v1058 = vpack.c.bf16 %v1020, %v1017
          %v1059 = vpack.c.bf16 %v1028, %v1025
          %v1060 = vpack.c.bf16 %v1036, %v1033
          %v1061 = vpack.c.bf16 %v1044, %v1041
          %v1062 = vpack.c.bf16 %v1052, %v1049
          %v1071 = vunpack.c.l.b16 %v1055
          %v1072 = vunpack.c.h.b16 %v1055
          %v1073 = vunpack.c.l.b16 %v1056
          %v1074 = vunpack.c.h.b16 %v1056
          %v1075 = vunpack.c.l.b16 %v1057
          %v1076 = vunpack.c.h.b16 %v1057
          %v1077 = vunpack.c.l.b16 %v1058
          %v1078 = vunpack.c.h.b16 %v1058
          %v1079 = vunpack.c.l.b16 %v1059
          %v1080 = vunpack.c.h.b16 %v1059
          %v1081 = vunpack.c.l.b16 %v1060
          %v1082 = vunpack.c.h.b16 %v1060
          %v1083 = vunpack.c.l.b16 %v1061
          %v1084 = vunpack.c.h.b16 %v1061
          %v1085 = vunpack.c.l.b16 %v1062
          %v1086 = vunpack.c.h.b16 %v1062
          %v1087 = vpack.c.b16 %v1071, %v1071
          %v1088 = vpack.c.b16 %v1072, %v1072
          %v1089 = vpack.c.b16 %v1073, %v1073
          %v1090 = vpack.c.b16 %v1074, %v1074
          %v1091 = vpack.c.b16 %v1075, %v1075
          %v1092 = vpack.c.b16 %v1076, %v1076
          %v1093 = vpack.c.b16 %v1077, %v1077
          %v1094 = vpack.c.b16 %v1078, %v1078
          %v1095 = vpack.c.b16 %v1079, %v1079
          %v1096 = vpack.c.b16 %v1080, %v1080
          %v1097 = vpack.c.b16 %v1081, %v1081
          %v1098 = vpack.c.b16 %v1082, %v1082
          %v1099 = vpack.c.b16 %v1083, %v1083
          %v1100 = vpack.c.b16 %v1084, %v1084
          %v1101 = vpack.c.b16 %v1085, %v1085
          %v1102 = vpack.c.b16 %v1086, %v1086
          %1119 = vst.msk [vmem:[#allocation4] sm:$0xf] %vm851, %v1087
          %1120 = vst.msk [vmem:[#allocation4 + $0x4] sm:$0xf] %vm851, %v1088
          %1121 = vst.msk [vmem:[#allocation4 + $0x8] sm:$0xf] %vm851, %v1089
          %1122 = vst.msk [vmem:[#allocation4 + $0xc] sm:$0xf] %vm851, %v1090
          %1123 = vst.msk [vmem:[#allocation4 + $0x10] sm:$0xf] %vm851, %v1091
          %1124 = vst.msk [vmem:[#allocation4 + $0x14] sm:$0xf] %vm851, %v1092
          %1125 = vst.msk [vmem:[#allocation4 + $0x18] sm:$0xf] %vm851, %v1093
          %1126 = vst.msk [vmem:[#allocation4 + $0x1c] sm:$0xf] %vm851, %v1094
          %1127 = vst.msk [vmem:[#allocation4 + $0x20] sm:$0xf] %vm851, %v1095
          %1128 = vst.msk [vmem:[#allocation4 + $0x24] sm:$0xf] %vm851, %v1096
          %1129 = vst.msk [vmem:[#allocation4 + $0x28] sm:$0xf] %vm851, %v1097
          %1130 = vst.msk [vmem:[#allocation4 + $0x2c] sm:$0xf] %vm851, %v1098
          %1131 = vst.msk [vmem:[#allocation4 + $0x30] sm:$0xf] %vm851, %v1099
          %1132 = vst.msk [vmem:[#allocation4 + $0x34] sm:$0xf] %vm851, %v1100
          %1133 = vst.msk [vmem:[#allocation4 + $0x38] sm:$0xf] %vm851, %v1101
          %1134 = vst.msk [vmem:[#allocation4 + $0x3c] sm:$0xf] %vm851, %v1102
          %v1135 = vld [vmem:[%s14] sm:$0xf]
          %v1136 = vld [vmem:[%s14 + $0x4] sm:$0xf]
          %v1137 = vld [vmem:[%s14 + $0x8] sm:$0xf]
          %v1138 = vld [vmem:[%s14 + $0xc] sm:$0xf]
          %v1139 = vld [vmem:[%s15] sm:$0x1]
          %v1141 = vlaneseq
          %v1142 = vshrl.u32 %v1141, 7
          %v1143 = vsub.s32 0, %v1142
          %v1144 = vrot.slane %v1139, %v1143
          %v1150 = vunpack.c.l.b16 %v1135
          %v1151 = vunpack.c.l.b16 %v1136
          %v1152 = vunpack.c.l.b16 %v1137
          %v1153 = vunpack.c.l.b16 %v1138
          %v1154 = vpack.c.b16 %v1151, %v1150
          %v1155 = vpack.c.b16 %v1153, %v1152
          %1158 = vmatprep.subr.bf16.mxu0 0
          %1159 = vmatpush1.bf16.msra.mxu0 0
          %1160 = vmatprep.subr.bf16.mxu0 0
          %1161 = vmatpush1.bf16.msra.mxu0 0
          %1162 = vmatprep.subr.bf16.mxu0 0
          %1163 = vmatpush1.bf16.msra.mxu0 0
          %1164 = vmatprep.subr.bf16.mxu0 0
          %1165 = vmatpush1.bf16.msra.mxu0 0
          %1166 = vmatprep.subr.bf16.mxu0 0
          %1167 = vmatpush1.bf16.msra.mxu0 0
          %1168 = vmatprep.subr.bf16.mxu0 0
          %1169 = vmatpush1.bf16.msra.mxu0 0
          %1170 = vmatprep.subr.bf16.mxu0 0
          %1171 = vmatpush1.bf16.msra.mxu0 %v1155
          %1172 = vmatprep.subr.bf16.mxu0 0
          %1173 = vmatpush1.bf16.msra.mxu0 %v1154
          %1174 = vmatprep.subr.bf16.mxu0 0
          %1175 = vmatpush2.bf16.msra.mxu0 0
          %1176 = vmatprep.subr.bf16.mxu0 0
          %1177 = vmatpush2.bf16.msra.mxu0 0
          %1178 = vmatprep.subr.bf16.mxu0 0
          %1179 = vmatpush2.bf16.msra.mxu0 0
          %1180 = vmatprep.subr.bf16.mxu0 0
          %1181 = vmatpush2.bf16.msra.mxu0 0
          %1182 = vmatprep.subr.bf16.mxu0 0
          %1183 = vmatpush2.bf16.msra.mxu0 0
          %1184 = vmatprep.subr.bf16.mxu0 0
          %1185 = vmatpush2.bf16.msra.mxu0 0
          %1186 = vmatprep.subr.bf16.mxu0 0
          %1187 = vmatpush2.bf16.msra.mxu0 0
          %1188 = vmatprep.subr.bf16.mxu0 0
          %1189 = vmatpush2.bf16.msra.mxu0 0
          %1190 = vmatprep.mubr.bf16.mxu0 0
          %1191 = vmatmul.mubr.bf16.gmra.mxu0 %v935
          %v1192 = vpop.f32.mrf.mxu0
          %v1193 = vadd.f32 %v1144, %v1192
          %v1194 = vpop.f32.mrf.mxu0
          %v1195 = vpop.f32.mrf.mxu0
          %v1196 = vadd.f32 %v1144, %v1195
          %v1197 = vpop.f32.mrf.mxu0
          %1198 = vmatprep.mubr.bf16.mxu0 0
          %1199 = vmatmul.mubr.bf16.gmra.mxu0 %v938
          %v1200 = vpop.f32.mrf.mxu0
          %v1201 = vadd.f32 %v1144, %v1200
          %v1202 = vpop.f32.mrf.mxu0
          %v1203 = vpop.f32.mrf.mxu0
          %v1204 = vadd.f32 %v1144, %v1203
          %v1205 = vpop.f32.mrf.mxu0
          %1206 = vmatprep.mubr.bf16.mxu0 0
          %1207 = vmatmul.mubr.bf16.gmra.mxu0 %v941
          %v1208 = vpop.f32.mrf.mxu0
          %v1209 = vadd.f32 %v1144, %v1208
          %v1210 = vpop.f32.mrf.mxu0
          %v1211 = vpop.f32.mrf.mxu0
          %v1212 = vadd.f32 %v1144, %v1211
          %v1213 = vpop.f32.mrf.mxu0
          %1214 = vmatprep.mubr.bf16.mxu0 0
          %1215 = vmatmul.mubr.bf16.gmra.mxu0 %v944
          %v1216 = vpop.f32.mrf.mxu0
          %v1217 = vadd.f32 %v1144, %v1216
          %v1218 = vpop.f32.mrf.mxu0
          %v1219 = vpop.f32.mrf.mxu0
          %v1220 = vadd.f32 %v1144, %v1219
          %v1221 = vpop.f32.mrf.mxu0
          %1222 = vmatprep.mubr.bf16.mxu0 0
          %1223 = vmatmul.mubr.bf16.gmra.mxu0 %v947
          %v1224 = vpop.f32.mrf.mxu0
          %v1225 = vadd.f32 %v1144, %v1224
          %v1226 = vpop.f32.mrf.mxu0
          %v1227 = vpop.f32.mrf.mxu0
          %v1228 = vadd.f32 %v1144, %v1227
          %v1229 = vpop.f32.mrf.mxu0
          %1230 = vmatprep.mubr.bf16.mxu0 0
          %1231 = vmatmul.mubr.bf16.gmra.mxu0 %v950
          %v1232 = vpop.f32.mrf.mxu0
          %v1233 = vadd.f32 %v1144, %v1232
          %v1234 = vpop.f32.mrf.mxu0
          %v1235 = vpop.f32.mrf.mxu0
          %v1236 = vadd.f32 %v1144, %v1235
          %v1237 = vpop.f32.mrf.mxu0
          %1238 = vmatprep.mubr.bf16.mxu0 0
          %1239 = vmatmul.mubr.bf16.gmra.mxu0 %v953
          %v1240 = vpop.f32.mrf.mxu0
          %v1241 = vadd.f32 %v1144, %v1240
          %v1242 = vpop.f32.mrf.mxu0
          %v1243 = vpop.f32.mrf.mxu0
          %v1244 = vadd.f32 %v1144, %v1243
          %v1245 = vpop.f32.mrf.mxu0
          %1246 = vmatprep.mubr.bf16.mxu0 0
          %1247 = vmatmul.mubr.bf16.gmra.mxu0 %v956
          %v1248 = vpop.f32.mrf.mxu0
          %v1249 = vadd.f32 %v1144, %v1248
          %v1250 = vpop.f32.mrf.mxu0
          %v1251 = vpop.f32.mrf.mxu0
          %v1252 = vadd.f32 %v1144, %v1251
          %v1253 = vpop.f32.mrf.mxu0
          %1254 = vdwg.mxu0
          %v1255 = vpack.c.bf16 %v1196, %v1193
          %v1256 = vpack.c.bf16 %v1204, %v1201
          %v1257 = vpack.c.bf16 %v1212, %v1209
          %v1258 = vpack.c.bf16 %v1220, %v1217
          %v1259 = vpack.c.bf16 %v1228, %v1225
          %v1260 = vpack.c.bf16 %v1236, %v1233
          %v1261 = vpack.c.bf16 %v1244, %v1241
          %v1262 = vpack.c.bf16 %v1252, %v1249
          %v1271 = vunpack.c.l.b16 %v1255
          %v1272 = vunpack.c.h.b16 %v1255
          %v1273 = vunpack.c.l.b16 %v1256
          %v1274 = vunpack.c.h.b16 %v1256
          %v1275 = vunpack.c.l.b16 %v1257
          %v1276 = vunpack.c.h.b16 %v1257
          %v1277 = vunpack.c.l.b16 %v1258
          %v1278 = vunpack.c.h.b16 %v1258
          %v1279 = vunpack.c.l.b16 %v1259
          %v1280 = vunpack.c.h.b16 %v1259
          %v1281 = vunpack.c.l.b16 %v1260
          %v1282 = vunpack.c.h.b16 %v1260
          %v1283 = vunpack.c.l.b16 %v1261
          %v1284 = vunpack.c.h.b16 %v1261
          %v1285 = vunpack.c.l.b16 %v1262
          %v1286 = vunpack.c.h.b16 %v1262
          %v1287 = vpack.c.b16 %v1271, %v1271
          %v1288 = vpack.c.b16 %v1272, %v1272
          %v1289 = vpack.c.b16 %v1273, %v1273
          %v1290 = vpack.c.b16 %v1274, %v1274
          %v1291 = vpack.c.b16 %v1275, %v1275
          %v1292 = vpack.c.b16 %v1276, %v1276
          %v1293 = vpack.c.b16 %v1277, %v1277
          %v1294 = vpack.c.b16 %v1278, %v1278
          %v1295 = vpack.c.b16 %v1279, %v1279
          %v1296 = vpack.c.b16 %v1280, %v1280
          %v1297 = vpack.c.b16 %v1281, %v1281
          %v1298 = vpack.c.b16 %v1282, %v1282
          %v1299 = vpack.c.b16 %v1283, %v1283
          %v1300 = vpack.c.b16 %v1284, %v1284
          %v1301 = vpack.c.b16 %v1285, %v1285
          %v1302 = vpack.c.b16 %v1286, %v1286
          %1319 = vst.msk [vmem:[#allocation5] sm:$0xf] %vm851, %v1287
          %1320 = vst.msk [vmem:[#allocation5 + $0x4] sm:$0xf] %vm851, %v1288
          %1321 = vst.msk [vmem:[#allocation5 + $0x8] sm:$0xf] %vm851, %v1289
          %1322 = vst.msk [vmem:[#allocation5 + $0xc] sm:$0xf] %vm851, %v1290
          %1323 = vst.msk [vmem:[#allocation5 + $0x10] sm:$0xf] %vm851, %v1291
          %1324 = vst.msk [vmem:[#allocation5 + $0x14] sm:$0xf] %vm851, %v1292
          %1325 = vst.msk [vmem:[#allocation5 + $0x18] sm:$0xf] %vm851, %v1293
          %1326 = vst.msk [vmem:[#allocation5 + $0x1c] sm:$0xf] %vm851, %v1294
          %1327 = vst.msk [vmem:[#allocation5 + $0x20] sm:$0xf] %vm851, %v1295
          %1328 = vst.msk [vmem:[#allocation5 + $0x24] sm:$0xf] %vm851, %v1296
          %1329 = vst.msk [vmem:[#allocation5 + $0x28] sm:$0xf] %vm851, %v1297
          %1330 = vst.msk [vmem:[#allocation5 + $0x2c] sm:$0xf] %vm851, %v1298
          %1331 = vst.msk [vmem:[#allocation5 + $0x30] sm:$0xf] %vm851, %v1299
          %1332 = vst.msk [vmem:[#allocation5 + $0x34] sm:$0xf] %vm851, %v1300
          %1333 = vst.msk [vmem:[#allocation5 + $0x38] sm:$0xf] %vm851, %v1301
          %1334 = vst.msk [vmem:[#allocation5 + $0x3c] sm:$0xf] %vm851, %v1302
        $region120: #{tpu_custom_call.1} parent=115 // pred_fallthru
          _
        %v1335 = vld [vmem:[%s834] sm:$0xff]
        %vm1336 = vcmask 261120
        %v1337 = vsel %vm1336, %v1335, 0.0
        %1338 = vadd.xlane.f32.xlu0 %v1337
        %v1339 = vpop.xlane.xlu0 %1338
        %v1340 = vrcp.pop 32.0
        %v1341 = vmul.f32 %v1339, %v1340
        %v1342 = vsub.f32 %v1335, %v1341
        %v1343 = vmul.f32 %v1342, %v1342
        %v1344 = vsel %vm1336, %v1343, 0.0
        %1345 = vadd.xlane.f32.xlu0 %v1344
        %v1346 = vpop.xlane.xlu0 %1345
        %v1347 = vmul.f32 %v1346, %v1340
        %v1348 = vadd.f32 %v1347, 1e-05
        %v1349 = vrsqrt.pop %v1348
        %v1350 = vmul.f32 %v1342, %v1349
        %v1351 = vld [vmem:[%s4] sm:$0x1]
        %v1353 = vlaneseq
        %v1354 = vshrl.u32 %v1353, 7
        %v1355 = vsub.s32 0, %v1354
        %v1356 = vrot.slane %v1351, %v1355
        %v1358 = vmul.f32 %v1350, %v1356
        %v1359 = vld [vmem:[%s5] sm:$0x1]
        %v1361 = vlaneseq
        %v1362 = vshrl.u32 %v1361, 7
        %v1363 = vsub.s32 0, %v1362
        %v1364 = vrot.slane %v1359, %v1363
        %v1366 = vadd.f32 %v1358, %v1364
        %v1367 = vpack.c.bf16 %v1366, %v1366
        %s1368 = smul.u32 %s48, 8
        %v1369 = vld [vmem:[%s8] sm:$0xf]
        %v1370 = vld [vmem:[%s8 + $0x4] sm:$0xf]
        %v1371 = vld [vmem:[%s8 + $0x8] sm:$0xf]
        %v1372 = vld [vmem:[%s8 + $0xc] sm:$0xf]
        %v1373 = vld [vmem:[%s9] sm:$0x1]
        %v1375 = vlaneseq
        %v1376 = vshrl.u32 %v1375, 7
        %v1377 = vsub.s32 0, %v1376
        %v1378 = vrot.slane %v1373, %v1377
        %v1384 = vunpack.c.l.b16 %v1369
        %v1385 = vunpack.c.l.b16 %v1370
        %v1386 = vunpack.c.l.b16 %v1371
        %v1387 = vunpack.c.l.b16 %v1372
        %v1388 = vpack.c.b16 %v1385, %v1384
        %v1389 = vpack.c.b16 %v1387, %v1386
        %v1393 = vsel %vm1336, %v1367, 0
        %1395 = vmatprep.subr.bf16.mxu0 0
        %1396 = vmatpush1.bf16.msra.mxu0 0
        %1397 = vmatprep.subr.bf16.mxu0 0
        %1398 = vmatpush1.bf16.msra.mxu0 0
        %1399 = vmatprep.subr.bf16.mxu0 0
        %1400 = vmatpush1.bf16.msra.mxu0 0
        %1401 = vmatprep.subr.bf16.mxu0 0
        %1402 = vmatpush1.bf16.msra.mxu0 0
        %1403 = vmatprep.subr.bf16.mxu0 0
        %1404 = vmatpush1.bf16.msra.mxu0 0
        %1405 = vmatprep.subr.bf16.mxu0 0
        %1406 = vmatpush1.bf16.msra.mxu0 0
        %1407 = vmatprep.subr.bf16.mxu0 0
        %1408 = vmatpush1.bf16.msra.mxu0 %v1389
        %1409 = vmatprep.subr.bf16.mxu0 0
        %1410 = vmatpush1.bf16.msra.mxu0 %v1388
        %1411 = vmatprep.subr.bf16.mxu0 0
        %1412 = vmatpush2.bf16.msra.mxu0 0
        %1413 = vmatprep.subr.bf16.mxu0 0
        %1414 = vmatpush2.bf16.msra.mxu0 0
        %1415 = vmatprep.subr.bf16.mxu0 0
        %1416 = vmatpush2.bf16.msra.mxu0 0
        %1417 = vmatprep.subr.bf16.mxu0 0
        %1418 = vmatpush2.bf16.msra.mxu0 0
        %1419 = vmatprep.subr.bf16.mxu0 0
        %1420 = vmatpush2.bf16.msra.mxu0 0
        %1421 = vmatprep.subr.bf16.mxu0 0
        %1422 = vmatpush2.bf16.msra.mxu0 0
        %1423 = vmatprep.subr.bf16.mxu0 0
        %1424 = vmatpush2.bf16.msra.mxu0 0
        %1425 = vmatprep.subr.bf16.mxu0 0
        %1426 = vmatpush2.bf16.msra.mxu0 0
        %1427 = vmatprep.mubr.bf16.mxu0 0
        %1428 = vmatmul.mubr.bf16.gmra.mxu0 %v1393
        %v1429 = vpop.f32.mrf.mxu0
        %v1430 = vadd.f32 %v1378, %v1429
        %v1431 = vpop.f32.mrf.mxu0
        %v1432 = vpop.f32.mrf.mxu0
        %v1433 = vpop.f32.mrf.mxu0
        %1434 = vdwg.mxu0
        %v1435 = vpack.c.bf16 %v1430, %v1430
        %s1436 = sshra.s32 %s1368, 3
        %s1437 = sand.u32 %s1368, 7
        %s1438 = smul.addr %s1436, 4
        %s1439 = scalar_lea.vmem [#allocation2], %s1438
        %vm1440 = vcmask 257024
        %1441 = vst.msk [vmem:[%s1439] sm:$0xf] %vm1440, %v1435
        %v1442 = vld [vmem:[%s10] sm:$0xf]
        %v1443 = vld [vmem:[%s10 + $0x4] sm:$0xf]
        %v1444 = vld [vmem:[%s10 + $0x8] sm:$0xf]
        %v1445 = vld [vmem:[%s10 + $0xc] sm:$0xf]
        %v1446 = vld [vmem:[%s11] sm:$0x1]
        %v1448 = vlaneseq
        %v1449 = vshrl.u32 %v1448, 7
        %v1450 = vsub.s32 0, %v1449
        %v1451 = vrot.slane %v1446, %v1450
        %v1457 = vunpack.c.l.b16 %v1442
        %v1458 = vunpack.c.l.b16 %v1443
        %v1459 = vunpack.c.l.b16 %v1444
        %v1460 = vunpack.c.l.b16 %v1445
        %v1461 = vpack.c.b16 %v1458, %v1457
        %v1462 = vpack.c.b16 %v1460, %v1459
        %1465 = vmatprep.subr.bf16.mxu0 0
        %1466 = vmatpush1.bf16.msra.mxu0 0
        %1467 = vmatprep.subr.bf16.mxu0 0
        %1468 = vmatpush1.bf16.msra.mxu0 0
        %1469 = vmatprep.subr.bf16.mxu0 0
        %1470 = vmatpush1.bf16.msra.mxu0 0
        %1471 = vmatprep.subr.bf16.mxu0 0
        %1472 = vmatpush1.bf16.msra.mxu0 0
        %1473 = vmatprep.subr.bf16.mxu0 0
        %1474 = vmatpush1.bf16.msra.mxu0 0
        %1475 = vmatprep.subr.bf16.mxu0 0
        %1476 = vmatpush1.bf16.msra.mxu0 0
        %1477 = vmatprep.subr.bf16.mxu0 0
        %1478 = vmatpush1.bf16.msra.mxu0 %v1462
        %1479 = vmatprep.subr.bf16.mxu0 0
        %1480 = vmatpush1.bf16.msra.mxu0 %v1461
        %1481 = vmatprep.subr.bf16.mxu0 0
        %1482 = vmatpush2.bf16.msra.mxu0 0
        %1483 = vmatprep.subr.bf16.mxu0 0
        %1484 = vmatpush2.bf16.msra.mxu0 0
        %1485 = vmatprep.subr.bf16.mxu0 0
        %1486 = vmatpush2.bf16.msra.mxu0 0
        %1487 = vmatprep.subr.bf16.mxu0 0
        %1488 = vmatpush2.bf16.msra.mxu0 0
        %1489 = vmatprep.subr.bf16.mxu0 0
        %1490 = vmatpush2.bf16.msra.mxu0 0
        %1491 = vmatprep.subr.bf16.mxu0 0
        %1492 = vmatpush2.bf16.msra.mxu0 0
        %1493 = vmatprep.subr.bf16.mxu0 0
        %1494 = vmatpush2.bf16.msra.mxu0 0
        %1495 = vmatprep.subr.bf16.mxu0 0
        %1496 = vmatpush2.bf16.msra.mxu0 0
        %1497 = vmatprep.mubr.bf16.mxu0 0
        %1498 = vmatmul.mubr.bf16.gmra.mxu0 %v1393
        %v1499 = vpop.f32.mrf.mxu0
        %v1500 = vadd.f32 %v1451, %v1499
        %v1501 = vpop.f32.mrf.mxu0
        %v1502 = vpop.f32.mrf.mxu0
        %v1503 = vpop.f32.mrf.mxu0
        %1504 = vdwg.mxu0
        %v1505 = vpack.c.bf16 %v1500, %v1500
        %s1506 = smul.addr %s1436, 4
        %s1507 = scalar_lea.vmem [#allocation3], %s1506
        %1508 = vst.msk [vmem:[%s1507] sm:$0xf] %vm1440, %v1505
        %v1509 = vld [vmem:[%s6] sm:$0xf]
        %v1510 = vld [vmem:[%s6 + $0x4] sm:$0xf]
        %v1511 = vld [vmem:[%s6 + $0x8] sm:$0xf]
        %v1512 = vld [vmem:[%s6 + $0xc] sm:$0xf]
        %v1513 = vld [vmem:[%s7] sm:$0x1]
        %v1515 = vlaneseq
        %v1516 = vshrl.u32 %v1515, 7
        %v1517 = vsub.s32 0, %v1516
        %v1518 = vrot.slane %v1513, %v1517
        %v1524 = vunpack.c.l.b16 %v1509
        %v1525 = vunpack.c.l.b16 %v1510
        %v1526 = vunpack.c.l.b16 %v1511
        %v1527 = vunpack.c.l.b16 %v1512
        %v1528 = vpack.c.b16 %v1525, %v1524
        %v1529 = vpack.c.b16 %v1527, %v1526
        %1532 = vmatprep.subr.bf16.mxu0 0
        %1533 = vmatpush1.bf16.msra.mxu0 0
        %1534 = vmatprep.subr.bf16.mxu0 0
        %1535 = vmatpush1.bf16.msra.mxu0 0
        %1536 = vmatprep.subr.bf16.mxu0 0
        %1537 = vmatpush1.bf16.msra.mxu0 0
        %1538 = vmatprep.subr.bf16.mxu0 0
        %1539 = vmatpush1.bf16.msra.mxu0 0
        %1540 = vmatprep.subr.bf16.mxu0 0
        %1541 = vmatpush1.bf16.msra.mxu0 0
        %1542 = vmatprep.subr.bf16.mxu0 0
        %1543 = vmatpush1.bf16.msra.mxu0 0
        %1544 = vmatprep.subr.bf16.mxu0 0
        %1545 = vmatpush1.bf16.msra.mxu0 %v1529
        %1546 = vmatprep.subr.bf16.mxu0 0
        %1547 = vmatpush1.bf16.msra.mxu0 %v1528
        %1548 = vmatprep.subr.bf16.mxu0 0
        %1549 = vmatpush2.bf16.msra.mxu0 0
        %1550 = vmatprep.subr.bf16.mxu0 0
        %1551 = vmatpush2.bf16.msra.mxu0 0
        %1552 = vmatprep.subr.bf16.mxu0 0
        %1553 = vmatpush2.bf16.msra.mxu0 0
        %1554 = vmatprep.subr.bf16.mxu0 0
        %1555 = vmatpush2.bf16.msra.mxu0 0
        %1556 = vmatprep.subr.bf16.mxu0 0
        %1557 = vmatpush2.bf16.msra.mxu0 0
        %1558 = vmatprep.subr.bf16.mxu0 0
        %1559 = vmatpush2.bf16.msra.mxu0 0
        %1560 = vmatprep.subr.bf16.mxu0 0
        %1561 = vmatpush2.bf16.msra.mxu0 0
        %1562 = vmatprep.subr.bf16.mxu0 0
        %1563 = vmatpush2.bf16.msra.mxu0 0
        %1564 = vmatprep.mubr.bf16.mxu0 0
        %1565 = vmatmul.mubr.bf16.gmra.mxu0 %v1393
        %v1566 = vpop.f32.mrf.mxu0
        %v1567 = vadd.f32 %v1518, %v1566
        %v1568 = vpop.f32.mrf.mxu0
        %v1569 = vpop.f32.mrf.mxu0
        %v1570 = vpop.f32.mrf.mxu0
        %1571 = vdwg.mxu0
        %v1572 = vpack.c.bf16 %v1567, %v1567
        %v1573 = vlaneseq
        %v1574 = vshrl.u32 %v1573, 7
        %v1575 = vstv %s1368
        %v1576 = vadd.s32 %v1575, %v1574
        %v1577 = vlaneseq
        %v1578 = vand.u32 %v1577, 127
        %v1579 = vld [vmem:[%s842] sm:$0x1]
        %vm1580 = vcmp.gt.s32.totalorder %v1578, %v1576
        %vm1581 = vcmp.gt.s32.totalorder %v1579, 0
        %v1582 = vsel %vm1581, 1, 0
        %v1583 = vlaneseq
        %v1584 = vshrl.u32 %v1583, 7
        %v1585 = vsub.s32 0, %v1584
        %v1586 = vrot.slane %v1582, %v1585
        %vm1587 = vcmp.eq.s32.totalorder %v1586, 1
        %vm1588 = vmor %vm1580, %vm1587
        %v1589 = vsel %vm1588, -1e+18, 0.0
        %v1590 = vld [vmem:[%s845] sm:$0x1]
        %vm1591 = vcmp.gt.s32.totalorder %v1590, 0
        %v1592 = vsel %vm1591, -1e+18, 0.0
        %v1593 = vld [vmem:[#allocation2] sm:$0xf]
        %vm1594 = vcmask 64512
        %v1596 = vsel %vm1594, %v1572, 0
        %v1599 = vsel %vm1594, %v1593, 0
        %1601 = vmatprep.subr.bf16.mxu0 0
        %1602 = vmatpush1.bf16.xpose.msra.mxu0 0
        %1603 = vmatprep.subr.bf16.mxu0 0
        %1604 = vmatpush1.bf16.xpose.msra.mxu0 0
        %1605 = vmatprep.subr.bf16.mxu0 0
        %1606 = vmatpush1.bf16.xpose.msra.mxu0 0
        %1607 = vmatprep.subr.bf16.mxu0 0
        %1608 = vmatpush1.bf16.xpose.msra.mxu0 0
        %1609 = vmatprep.subr.bf16.mxu0 0
        %1610 = vmatpush1.bf16.xpose.msra.mxu0 0
        %1611 = vmatprep.subr.bf16.mxu0 0
        %1612 = vmatpush1.bf16.xpose.msra.mxu0 0
        %1613 = vmatprep.subr.bf16.mxu0 0
        %1614 = vmatpush1.bf16.xpose.msra.mxu0 0
        %1615 = vmatprep.subr.bf16.mxu0 0
        %1616 = vmatpush1.bf16.xpose.msra.mxu0 %v1599
        %1617 = vmatprep.subr.bf16.mxu0 0
        %1618 = vmatpush2.bf16.xpose.msra.mxu0 0
        %1619 = vmatprep.subr.bf16.mxu0 0
        %1620 = vmatpush2.bf16.xpose.msra.mxu0 0
        %1621 = vmatprep.subr.bf16.mxu0 0
        %1622 = vmatpush2.bf16.xpose.msra.mxu0 0
        %1623 = vmatprep.subr.bf16.mxu0 0
        %1624 = vmatpush2.bf16.xpose.msra.mxu0 0
        %1625 = vmatprep.subr.bf16.mxu0 0
        %1626 = vmatpush2.bf16.xpose.msra.mxu0 0
        %1627 = vmatprep.subr.bf16.mxu0 0
        %1628 = vmatpush2.bf16.xpose.msra.mxu0 0
        %1629 = vmatprep.subr.bf16.mxu0 0
        %1630 = vmatpush2.bf16.xpose.msra.mxu0 0
        %1631 = vmatprep.subr.bf16.mxu0 0
        %1632 = vmatpush2.bf16.xpose.msra.mxu0 0
        %1633 = vmatprep.mubr.bf16.mxu0 0
        %1634 = vmatmul.mubr.bf16.gmra.mxu0 %v1596
        %v1635 = vpop.f32.mrf.mxu0
        %v1636 = vadd.f32 %v1589, %v1635
        %v1637 = vpop.f32.mrf.mxu0
        %v1638 = vpop.f32.mrf.mxu0
        %v1639 = vpop.f32.mrf.mxu0
        %1640 = vdwg.mxu0
        %v1641 = vld [vmem:[#allocation4] sm:$0xf]
        %v1642 = vld [vmem:[#allocation4 + $0x4] sm:$0xf]
        %v1643 = vld [vmem:[#allocation4 + $0x8] sm:$0xf]
        %v1644 = vld [vmem:[#allocation4 + $0xc] sm:$0xf]
        %v1645 = vld [vmem:[#allocation4 + $0x10] sm:$0xf]
        %v1646 = vld [vmem:[#allocation4 + $0x14] sm:$0xf]
        %v1647 = vld [vmem:[#allocation4 + $0x18] sm:$0xf]
        %v1648 = vld [vmem:[#allocation4 + $0x1c] sm:$0xf]
        %v1649 = vld [vmem:[#allocation4 + $0x20] sm:$0xf]
        %v1650 = vld [vmem:[#allocation4 + $0x24] sm:$0xf]
        %v1651 = vld [vmem:[#allocation4 + $0x28] sm:$0xf]
        %v1652 = vld [vmem:[#allocation4 + $0x2c] sm:$0xf]
        %v1653 = vld [vmem:[#allocation4 + $0x30] sm:$0xf]
        %v1654 = vld [vmem:[#allocation4 + $0x34] sm:$0xf]
        %v1655 = vld [vmem:[#allocation4 + $0x38] sm:$0xf]
        %v1656 = vld [vmem:[#allocation4 + $0x3c] sm:$0xf]
        %v1658 = vlaneseq
        %v1659 = vshrl.u32 %v1658, 7
        %v1660 = vsub.s32 0, %v1659
        %v1661 = vrot.slane %v1592, %v1660
        %v1679 = vunpack.c.l.b16 %v1641
        %v1680 = vunpack.c.l.b16 %v1642
        %v1681 = vunpack.c.l.b16 %v1643
        %v1682 = vunpack.c.l.b16 %v1644
        %v1683 = vunpack.c.l.b16 %v1645
        %v1684 = vunpack.c.l.b16 %v1646
        %v1685 = vunpack.c.l.b16 %v1647
        %v1686 = vunpack.c.l.b16 %v1648
        %v1687 = vunpack.c.l.b16 %v1649
        %v1688 = vunpack.c.l.b16 %v1650
        %v1689 = vunpack.c.l.b16 %v1651
        %v1690 = vunpack.c.l.b16 %v1652
        %v1691 = vunpack.c.l.b16 %v1653
        %v1692 = vunpack.c.l.b16 %v1654
        %v1693 = vunpack.c.l.b16 %v1655
        %v1694 = vunpack.c.l.b16 %v1656
        %v1695 = vpack.c.b16 %v1680, %v1679
        %v1696 = vpack.c.b16 %v1682, %v1681
        %v1697 = vpack.c.b16 %v1684, %v1683
        %v1698 = vpack.c.b16 %v1686, %v1685
        %v1699 = vpack.c.b16 %v1688, %v1687
        %v1700 = vpack.c.b16 %v1690, %v1689
        %v1701 = vpack.c.b16 %v1692, %v1691
        %v1702 = vpack.c.b16 %v1694, %v1693
        %v1704 = vsel %vm1594, %v1695, 0
        %v1707 = vsel %vm1594, %v1696, 0
        %v1710 = vsel %vm1594, %v1697, 0
        %v1713 = vsel %vm1594, %v1698, 0
        %v1716 = vsel %vm1594, %v1699, 0
        %v1719 = vsel %vm1594, %v1700, 0
        %v1722 = vsel %vm1594, %v1701, 0
        %v1725 = vsel %vm1594, %v1702, 0
        %1727 = vmatprep.subr.bf16.mxu0 0
        %1728 = vmatpush1.bf16.xpose.msra.mxu0 %v1725
        %1729 = vmatprep.subr.bf16.mxu0 0
        %1730 = vmatpush1.bf16.xpose.msra.mxu0 %v1722
        %1731 = vmatprep.subr.bf16.mxu0 0
        %1732 = vmatpush1.bf16.xpose.msra.mxu0 %v1719
        %1733 = vmatprep.subr.bf16.mxu0 0
        %1734 = vmatpush1.bf16.xpose.msra.mxu0 %v1716
        %1735 = vmatprep.subr.bf16.mxu0 0
        %1736 = vmatpush1.bf16.xpose.msra.mxu0 %v1713
        %1737 = vmatprep.subr.bf16.mxu0 0
        %1738 = vmatpush1.bf16.xpose.msra.mxu0 %v1710
        %1739 = vmatprep.subr.bf16.mxu0 0
        %1740 = vmatpush1.bf16.xpose.msra.mxu0 %v1707
        %1741 = vmatprep.subr.bf16.mxu0 0
        %1742 = vmatpush1.bf16.xpose.msra.mxu0 %v1704
        %1743 = vmatprep.subr.bf16.mxu0 0
        %1744 = vmatpush2.bf16.xpose.msra.mxu0 0
        %1745 = vmatprep.subr.bf16.mxu0 0
        %1746 = vmatpush2.bf16.xpose.msra.mxu0 0
        %1747 = vmatprep.subr.bf16.mxu0 0
        %1748 = vmatpush2.bf16.xpose.msra.mxu0 0
        %1749 = vmatprep.subr.bf16.mxu0 0
        %1750 = vmatpush2.bf16.xpose.msra.mxu0 0
        %1751 = vmatprep.subr.bf16.mxu0 0
        %1752 = vmatpush2.bf16.xpose.msra.mxu0 0
        %1753 = vmatprep.subr.bf16.mxu0 0
        %1754 = vmatpush2.bf16.xpose.msra.mxu0 0
        %1755 = vmatprep.subr.bf16.mxu0 0
        %1756 = vmatpush2.bf16.xpose.msra.mxu0 0
        %1757 = vmatprep.subr.bf16.mxu0 0
        %1758 = vmatpush2.bf16.xpose.msra.mxu0 0
        %1759 = vmatprep.mubr.bf16.mxu0 0
        %1760 = vmatmul.mubr.bf16.gmra.mxu0 %v1596
        %v1761 = vpop.f32.mrf.mxu0
        %v1762 = vadd.f32 %v1661, %v1761
        %v1763 = vpop.f32.mrf.mxu0
        %v1764 = vpop.f32.mrf.mxu0
        %v1765 = vpop.f32.mrf.mxu0
        %1766 = vdwg.mxu0
        %1767 = vmax.xlane.f32.xlu0 %v1762
        %v1768 = vpop.xlane.xlu0 %1767
        %v1769 = vsel %vm1594, %v1636, -inf
        %1770 = vmax.xlane.f32.xlu0 %v1769
        %v1771 = vpop.xlane.xlu0 %1770
        %v1772 = vmax.f32 %v1768, %v1771
        %v1773 = vsub.f32 %v1762, %v1772
        %v1774 = vmul.f32 %v1773, 1.442695
        %v1775 = vpow.pop %v1774
        %v1776 = vsub.f32 %v1636, %v1772
        %v1777 = vmul.f32 %v1776, 1.442695
        %v1778 = vpow.pop %v1777
        %1779 = vadd.xlane.f32.xlu0 %v1775
        %v1780 = vpop.xlane.xlu0 %1779
        %v1781 = vsel %vm1594, %v1778, 0.0
        %1782 = vadd.xlane.f32.xlu0 %v1781
        %v1783 = vpop.xlane.xlu0 %1782
        %v1784 = vadd.f32 %v1780, %v1783
        %v1785 = vrcp.pop %v1784
        %v1786 = vmul.f32 %v1775, %v1785
        %v1787 = vmul.f32 %v1778, %v1785
        %1788 = vst [vmem:[%s827] sm:$0xff] %v1786
        %v1789 = vpack.c.bf16 %v1786, %v1786
        %v1790 = vld [vmem:[#allocation5] sm:$0xf]
        %v1791 = vld [vmem:[#allocation5 + $0x4] sm:$0xf]
        %v1792 = vld [vmem:[#allocation5 + $0x8] sm:$0xf]
        %v1793 = vld [vmem:[#allocation5 + $0xc] sm:$0xf]
        %v1794 = vld [vmem:[#allocation5 + $0x10] sm:$0xf]
        %v1795 = vld [vmem:[#allocation5 + $0x14] sm:$0xf]
        %v1796 = vld [vmem:[#allocation5 + $0x18] sm:$0xf]
        %v1797 = vld [vmem:[#allocation5 + $0x1c] sm:$0xf]
        %v1798 = vld [vmem:[#allocation5 + $0x20] sm:$0xf]
        %v1799 = vld [vmem:[#allocation5 + $0x24] sm:$0xf]
        %v1800 = vld [vmem:[#allocation5 + $0x28] sm:$0xf]
        %v1801 = vld [vmem:[#allocation5 + $0x2c] sm:$0xf]
        %v1802 = vld [vmem:[#allocation5 + $0x30] sm:$0xf]
        %v1803 = vld [vmem:[#allocation5 + $0x34] sm:$0xf]
        %v1804 = vld [vmem:[#allocation5 + $0x38] sm:$0xf]
        %v1805 = vld [vmem:[#allocation5 + $0x3c] sm:$0xf]
        %v1806 = vpack.c.bf16 %v1787, %v1787
        %v1807 = vld [vmem:[#allocation3] sm:$0xf]
        %v1809 = vsel %vm1594, %v1806, 0
        %vm1811 = vcmask 1043456
        %v1813 = vsel %vm1811, %v1807, 0
        %1815 = vmatprep.subr.bf16.mxu0 0
        %1816 = vmatpush1.bf16.msra.mxu0 0
        %1817 = vmatprep.subr.bf16.mxu0 0
        %1818 = vmatpush1.bf16.msra.mxu0 0
        %1819 = vmatprep.subr.bf16.mxu0 0
        %1820 = vmatpush1.bf16.msra.mxu0 0
        %1821 = vmatprep.subr.bf16.mxu0 0
        %1822 = vmatpush1.bf16.msra.mxu0 0
        %1823 = vmatprep.subr.bf16.mxu0 0
        %1824 = vmatpush1.bf16.msra.mxu0 0
        %1825 = vmatprep.subr.bf16.mxu0 0
        %1826 = vmatpush1.bf16.msra.mxu0 0
        %1827 = vmatprep.subr.bf16.mxu0 0
        %1828 = vmatpush1.bf16.msra.mxu0 0
        %1829 = vmatprep.subr.bf16.mxu0 0
        %1830 = vmatpush1.bf16.msra.mxu0 %v1813
        %1831 = vmatprep.subr.bf16.mxu0 0
        %1832 = vmatpush2.bf16.msra.mxu0 0
        %1833 = vmatprep.subr.bf16.mxu0 0
        %1834 = vmatpush2.bf16.msra.mxu0 0
        %1835 = vmatprep.subr.bf16.mxu0 0
        %1836 = vmatpush2.bf16.msra.mxu0 0
        %1837 = vmatprep.subr.bf16.mxu0 0
        %1838 = vmatpush2.bf16.msra.mxu0 0
        %1839 = vmatprep.subr.bf16.mxu0 0
        %1840 = vmatpush2.bf16.msra.mxu0 0
        %1841 = vmatprep.subr.bf16.mxu0 0
        %1842 = vmatpush2.bf16.msra.mxu0 0
        %1843 = vmatprep.subr.bf16.mxu0 0
        %1844 = vmatpush2.bf16.msra.mxu0 0
        %1845 = vmatprep.subr.bf16.mxu0 0
        %1846 = vmatpush2.bf16.msra.mxu0 0
        %1847 = vmatprep.mubr.bf16.mxu0 0
        %1848 = vmatmul.mubr.bf16.gmra.mxu0 %v1809
        %v1849 = vpop.f32.mrf.mxu0
        %v1850 = vadd.f32 0.0, %v1849
        %v1851 = vpop.f32.mrf.mxu0
        %v1852 = vpop.f32.mrf.mxu0
        %v1853 = vpop.f32.mrf.mxu0
        %1854 = vdwg.mxu0
        %v1871 = vunpack.c.l.b16 %v1790
        %v1872 = vunpack.c.l.b16 %v1791
        %v1873 = vunpack.c.l.b16 %v1792
        %v1874 = vunpack.c.l.b16 %v1793
        %v1875 = vunpack.c.l.b16 %v1794
        %v1876 = vunpack.c.l.b16 %v1795
        %v1877 = vunpack.c.l.b16 %v1796
        %v1878 = vunpack.c.l.b16 %v1797
        %v1879 = vunpack.c.l.b16 %v1798
        %v1880 = vunpack.c.l.b16 %v1799
        %v1881 = vunpack.c.l.b16 %v1800
        %v1882 = vunpack.c.l.b16 %v1801
        %v1883 = vunpack.c.l.b16 %v1802
        %v1884 = vunpack.c.l.b16 %v1803
        %v1885 = vunpack.c.l.b16 %v1804
        %v1886 = vunpack.c.l.b16 %v1805
        %v1887 = vpack.c.b16 %v1872, %v1871
        %v1888 = vpack.c.b16 %v1874, %v1873
        %v1889 = vpack.c.b16 %v1876, %v1875
        %v1890 = vpack.c.b16 %v1878, %v1877
        %v1891 = vpack.c.b16 %v1880, %v1879
        %v1892 = vpack.c.b16 %v1882, %v1881
        %v1893 = vpack.c.b16 %v1884, %v1883
        %v1894 = vpack.c.b16 %v1886, %v1885
        %1903 = vmatprep.subr.bf16.mxu0 0
        %1904 = vmatpush1.bf16.msra.mxu0 %v1894
        %1905 = vmatprep.subr.bf16.mxu0 0
        %1906 = vmatpush1.bf16.msra.mxu0 %v1893
        %1907 = vmatprep.subr.bf16.mxu0 0
        %1908 = vmatpush1.bf16.msra.mxu0 %v1892
        %1909 = vmatprep.subr.bf16.mxu0 0
        %1910 = vmatpush1.bf16.msra.mxu0 %v1891
        %1911 = vmatprep.subr.bf16.mxu0 0
        %1912 = vmatpush1.bf16.msra.mxu0 %v1890
        %1913 = vmatprep.subr.bf16.mxu0 0
        %1914 = vmatpush1.bf16.msra.mxu0 %v1889
        %1915 = vmatprep.subr.bf16.mxu0 0
        %1916 = vmatpush1.bf16.msra.mxu0 %v1888
        %1917 = vmatprep.subr.bf16.mxu0 0
        %1918 = vmatpush1.bf16.msra.mxu0 %v1887
        %1919 = vmatprep.subr.bf16.mxu0 0
        %1920 = vmatpush2.bf16.msra.mxu0 0
        %1921 = vmatprep.subr.bf16.mxu0 0
        %1922 = vmatpush2.bf16.msra.mxu0 0
        %1923 = vmatprep.subr.bf16.mxu0 0
        %1924 = vmatpush2.bf16.msra.mxu0 0
        %1925 = vmatprep.subr.bf16.mxu0 0
        %1926 = vmatpush2.bf16.msra.mxu0 0
        %1927 = vmatprep.subr.bf16.mxu0 0
        %1928 = vmatpush2.bf16.msra.mxu0 0
        %1929 = vmatprep.subr.bf16.mxu0 0
        %1930 = vmatpush2.bf16.msra.mxu0 0
        %1931 = vmatprep.subr.bf16.mxu0 0
        %1932 = vmatpush2.bf16.msra.mxu0 0
        %1933 = vmatprep.subr.bf16.mxu0 0
        %1934 = vmatpush2.bf16.msra.mxu0 0
        %1935 = vmatprep.mubr.bf16.mxu0 0
        %1936 = vmatmul.mubr.bf16.gmra.mxu0 %v1789
        %v1937 = vpop.f32.mrf.mxu0
        %v1938 = vadd.f32 %v1850, %v1937
        %v1939 = vpop.f32.mrf.mxu0
        %v1940 = vpop.f32.mrf.mxu0
        %v1941 = vpop.f32.mrf.mxu0
        %1942 = vdwg.mxu0
        %1943 = vst.msk [vmem:[#allocation6] sm:$0xff] %vm1594, %v1938
        %v1944 = vld [vmem:[#allocation2] sm:$0xf]
        %1946 = vrot.lane.b32.xlu0 %v1572, 120
        %v1947 = vpop.permute.xlu0 %1946
        %v1949 = vunpack.c.l.b16 %v1944
        %v1950 = vpack.c.b16 %v1949, %v1949
        %1951 = vrot.lane.b32.xlu0 %v1950, 120
        %v1952 = vpop.permute.xlu0 %1951
        %v1954 = vsel %vm1594, %v1947, 0
        %v1957 = vsel %vm1594, %v1952, 0
        %1959 = vmatprep.subr.bf16.mxu0 0
        %1960 = vmatpush1.bf16.xpose.msra.mxu0 0
        %1961 = vmatprep.subr.bf16.mxu0 0
        %1962 = vmatpush1.bf16.xpose.msra.mxu0 0
        %1963 = vmatprep.subr.bf16.mxu0 0
        %1964 = vmatpush1.bf16.xpose.msra.mxu0 0
        %1965 = vmatprep.subr.bf16.mxu0 0
        %1966 = vmatpush1.bf16.xpose.msra.mxu0 0
        %1967 = vmatprep.subr.bf16.mxu0 0
        %1968 = vmatpush1.bf16.xpose.msra.mxu0 0
        %1969 = vmatprep.subr.bf16.mxu0 0
        %1970 = vmatpush1.bf16.xpose.msra.mxu0 0
        %1971 = vmatprep.subr.bf16.mxu0 0
        %1972 = vmatpush1.bf16.xpose.msra.mxu0 0
        %1973 = vmatprep.subr.bf16.mxu0 0
        %1974 = vmatpush1.bf16.xpose.msra.mxu0 %v1957
        %1975 = vmatprep.subr.bf16.mxu0 0
        %1976 = vmatpush2.bf16.xpose.msra.mxu0 0
        %1977 = vmatprep.subr.bf16.mxu0 0
        %1978 = vmatpush2.bf16.xpose.msra.mxu0 0
        %1979 = vmatprep.subr.bf16.mxu0 0
        %1980 = vmatpush2.bf16.xpose.msra.mxu0 0
        %1981 = vmatprep.subr.bf16.mxu0 0
        %1982 = vmatpush2.bf16.xpose.msra.mxu0 0
        %1983 = vmatprep.subr.bf16.mxu0 0
        %1984 = vmatpush2.bf16.xpose.msra.mxu0 0
        %1985 = vmatprep.subr.bf16.mxu0 0
        %1986 = vmatpush2.bf16.xpose.msra.mxu0 0
        %1987 = vmatprep.subr.bf16.mxu0 0
        %1988 = vmatpush2.bf16.xpose.msra.mxu0 0
        %1989 = vmatprep.subr.bf16.mxu0 0
        %1990 = vmatpush2.bf16.xpose.msra.mxu0 0
        %1991 = vmatprep.mubr.bf16.mxu0 0
        %1992 = vmatmul.mubr.bf16.gmra.mxu0 %v1954
        %v1993 = vpop.f32.mrf.mxu0
        %v1994 = vadd.f32 %v1589, %v1993
        %v1995 = vpop.f32.mrf.mxu0
        %v1996 = vpop.f32.mrf.mxu0
        %v1997 = vpop.f32.mrf.mxu0
        %1998 = vdwg.mxu0
        %v1999 = vld [vmem:[#allocation4] sm:$0xf]
        %v2000 = vld [vmem:[#allocation4 + $0x4] sm:$0xf]
        %v2001 = vld [vmem:[#allocation4 + $0x8] sm:$0xf]
        %v2002 = vld [vmem:[#allocation4 + $0xc] sm:$0xf]
        %v2003 = vld [vmem:[#allocation4 + $0x10] sm:$0xf]
        %v2004 = vld [vmem:[#allocation4 + $0x14] sm:$0xf]
        %v2005 = vld [vmem:[#allocation4 + $0x18] sm:$0xf]
        %v2006 = vld [vmem:[#allocation4 + $0x1c] sm:$0xf]
        %v2007 = vld [vmem:[#allocation4 + $0x20] sm:$0xf]
        %v2008 = vld [vmem:[#allocation4 + $0x24] sm:$0xf]
        %v2009 = vld [vmem:[#allocation4 + $0x28] sm:$0xf]
        %v2010 = vld [vmem:[#allocation4 + $0x2c] sm:$0xf]
        %v2011 = vld [vmem:[#allocation4 + $0x30] sm:$0xf]
        %v2012 = vld [vmem:[#allocation4 + $0x34] sm:$0xf]
        %v2013 = vld [vmem:[#allocation4 + $0x38] sm:$0xf]
        %v2014 = vld [vmem:[#allocation4 + $0x3c] sm:$0xf]
        %v2031 = vunpack.c.l.b16 %v1999
        %v2032 = vunpack.c.l.b16 %v2000
        %v2033 = vunpack.c.l.b16 %v2001
        %v2034 = vunpack.c.l.b16 %v2002
        %v2035 = vunpack.c.l.b16 %v2003
        %v2036 = vunpack.c.l.b16 %v2004
        %v2037 = vunpack.c.l.b16 %v2005
        %v2038 = vunpack.c.l.b16 %v2006
        %v2039 = vunpack.c.l.b16 %v2007
        %v2040 = vunpack.c.l.b16 %v2008
        %v2041 = vunpack.c.l.b16 %v2009
        %v2042 = vunpack.c.l.b16 %v2010
        %v2043 = vunpack.c.l.b16 %v2011
        %v2044 = vunpack.c.l.b16 %v2012
        %v2045 = vunpack.c.l.b16 %v2013
        %v2046 = vunpack.c.l.b16 %v2014
        %v2047 = vpack.c.b16 %v2032, %v2031
        %v2048 = vpack.c.b16 %v2034, %v2033
        %v2049 = vpack.c.b16 %v2036, %v2035
        %v2050 = vpack.c.b16 %v2038, %v2037
        %v2051 = vpack.c.b16 %v2040, %v2039
        %v2052 = vpack.c.b16 %v2042, %v2041
        %v2053 = vpack.c.b16 %v2044, %v2043
        %v2054 = vpack.c.b16 %v2046, %v2045
        %2055 = vrot.lane.b32.xlu0 %v2047, 120
        %v2056 = vpop.permute.xlu0 %2055
        %2057 = vrot.lane.b32.xlu0 %v2048, 120
        %v2058 = vpop.permute.xlu0 %2057
        %2059 = vrot.lane.b32.xlu0 %v2049, 120
        %v2060 = vpop.permute.xlu0 %2059
        %2061 = vrot.lane.b32.xlu0 %v2050, 120
        %v2062 = vpop.permute.xlu0 %2061
        %2063 = vrot.lane.b32.xlu0 %v2051, 120
        %v2064 = vpop.permute.xlu0 %2063
        %2065 = vrot.lane.b32.xlu0 %v2052, 120
        %v2066 = vpop.permute.xlu0 %2065
        %2067 = vrot.lane.b32.xlu0 %v2053, 120
        %v2068 = vpop.permute.xlu0 %2067
        %2069 = vrot.lane.b32.xlu0 %v2054, 120
        %v2070 = vpop.permute.xlu0 %2069
        %v2072 = vsel %vm1594, %v2056, 0
        %v2075 = vsel %vm1594, %v2058, 0
        %v2078 = vsel %vm1594, %v2060, 0
        %v2081 = vsel %vm1594, %v2062, 0
        %v2084 = vsel %vm1594, %v2064, 0
        %v2087 = vsel %vm1594, %v2066, 0
        %v2090 = vsel %vm1594, %v2068, 0
        %v2093 = vsel %vm1594, %v2070, 0
        %2095 = vmatprep.subr.bf16.mxu0 0
        %2096 = vmatpush1.bf16.xpose.msra.mxu0 %v2093
        %2097 = vmatprep.subr.bf16.mxu0 0
        %2098 = vmatpush1.bf16.xpose.msra.mxu0 %v2090
        %2099 = vmatprep.subr.bf16.mxu0 0
        %2100 = vmatpush1.bf16.xpose.msra.mxu0 %v2087
        %2101 = vmatprep.subr.bf16.mxu0 0
        %2102 = vmatpush1.bf16.xpose.msra.mxu0 %v2084
        %2103 = vmatprep.subr.bf16.mxu0 0
        %2104 = vmatpush1.bf16.xpose.msra.mxu0 %v2081
        %2105 = vmatprep.subr.bf16.mxu0 0
        %2106 = vmatpush1.bf16.xpose.msra.mxu0 %v2078
        %2107 = vmatprep.subr.bf16.mxu0 0
        %2108 = vmatpush1.bf16.xpose.msra.mxu0 %v2075
        %2109 = vmatprep.subr.bf16.mxu0 0
        %2110 = vmatpush1.bf16.xpose.msra.mxu0 %v2072
        %2111 = vmatprep.subr.bf16.mxu0 0
        %2112 = vmatpush2.bf16.xpose.msra.mxu0 0
        %2113 = vmatprep.subr.bf16.mxu0 0
        %2114 = vmatpush2.bf16.xpose.msra.mxu0 0
        %2115 = vmatprep.subr.bf16.mxu0 0
        %2116 = vmatpush2.bf16.xpose.msra.mxu0 0
        %2117 = vmatprep.subr.bf16.mxu0 0
        %2118 = vmatpush2.bf16.xpose.msra.mxu0 0
        %2119 = vmatprep.subr.bf16.mxu0 0
        %2120 = vmatpush2.bf16.xpose.msra.mxu0 0
        %2121 = vmatprep.subr.bf16.mxu0 0
        %2122 = vmatpush2.bf16.xpose.msra.mxu0 0
        %2123 = vmatprep.subr.bf16.mxu0 0
        %2124 = vmatpush2.bf16.xpose.msra.mxu0 0
        %2125 = vmatprep.subr.bf16.mxu0 0
        %2126 = vmatpush2.bf16.xpose.msra.mxu0 0
        %2127 = vmatprep.mubr.bf16.mxu0 0
        %2128 = vmatmul.mubr.bf16.gmra.mxu0 %v1954
        %v2129 = vpop.f32.mrf.mxu0
        %v2130 = vadd.f32 %v1661, %v2129
        %v2131 = vpop.f32.mrf.mxu0
        %v2132 = vpop.f32.mrf.mxu0
        %v2133 = vpop.f32.mrf.mxu0
        %2134 = vdwg.mxu0
        %2135 = vmax.xlane.f32.xlu0 %v2130
        %v2136 = vpop.xlane.xlu0 %2135
        %v2137 = vsel %vm1594, %v1994, -inf
        %2138 = vmax.xlane.f32.xlu0 %v2137
        %v2139 = vpop.xlane.xlu0 %2138
        %v2140 = vmax.f32 %v2136, %v2139
        %v2141 = vsub.f32 %v2130, %v2140
        %v2142 = vmul.f32 %v2141, 1.442695
        %v2143 = vpow.pop %v2142
        %v2144 = vsub.f32 %v1994, %v2140
        %v2145 = vmul.f32 %v2144, 1.442695
        %v2146 = vpow.pop %v2145
        %2147 = vadd.xlane.f32.xlu0 %v2143
        %v2148 = vpop.xlane.xlu0 %2147
        %v2149 = vsel %vm1594, %v2146, 0.0
        %2150 = vadd.xlane.f32.xlu0 %v2149
        %v2151 = vpop.xlane.xlu0 %2150
        %v2152 = vadd.f32 %v2148, %v2151
        %v2153 = vrcp.pop %v2152
        %v2154 = vmul.f32 %v2143, %v2153
        %v2155 = vmul.f32 %v2146, %v2153
        %v2156 = vpack.c.bf16 %v2154, %v2154
        %v2157 = vld [vmem:[#allocation5] sm:$0xf]
        %v2158 = vld [vmem:[#allocation5 + $0x4] sm:$0xf]
        %v2159 = vld [vmem:[#allocation5 + $0x8] sm:$0xf]
        %v2160 = vld [vmem:[#allocation5 + $0xc] sm:$0xf]
        %v2161 = vld [vmem:[#allocation5 + $0x10] sm:$0xf]
        %v2162 = vld [vmem:[#allocation5 + $0x14] sm:$0xf]
        %v2163 = vld [vmem:[#allocation5 + $0x18] sm:$0xf]
        %v2164 = vld [vmem:[#allocation5 + $0x1c] sm:$0xf]
        %v2165 = vld [vmem:[#allocation5 + $0x20] sm:$0xf]
        %v2166 = vld [vmem:[#allocation5 + $0x24] sm:$0xf]
        %v2167 = vld [vmem:[#allocation5 + $0x28] sm:$0xf]
        %v2168 = vld [vmem:[#allocation5 + $0x2c] sm:$0xf]
        %v2169 = vld [vmem:[#allocation5 + $0x30] sm:$0xf]
        %v2170 = vld [vmem:[#allocation5 + $0x34] sm:$0xf]
        %v2171 = vld [vmem:[#allocation5 + $0x38] sm:$0xf]
        %v2172 = vld [vmem:[#allocation5 + $0x3c] sm:$0xf]
        %v2173 = vpack.c.bf16 %v2155, %v2155
        %v2174 = vld [vmem:[#allocation3] sm:$0xf]
        %v2176 = vunpack.c.l.b16 %v2174
        %v2177 = vpack.c.b16 %v2176, %v2176
        %2178 = vrot.lane.b32.xlu0 %v2177, 120
        %v2179 = vpop.permute.xlu0 %2178
        %v2181 = vsel %vm1594, %v2173, 0
        %v2184 = vsel %vm1811, %v2179, 0
        %2186 = vmatprep.subr.bf16.mxu0 0
        %2187 = vmatpush1.bf16.msra.mxu0 0
        %2188 = vmatprep.subr.bf16.mxu0 0
        %2189 = vmatpush1.bf16.msra.mxu0 0
        %2190 = vmatprep.subr.bf16.mxu0 0
        %2191 = vmatpush1.bf16.msra.mxu0 0
        %2192 = vmatprep.subr.bf16.mxu0 0
        %2193 = vmatpush1.bf16.msra.mxu0 0
        %2194 = vmatprep.subr.bf16.mxu0 0
        %2195 = vmatpush1.bf16.msra.mxu0 0
        %2196 = vmatprep.subr.bf16.mxu0 0
        %2197 = vmatpush1.bf16.msra.mxu0 0
        %2198 = vmatprep.subr.bf16.mxu0 0
        %2199 = vmatpush1.bf16.msra.mxu0 0
        %2200 = vmatprep.subr.bf16.mxu0 0
        %2201 = vmatpush1.bf16.msra.mxu0 %v2184
        %2202 = vmatprep.subr.bf16.mxu0 0
        %2203 = vmatpush2.bf16.msra.mxu0 0
        %2204 = vmatprep.subr.bf16.mxu0 0
        %2205 = vmatpush2.bf16.msra.mxu0 0
        %2206 = vmatprep.subr.bf16.mxu0 0
        %2207 = vmatpush2.bf16.msra.mxu0 0
        %2208 = vmatprep.subr.bf16.mxu0 0
        %2209 = vmatpush2.bf16.msra.mxu0 0
        %2210 = vmatprep.subr.bf16.mxu0 0
        %2211 = vmatpush2.bf16.msra.mxu0 0
        %2212 = vmatprep.subr.bf16.mxu0 0
        %2213 = vmatpush2.bf16.msra.mxu0 0
        %2214 = vmatprep.subr.bf16.mxu0 0
        %2215 = vmatpush2.bf16.msra.mxu0 0
        %2216 = vmatprep.subr.bf16.mxu0 0
        %2217 = vmatpush2.bf16.msra.mxu0 0
        %2218 = vmatprep.mubr.bf16.mxu0 0
        %2219 = vmatmul.mubr.bf16.gmra.mxu0 %v2181
        %v2220 = vpop.f32.mrf.mxu0
        %v2221 = vadd.f32 0.0, %v2220
        %v2222 = vpop.f32.mrf.mxu0
        %v2223 = vpop.f32.mrf.mxu0
        %v2224 = vpop.f32.mrf.mxu0
        %2225 = vdwg.mxu0
        %v2242 = vunpack.c.l.b16 %v2157
        %v2243 = vunpack.c.l.b16 %v2158
        %v2244 = vunpack.c.l.b16 %v2159
        %v2245 = vunpack.c.l.b16 %v2160
        %v2246 = vunpack.c.l.b16 %v2161
        %v2247 = vunpack.c.l.b16 %v2162
        %v2248 = vunpack.c.l.b16 %v2163
        %v2249 = vunpack.c.l.b16 %v2164
        %v2250 = vunpack.c.l.b16 %v2165
        %v2251 = vunpack.c.l.b16 %v2166
        %v2252 = vunpack.c.l.b16 %v2167
        %v2253 = vunpack.c.l.b16 %v2168
        %v2254 = vunpack.c.l.b16 %v2169
        %v2255 = vunpack.c.l.b16 %v2170
        %v2256 = vunpack.c.l.b16 %v2171
        %v2257 = vunpack.c.l.b16 %v2172
        %v2258 = vpack.c.b16 %v2243, %v2242
        %v2259 = vpack.c.b16 %v2245, %v2244
        %v2260 = vpack.c.b16 %v2247, %v2246
        %v2261 = vpack.c.b16 %v2249, %v2248
        %v2262 = vpack.c.b16 %v2251, %v2250
        %v2263 = vpack.c.b16 %v2253, %v2252
        %v2264 = vpack.c.b16 %v2255, %v2254
        %v2265 = vpack.c.b16 %v2257, %v2256
        %2266 = vrot.lane.b32.xlu0 %v2258, 120
        %v2267 = vpop.permute.xlu0 %2266
        %2268 = vrot.lane.b32.xlu0 %v2259, 120
        %v2269 = vpop.permute.xlu0 %2268
        %2270 = vrot.lane.b32.xlu0 %v2260, 120
        %v2271 = vpop.permute.xlu0 %2270
        %2272 = vrot.lane.b32.xlu0 %v2261, 120
        %v2273 = vpop.permute.xlu0 %2272
        %2274 = vrot.lane.b32.xlu0 %v2262, 120
        %v2275 = vpop.permute.xlu0 %2274
        %2276 = vrot.lane.b32.xlu0 %v2263, 120
        %v2277 = vpop.permute.xlu0 %2276
        %2278 = vrot.lane.b32.xlu0 %v2264, 120
        %v2279 = vpop.permute.xlu0 %2278
        %2280 = vrot.lane.b32.xlu0 %v2265, 120
        %v2281 = vpop.permute.xlu0 %2280
        %2290 = vmatprep.subr.bf16.mxu0 0
        %2291 = vmatpush1.bf16.msra.mxu0 %v2281
        %2292 = vmatprep.subr.bf16.mxu0 0
        %2293 = vmatpush1.bf16.msra.mxu0 %v2279
        %2294 = vmatprep.subr.bf16.mxu0 0
        %2295 = vmatpush1.bf16.msra.mxu0 %v2277
        %2296 = vmatprep.subr.bf16.mxu0 0
        %2297 = vmatpush1.bf16.msra.mxu0 %v2275
        %2298 = vmatprep.subr.bf16.mxu0 0
        %2299 = vmatpush1.bf16.msra.mxu0 %v2273
        %2300 = vmatprep.subr.bf16.mxu0 0
        %2301 = vmatpush1.bf16.msra.mxu0 %v2271
        %2302 = vmatprep.subr.bf16.mxu0 0
        %2303 = vmatpush1.bf16.msra.mxu0 %v2269
        %2304 = vmatprep.subr.bf16.mxu0 0
        %2305 = vmatpush1.bf16.msra.mxu0 %v2267
        %2306 = vmatprep.subr.bf16.mxu0 0
        %2307 = vmatpush2.bf16.msra.mxu0 0
        %2308 = vmatprep.subr.bf16.mxu0 0
        %2309 = vmatpush2.bf16.msra.mxu0 0
        %2310 = vmatprep.subr.bf16.mxu0 0
        %2311 = vmatpush2.bf16.msra.mxu0 0
        %2312 = vmatprep.subr.bf16.mxu0 0
        %2313 = vmatpush2.bf16.msra.mxu0 0
        %2314 = vmatprep.subr.bf16.mxu0 0
        %2315 = vmatpush2.bf16.msra.mxu0 0
        %2316 = vmatprep.subr.bf16.mxu0 0
        %2317 = vmatpush2.bf16.msra.mxu0 0
        %2318 = vmatprep.subr.bf16.mxu0 0
        %2319 = vmatpush2.bf16.msra.mxu0 0
        %2320 = vmatprep.subr.bf16.mxu0 0
        %2321 = vmatpush2.bf16.msra.mxu0 0
        %2322 = vmatprep.mubr.bf16.mxu0 0
        %2323 = vmatmul.mubr.bf16.gmra.mxu0 %v2156
        %v2324 = vpop.f32.mrf.mxu0
        %v2325 = vadd.f32 %v2221, %v2324
        %v2326 = vpop.f32.mrf.mxu0
        %v2327 = vpop.f32.mrf.mxu0
        %v2328 = vpop.f32.mrf.mxu0
        %2329 = vdwg.mxu0
        %2331 = vrot.lane.b32.xlu0 %v2325, 8
        %v2332 = vpop.permute.xlu0 %2331
        %vm2334 = vcmask 130112
        %2335 = vst.msk [vmem:[#allocation6] sm:$0xff] %vm2334, %v2332
        %v2336 = vld [vmem:[#allocation2] sm:$0xf]
        %2337 = vrot.lane.b32.xlu0 %v1572, 112
        %v2338 = vpop.permute.xlu0 %2337
        %v2340 = vunpack.c.l.b16 %v2336
        %v2341 = vpack.c.b16 %v2340, %v2340
        %2342 = vrot.lane.b32.xlu0 %v2341, 112
        %v2343 = vpop.permute.xlu0 %2342
        %v2345 = vsel %vm1594, %v2338, 0
        %v2348 = vsel %vm1594, %v2343, 0
        %2350 = vmatprep.subr.bf16.mxu0 0
        %2351 = vmatpush1.bf16.xpose.msra.mxu0 0
        %2352 = vmatprep.subr.bf16.mxu0 0
        %2353 = vmatpush1.bf16.xpose.msra.mxu0 0
        %2354 = vmatprep.subr.bf16.mxu0 0
        %2355 = vmatpush1.bf16.xpose.msra.mxu0 0
        %2356 = vmatprep.subr.bf16.mxu0 0
        %2357 = vmatpush1.bf16.xpose.msra.mxu0 0
        %2358 = vmatprep.subr.bf16.mxu0 0
        %2359 = vmatpush1.bf16.xpose.msra.mxu0 0
        %2360 = vmatprep.subr.bf16.mxu0 0
        %2361 = vmatpush1.bf16.xpose.msra.mxu0 0
        %2362 = vmatprep.subr.bf16.mxu0 0
        %2363 = vmatpush1.bf16.xpose.msra.mxu0 0
        %2364 = vmatprep.subr.bf16.mxu0 0
        %2365 = vmatpush1.bf16.xpose.msra.mxu0 %v2348
        %2366 = vmatprep.subr.bf16.mxu0 0
        %2367 = vmatpush2.bf16.xpose.msra.mxu0 0
        %2368 = vmatprep.subr.bf16.mxu0 0
        %2369 = vmatpush2.bf16.xpose.msra.mxu0 0
        %2370 = vmatprep.subr.bf16.mxu0 0
        %2371 = vmatpush2.bf16.xpose.msra.mxu0 0
        %2372 = vmatprep.subr.bf16.mxu0 0
        %2373 = vmatpush2.bf16.xpose.msra.mxu0 0
        %2374 = vmatprep.subr.bf16.mxu0 0
        %2375 = vmatpush2.bf16.xpose.msra.mxu0 0
        %2376 = vmatprep.subr.bf16.mxu0 0
        %2377 = vmatpush2.bf16.xpose.msra.mxu0 0
        %2378 = vmatprep.subr.bf16.mxu0 0
        %2379 = vmatpush2.bf16.xpose.msra.mxu0 0
        %2380 = vmatprep.subr.bf16.mxu0 0
        %2381 = vmatpush2.bf16.xpose.msra.mxu0 0
        %2382 = vmatprep.mubr.bf16.mxu0 0
        %2383 = vmatmul.mubr.bf16.gmra.mxu0 %v2345
        %v2384 = vpop.f32.mrf.mxu0
        %v2385 = vadd.f32 %v1589, %v2384
        %v2386 = vpop.f32.mrf.mxu0
        %v2387 = vpop.f32.mrf.mxu0
        %v2388 = vpop.f32.mrf.mxu0
        %2389 = vdwg.mxu0
        %v2390 = vld [vmem:[#allocation4] sm:$0xf]
        %v2391 = vld [vmem:[#allocation4 + $0x4] sm:$0xf]
        %v2392 = vld [vmem:[#allocation4 + $0x8] sm:$0xf]
        %v2393 = vld [vmem:[#allocation4 + $0xc] sm:$0xf]
        %v2394 = vld [vmem:[#allocation4 + $0x10] sm:$0xf]
        %v2395 = vld [vmem:[#allocation4 + $0x14] sm:$0xf]
        %v2396 = vld [vmem:[#allocation4 + $0x18] sm:$0xf]
        %v2397 = vld [vmem:[#allocation4 + $0x1c] sm:$0xf]
        %v2398 = vld [vmem:[#allocation4 + $0x20] sm:$0xf]
        %v2399 = vld [vmem:[#allocation4 + $0x24] sm:$0xf]
        %v2400 = vld [vmem:[#allocation4 + $0x28] sm:$0xf]
        %v2401 = vld [vmem:[#allocation4 + $0x2c] sm:$0xf]
        %v2402 = vld [vmem:[#allocation4 + $0x30] sm:$0xf]
        %v2403 = vld [vmem:[#allocation4 + $0x34] sm:$0xf]
        %v2404 = vld [vmem:[#allocation4 + $0x38] sm:$0xf]
        %v2405 = vld [vmem:[#allocation4 + $0x3c] sm:$0xf]
        %v2422 = vunpack.c.l.b16 %v2390
        %v2423 = vunpack.c.l.b16 %v2391
        %v2424 = vunpack.c.l.b16 %v2392
        %v2425 = vunpack.c.l.b16 %v2393
        %v2426 = vunpack.c.l.b16 %v2394
        %v2427 = vunpack.c.l.b16 %v2395
        %v2428 = vunpack.c.l.b16 %v2396
        %v2429 = vunpack.c.l.b16 %v2397
        %v2430 = vunpack.c.l.b16 %v2398
        %v2431 = vunpack.c.l.b16 %v2399
        %v2432 = vunpack.c.l.b16 %v2400
        %v2433 = vunpack.c.l.b16 %v2401
        %v2434 = vunpack.c.l.b16 %v2402
        %v2435 = vunpack.c.l.b16 %v2403
        %v2436 = vunpack.c.l.b16 %v2404
        %v2437 = vunpack.c.l.b16 %v2405
        %v2438 = vpack.c.b16 %v2423, %v2422
        %v2439 = vpack.c.b16 %v2425, %v2424
        %v2440 = vpack.c.b16 %v2427, %v2426
        %v2441 = vpack.c.b16 %v2429, %v2428
        %v2442 = vpack.c.b16 %v2431, %v2430
        %v2443 = vpack.c.b16 %v2433, %v2432
        %v2444 = vpack.c.b16 %v2435, %v2434
        %v2445 = vpack.c.b16 %v2437, %v2436
        %2446 = vrot.lane.b32.xlu0 %v2438, 112
        %v2447 = vpop.permute.xlu0 %2446
        %2448 = vrot.lane.b32.xlu0 %v2439, 112
        %v2449 = vpop.permute.xlu0 %2448
        %2450 = vrot.lane.b32.xlu0 %v2440, 112
        %v2451 = vpop.permute.xlu0 %2450
        %2452 = vrot.lane.b32.xlu0 %v2441, 112
        %v2453 = vpop.permute.xlu0 %2452
        %2454 = vrot.lane.b32.xlu0 %v2442, 112
        %v2455 = vpop.permute.xlu0 %2454
        %2456 = vrot.lane.b32.xlu0 %v2443, 112
        %v2457 = vpop.permute.xlu0 %2456
        %2458 = vrot.lane.b32.xlu0 %v2444, 112
        %v2459 = vpop.permute.xlu0 %2458
        %2460 = vrot.lane.b32.xlu0 %v2445, 112
        %v2461 = vpop.permute.xlu0 %2460
        %v2463 = vsel %vm1594, %v2447, 0
        %v2466 = vsel %vm1594, %v2449, 0
        %v2469 = vsel %vm1594, %v2451, 0
        %v2472 = vsel %vm1594, %v2453, 0
        %v2475 = vsel %vm1594, %v2455, 0
        %v2478 = vsel %vm1594, %v2457, 0
        %v2481 = vsel %vm1594, %v2459, 0
        %v2484 = vsel %vm1594, %v2461, 0
        %2486 = vmatprep.subr.bf16.mxu0 0
        %2487 = vmatpush1.bf16.xpose.msra.mxu0 %v2484
        %2488 = vmatprep.subr.bf16.mxu0 0
        %2489 = vmatpush1.bf16.xpose.msra.mxu0 %v2481
        %2490 = vmatprep.subr.bf16.mxu0 0
        %2491 = vmatpush1.bf16.xpose.msra.mxu0 %v2478
        %2492 = vmatprep.subr.bf16.mxu0 0
        %2493 = vmatpush1.bf16.xpose.msra.mxu0 %v2475
        %2494 = vmatprep.subr.bf16.mxu0 0
        %2495 = vmatpush1.bf16.xpose.msra.mxu0 %v2472
        %2496 = vmatprep.subr.bf16.mxu0 0
        %2497 = vmatpush1.bf16.xpose.msra.mxu0 %v2469
        %2498 = vmatprep.subr.bf16.mxu0 0
        %2499 = vmatpush1.bf16.xpose.msra.mxu0 %v2466
        %2500 = vmatprep.subr.bf16.mxu0 0
        %2501 = vmatpush1.bf16.xpose.msra.mxu0 %v2463
        %2502 = vmatprep.subr.bf16.mxu0 0
        %2503 = vmatpush2.bf16.xpose.msra.mxu0 0
        %2504 = vmatprep.subr.bf16.mxu0 0
        %2505 = vmatpush2.bf16.xpose.msra.mxu0 0
        %2506 = vmatprep.subr.bf16.mxu0 0
        %2507 = vmatpush2.bf16.xpose.msra.mxu0 0
        %2508 = vmatprep.subr.bf16.mxu0 0
        %2509 = vmatpush2.bf16.xpose.msra.mxu0 0
        %2510 = vmatprep.subr.bf16.mxu0 0
        %2511 = vmatpush2.bf16.xpose.msra.mxu0 0
        %2512 = vmatprep.subr.bf16.mxu0 0
        %2513 = vmatpush2.bf16.xpose.msra.mxu0 0
        %2514 = vmatprep.subr.bf16.mxu0 0
        %2515 = vmatpush2.bf16.xpose.msra.mxu0 0
        %2516 = vmatprep.subr.bf16.mxu0 0
        %2517 = vmatpush2.bf16.xpose.msra.mxu0 0
        %2518 = vmatprep.mubr.bf16.mxu0 0
        %2519 = vmatmul.mubr.bf16.gmra.mxu0 %v2345
        %v2520 = vpop.f32.mrf.mxu0
        %v2521 = vadd.f32 %v1661, %v2520
        %v2522 = vpop.f32.mrf.mxu0
        %v2523 = vpop.f32.mrf.mxu0
        %v2524 = vpop.f32.mrf.mxu0
        %2525 = vdwg.mxu0
        %2526 = vmax.xlane.f32.xlu0 %v2521
        %v2527 = vpop.xlane.xlu0 %2526
        %v2528 = vsel %vm1594, %v2385, -inf
        %2529 = vmax.xlane.f32.xlu0 %v2528
        %v2530 = vpop.xlane.xlu0 %2529
        %v2531 = vmax.f32 %v2527, %v2530
        %v2532 = vsub.f32 %v2521, %v2531
        %v2533 = vmul.f32 %v2532, 1.442695
        %v2534 = vpow.pop %v2533
        %v2535 = vsub.f32 %v2385, %v2531
        %v2536 = vmul.f32 %v2535, 1.442695
        %v2537 = vpow.pop %v2536
        %2538 = vadd.xlane.f32.xlu0 %v2534
        %v2539 = vpop.xlane.xlu0 %2538
        %v2540 = vsel %vm1594, %v2537, 0.0
        %2541 = vadd.xlane.f32.xlu0 %v2540
        %v2542 = vpop.xlane.xlu0 %2541
        %v2543 = vadd.f32 %v2539, %v2542
        %v2544 = vrcp.pop %v2543
        %v2545 = vmul.f32 %v2534, %v2544
        %v2546 = vmul.f32 %v2537, %v2544
        %v2547 = vpack.c.bf16 %v2545, %v2545
        %v2548 = vld [vmem:[#allocation5] sm:$0xf]
        %v2549 = vld [vmem:[#allocation5 + $0x4] sm:$0xf]
        %v2550 = vld [vmem:[#allocation5 + $0x8] sm:$0xf]
        %v2551 = vld [vmem:[#allocation5 + $0xc] sm:$0xf]
        %v2552 = vld [vmem:[#allocation5 + $0x10] sm:$0xf]
        %v2553 = vld [vmem:[#allocation5 + $0x14] sm:$0xf]
        %v2554 = vld [vmem:[#allocation5 + $0x18] sm:$0xf]
        %v2555 = vld [vmem:[#allocation5 + $0x1c] sm:$0xf]
        %v2556 = vld [vmem:[#allocation5 + $0x20] sm:$0xf]
        %v2557 = vld [vmem:[#allocation5 + $0x24] sm:$0xf]
        %v2558 = vld [vmem:[#allocation5 + $0x28] sm:$0xf]
        %v2559 = vld [vmem:[#allocation5 + $0x2c] sm:$0xf]
        %v2560 = vld [vmem:[#allocation5 + $0x30] sm:$0xf]
        %v2561 = vld [vmem:[#allocation5 + $0x34] sm:$0xf]
        %v2562 = vld [vmem:[#allocation5 + $0x38] sm:$0xf]
        %v2563 = vld [vmem:[#allocation5 + $0x3c] sm:$0xf]
        %v2564 = vpack.c.bf16 %v2546, %v2546
        %v2565 = vld [vmem:[#allocation3] sm:$0xf]
        %v2567 = vunpack.c.l.b16 %v2565
        %v2568 = vpack.c.b16 %v2567, %v2567
        %2569 = vrot.lane.b32.xlu0 %v2568, 112
        %v2570 = vpop.permute.xlu0 %2569
        %v2572 = vsel %vm1594, %v2564, 0
        %v2575 = vsel %vm1811, %v2570, 0
        %2577 = vmatprep.subr.bf16.mxu0 0
        %2578 = vmatpush1.bf16.msra.mxu0 0
        %2579 = vmatprep.subr.bf16.mxu0 0
        %2580 = vmatpush1.bf16.msra.mxu0 0
        %2581 = vmatprep.subr.bf16.mxu0 0
        %2582 = vmatpush1.bf16.msra.mxu0 0
        %2583 = vmatprep.subr.bf16.mxu0 0
        %2584 = vmatpush1.bf16.msra.mxu0 0
        %2585 = vmatprep.subr.bf16.mxu0 0
        %2586 = vmatpush1.bf16.msra.mxu0 0
        %2587 = vmatprep.subr.bf16.mxu0 0
        %2588 = vmatpush1.bf16.msra.mxu0 0
        %2589 = vmatprep.subr.bf16.mxu0 0
        %2590 = vmatpush1.bf16.msra.mxu0 0
        %2591 = vmatprep.subr.bf16.mxu0 0
        %2592 = vmatpush1.bf16.msra.mxu0 %v2575
        %2593 = vmatprep.subr.bf16.mxu0 0
        %2594 = vmatpush2.bf16.msra.mxu0 0
        %2595 = vmatprep.subr.bf16.mxu0 0
        %2596 = vmatpush2.bf16.msra.mxu0 0
        %2597 = vmatprep.subr.bf16.mxu0 0
        %2598 = vmatpush2.bf16.msra.mxu0 0
        %2599 = vmatprep.subr.bf16.mxu0 0
        %2600 = vmatpush2.bf16.msra.mxu0 0
        %2601 = vmatprep.subr.bf16.mxu0 0
        %2602 = vmatpush2.bf16.msra.mxu0 0
        %2603 = vmatprep.subr.bf16.mxu0 0
        %2604 = vmatpush2.bf16.msra.mxu0 0
        %2605 = vmatprep.subr.bf16.mxu0 0
        %2606 = vmatpush2.bf16.msra.mxu0 0
        %2607 = vmatprep.subr.bf16.mxu0 0
        %2608 = vmatpush2.bf16.msra.mxu0 0
        %2609 = vmatprep.mubr.bf16.mxu0 0
        %2610 = vmatmul.mubr.bf16.gmra.mxu0 %v2572
        %v2611 = vpop.f32.mrf.mxu0
        %v2612 = vadd.f32 0.0, %v2611
        %v2613 = vpop.f32.mrf.mxu0
        %v2614 = vpop.f32.mrf.mxu0
        %v2615 = vpop.f32.mrf.mxu0
        %2616 = vdwg.mxu0
        %v2633 = vunpack.c.l.b16 %v2548
        %v2634 = vunpack.c.l.b16 %v2549
        %v2635 = vunpack.c.l.b16 %v2550
        %v2636 = vunpack.c.l.b16 %v2551
        %v2637 = vunpack.c.l.b16 %v2552
        %v2638 = vunpack.c.l.b16 %v2553
        %v2639 = vunpack.c.l.b16 %v2554
        %v2640 = vunpack.c.l.b16 %v2555
        %v2641 = vunpack.c.l.b16 %v2556
        %v2642 = vunpack.c.l.b16 %v2557
        %v2643 = vunpack.c.l.b16 %v2558
        %v2644 = vunpack.c.l.b16 %v2559
        %v2645 = vunpack.c.l.b16 %v2560
        %v2646 = vunpack.c.l.b16 %v2561
        %v2647 = vunpack.c.l.b16 %v2562
        %v2648 = vunpack.c.l.b16 %v2563
        %v2649 = vpack.c.b16 %v2634, %v2633
        %v2650 = vpack.c.b16 %v2636, %v2635
        %v2651 = vpack.c.b16 %v2638, %v2637
        %v2652 = vpack.c.b16 %v2640, %v2639
        %v2653 = vpack.c.b16 %v2642, %v2641
        %v2654 = vpack.c.b16 %v2644, %v2643
        %v2655 = vpack.c.b16 %v2646, %v2645
        %v2656 = vpack.c.b16 %v2648, %v2647
        %2657 = vrot.lane.b32.xlu0 %v2649, 112
        %v2658 = vpop.permute.xlu0 %2657
        %2659 = vrot.lane.b32.xlu0 %v2650, 112
        %v2660 = vpop.permute.xlu0 %2659
        %2661 = vrot.lane.b32.xlu0 %v2651, 112
        %v2662 = vpop.permute.xlu0 %2661
        %2663 = vrot.lane.b32.xlu0 %v2652, 112
        %v2664 = vpop.permute.xlu0 %2663
        %2665 = vrot.lane.b32.xlu0 %v2653, 112
        %v2666 = vpop.permute.xlu0 %2665
        %2667 = vrot.lane.b32.xlu0 %v2654, 112
        %v2668 = vpop.permute.xlu0 %2667
        %2669 = vrot.lane.b32.xlu0 %v2655, 112
        %v2670 = vpop.permute.xlu0 %2669
        %2671 = vrot.lane.b32.xlu0 %v2656, 112
        %v2672 = vpop.permute.xlu0 %2671
        %2681 = vmatprep.subr.bf16.mxu0 0
        %2682 = vmatpush1.bf16.msra.mxu0 %v2672
        %2683 = vmatprep.subr.bf16.mxu0 0
        %2684 = vmatpush1.bf16.msra.mxu0 %v2670
        %2685 = vmatprep.subr.bf16.mxu0 0
        %2686 = vmatpush1.bf16.msra.mxu0 %v2668
        %2687 = vmatprep.subr.bf16.mxu0 0
        %2688 = vmatpush1.bf16.msra.mxu0 %v2666
        %2689 = vmatprep.subr.bf16.mxu0 0
        %2690 = vmatpush1.bf16.msra.mxu0 %v2664
        %2691 = vmatprep.subr.bf16.mxu0 0
        %2692 = vmatpush1.bf16.msra.mxu0 %v2662
        %2693 = vmatprep.subr.bf16.mxu0 0
        %2694 = vmatpush1.bf16.msra.mxu0 %v2660
        %2695 = vmatprep.subr.bf16.mxu0 0
        %2696 = vmatpush1.bf16.msra.mxu0 %v2658
        %2697 = vmatprep.subr.bf16.mxu0 0
        %2698 = vmatpush2.bf16.msra.mxu0 0
        %2699 = vmatprep.subr.bf16.mxu0 0
        %2700 = vmatpush2.bf16.msra.mxu0 0
        %2701 = vmatprep.subr.bf16.mxu0 0
        %2702 = vmatpush2.bf16.msra.mxu0 0
        %2703 = vmatprep.subr.bf16.mxu0 0
        %2704 = vmatpush2.bf16.msra.mxu0 0
        %2705 = vmatprep.subr.bf16.mxu0 0
        %2706 = vmatpush2.bf16.msra.mxu0 0
        %2707 = vmatprep.subr.bf16.mxu0 0
        %2708 = vmatpush2.bf16.msra.mxu0 0
        %2709 = vmatprep.subr.bf16.mxu0 0
        %2710 = vmatpush2.bf16.msra.mxu0 0
        %2711 = vmatprep.subr.bf16.mxu0 0
        %2712 = vmatpush2.bf16.msra.mxu0 0
        %2713 = vmatprep.mubr.bf16.mxu0 0
        %2714 = vmatmul.mubr.bf16.gmra.mxu0 %v2547
        %v2715 = vpop.f32.mrf.mxu0
        %v2716 = vadd.f32 %v2612, %v2715
        %v2717 = vpop.f32.mrf.mxu0
        %v2718 = vpop.f32.mrf.mxu0
        %v2719 = vpop.f32.mrf.mxu0
        %2720 = vdwg.mxu0
        %2722 = vrot.lane.b32.xlu0 %v2716, 16
        %v2723 = vpop.permute.xlu0 %2722
        %vm2725 = vcmask 195712
        %2726 = vst.msk [vmem:[#allocation6] sm:$0xff] %vm2725, %v2723
        %v2727 = vld [vmem:[#allocation2] sm:$0xf]
        %2728 = vrot.lane.b32.xlu0 %v1572, 104
        %v2729 = vpop.permute.xlu0 %2728
        %v2731 = vunpack.c.l.b16 %v2727
        %v2732 = vpack.c.b16 %v2731, %v2731
        %2733 = vrot.lane.b32.xlu0 %v2732, 104
        %v2734 = vpop.permute.xlu0 %2733
        %v2736 = vsel %vm1594, %v2729, 0
        %v2739 = vsel %vm1594, %v2734, 0
        %2741 = vmatprep.subr.bf16.mxu0 0
        %2742 = vmatpush1.bf16.xpose.msra.mxu0 0
        %2743 = vmatprep.subr.bf16.mxu0 0
        %2744 = vmatpush1.bf16.xpose.msra.mxu0 0
        %2745 = vmatprep.subr.bf16.mxu0 0
        %2746 = vmatpush1.bf16.xpose.msra.mxu0 0
        %2747 = vmatprep.subr.bf16.mxu0 0
        %2748 = vmatpush1.bf16.xpose.msra.mxu0 0
        %2749 = vmatprep.subr.bf16.mxu0 0
        %2750 = vmatpush1.bf16.xpose.msra.mxu0 0
        %2751 = vmatprep.subr.bf16.mxu0 0
        %2752 = vmatpush1.bf16.xpose.msra.mxu0 0
        %2753 = vmatprep.subr.bf16.mxu0 0
        %2754 = vmatpush1.bf16.xpose.msra.mxu0 0
        %2755 = vmatprep.subr.bf16.mxu0 0
        %2756 = vmatpush1.bf16.xpose.msra.mxu0 %v2739
        %2757 = vmatprep.subr.bf16.mxu0 0
        %2758 = vmatpush2.bf16.xpose.msra.mxu0 0
        %2759 = vmatprep.subr.bf16.mxu0 0
        %2760 = vmatpush2.bf16.xpose.msra.mxu0 0
        %2761 = vmatprep.subr.bf16.mxu0 0
        %2762 = vmatpush2.bf16.xpose.msra.mxu0 0
        %2763 = vmatprep.subr.bf16.mxu0 0
        %2764 = vmatpush2.bf16.xpose.msra.mxu0 0
        %2765 = vmatprep.subr.bf16.mxu0 0
        %2766 = vmatpush2.bf16.xpose.msra.mxu0 0
        %2767 = vmatprep.subr.bf16.mxu0 0
        %2768 = vmatpush2.bf16.xpose.msra.mxu0 0
        %2769 = vmatprep.subr.bf16.mxu0 0
        %2770 = vmatpush2.bf16.xpose.msra.mxu0 0
        %2771 = vmatprep.subr.bf16.mxu0 0
        %2772 = vmatpush2.bf16.xpose.msra.mxu0 0
        %2773 = vmatprep.mubr.bf16.mxu0 0
        %2774 = vmatmul.mubr.bf16.gmra.mxu0 %v2736
        %v2775 = vpop.f32.mrf.mxu0
        %v2776 = vadd.f32 %v1589, %v2775
        %v2777 = vpop.f32.mrf.mxu0
        %v2778 = vpop.f32.mrf.mxu0
        %v2779 = vpop.f32.mrf.mxu0
        %2780 = vdwg.mxu0
        %v2781 = vld [vmem:[#allocation4] sm:$0xf]
        %v2782 = vld [vmem:[#allocation4 + $0x4] sm:$0xf]
        %v2783 = vld [vmem:[#allocation4 + $0x8] sm:$0xf]
        %v2784 = vld [vmem:[#allocation4 + $0xc] sm:$0xf]
        %v2785 = vld [vmem:[#allocation4 + $0x10] sm:$0xf]
        %v2786 = vld [vmem:[#allocation4 + $0x14] sm:$0xf]
        %v2787 = vld [vmem:[#allocation4 + $0x18] sm:$0xf]
        %v2788 = vld [vmem:[#allocation4 + $0x1c] sm:$0xf]
        %v2789 = vld [vmem:[#allocation4 + $0x20] sm:$0xf]
        %v2790 = vld [vmem:[#allocation4 + $0x24] sm:$0xf]
        %v2791 = vld [vmem:[#allocation4 + $0x28] sm:$0xf]
        %v2792 = vld [vmem:[#allocation4 + $0x2c] sm:$0xf]
        %v2793 = vld [vmem:[#allocation4 + $0x30] sm:$0xf]
        %v2794 = vld [vmem:[#allocation4 + $0x34] sm:$0xf]
        %v2795 = vld [vmem:[#allocation4 + $0x38] sm:$0xf]
        %v2796 = vld [vmem:[#allocation4 + $0x3c] sm:$0xf]
        %v2813 = vunpack.c.l.b16 %v2781
        %v2814 = vunpack.c.l.b16 %v2782
        %v2815 = vunpack.c.l.b16 %v2783
        %v2816 = vunpack.c.l.b16 %v2784
        %v2817 = vunpack.c.l.b16 %v2785
        %v2818 = vunpack.c.l.b16 %v2786
        %v2819 = vunpack.c.l.b16 %v2787
        %v2820 = vunpack.c.l.b16 %v2788
        %v2821 = vunpack.c.l.b16 %v2789
        %v2822 = vunpack.c.l.b16 %v2790
        %v2823 = vunpack.c.l.b16 %v2791
        %v2824 = vunpack.c.l.b16 %v2792
        %v2825 = vunpack.c.l.b16 %v2793
        %v2826 = vunpack.c.l.b16 %v2794
        %v2827 = vunpack.c.l.b16 %v2795
        %v2828 = vunpack.c.l.b16 %v2796
        %v2829 = vpack.c.b16 %v2814, %v2813
        %v2830 = vpack.c.b16 %v2816, %v2815
        %v2831 = vpack.c.b16 %v2818, %v2817
        %v2832 = vpack.c.b16 %v2820, %v2819
        %v2833 = vpack.c.b16 %v2822, %v2821
        %v2834 = vpack.c.b16 %v2824, %v2823
        %v2835 = vpack.c.b16 %v2826, %v2825
        %v2836 = vpack.c.b16 %v2828, %v2827
        %2837 = vrot.lane.b32.xlu0 %v2829, 104
        %v2838 = vpop.permute.xlu0 %2837
        %2839 = vrot.lane.b32.xlu0 %v2830, 104
        %v2840 = vpop.permute.xlu0 %2839
        %2841 = vrot.lane.b32.xlu0 %v2831, 104
        %v2842 = vpop.permute.xlu0 %2841
        %2843 = vrot.lane.b32.xlu0 %v2832, 104
        %v2844 = vpop.permute.xlu0 %2843
        %2845 = vrot.lane.b32.xlu0 %v2833, 104
        %v2846 = vpop.permute.xlu0 %2845
        %2847 = vrot.lane.b32.xlu0 %v2834, 104
        %v2848 = vpop.permute.xlu0 %2847
        %2849 = vrot.lane.b32.xlu0 %v2835, 104
        %v2850 = vpop.permute.xlu0 %2849
        %2851 = vrot.lane.b32.xlu0 %v2836, 104
        %v2852 = vpop.permute.xlu0 %2851
        %v2854 = vsel %vm1594, %v2838, 0
        %v2857 = vsel %vm1594, %v2840, 0
        %v2860 = vsel %vm1594, %v2842, 0
        %v2863 = vsel %vm1594, %v2844, 0
        %v2866 = vsel %vm1594, %v2846, 0
        %v2869 = vsel %vm1594, %v2848, 0
        %v2872 = vsel %vm1594, %v2850, 0
        %v2875 = vsel %vm1594, %v2852, 0
        %2877 = vmatprep.subr.bf16.mxu0 0
        %2878 = vmatpush1.bf16.xpose.msra.mxu0 %v2875
        %2879 = vmatprep.subr.bf16.mxu0 0
        %2880 = vmatpush1.bf16.xpose.msra.mxu0 %v2872
        %2881 = vmatprep.subr.bf16.mxu0 0
        %2882 = vmatpush1.bf16.xpose.msra.mxu0 %v2869
        %2883 = vmatprep.subr.bf16.mxu0 0
        %2884 = vmatpush1.bf16.xpose.msra.mxu0 %v2866
        %2885 = vmatprep.subr.bf16.mxu0 0
        %2886 = vmatpush1.bf16.xpose.msra.mxu0 %v2863
        %2887 = vmatprep.subr.bf16.mxu0 0
        %2888 = vmatpush1.bf16.xpose.msra.mxu0 %v2860
        %2889 = vmatprep.subr.bf16.mxu0 0
        %2890 = vmatpush1.bf16.xpose.msra.mxu0 %v2857
        %2891 = vmatprep.subr.bf16.mxu0 0
        %2892 = vmatpush1.bf16.xpose.msra.mxu0 %v2854
        %2893 = vmatprep.subr.bf16.mxu0 0
        %2894 = vmatpush2.bf16.xpose.msra.mxu0 0
        %2895 = vmatprep.subr.bf16.mxu0 0
        %2896 = vmatpush2.bf16.xpose.msra.mxu0 0
        %2897 = vmatprep.subr.bf16.mxu0 0
        %2898 = vmatpush2.bf16.xpose.msra.mxu0 0
        %2899 = vmatprep.subr.bf16.mxu0 0
        %2900 = vmatpush2.bf16.xpose.msra.mxu0 0
        %2901 = vmatprep.subr.bf16.mxu0 0
        %2902 = vmatpush2.bf16.xpose.msra.mxu0 0
        %2903 = vmatprep.subr.bf16.mxu0 0
        %2904 = vmatpush2.bf16.xpose.msra.mxu0 0
        %2905 = vmatprep.subr.bf16.mxu0 0
        %2906 = vmatpush2.bf16.xpose.msra.mxu0 0
        %2907 = vmatprep.subr.bf16.mxu0 0
        %2908 = vmatpush2.bf16.xpose.msra.mxu0 0
        %2909 = vmatprep.mubr.bf16.mxu0 0
        %2910 = vmatmul.mubr.bf16.gmra.mxu0 %v2736
        %v2911 = vpop.f32.mrf.mxu0
        %v2912 = vadd.f32 %v1661, %v2911
        %v2913 = vpop.f32.mrf.mxu0
        %v2914 = vpop.f32.mrf.mxu0
        %v2915 = vpop.f32.mrf.mxu0
        %2916 = vdwg.mxu0
        %2917 = vmax.xlane.f32.xlu0 %v2912
        %v2918 = vpop.xlane.xlu0 %2917
        %v2919 = vsel %vm1594, %v2776, -inf
        %2920 = vmax.xlane.f32.xlu0 %v2919
        %v2921 = vpop.xlane.xlu0 %2920
        %v2922 = vmax.f32 %v2918, %v2921
        %v2923 = vsub.f32 %v2912, %v2922
        %v2924 = vmul.f32 %v2923, 1.442695
        %v2925 = vpow.pop %v2924
        %v2926 = vsub.f32 %v2776, %v2922
        %v2927 = vmul.f32 %v2926, 1.442695
        %v2928 = vpow.pop %v2927
        %2929 = vadd.xlane.f32.xlu0 %v2925
        %v2930 = vpop.xlane.xlu0 %2929
        %v2931 = vsel %vm1594, %v2928, 0.0
        %2932 = vadd.xlane.f32.xlu0 %v2931
        %v2933 = vpop.xlane.xlu0 %2932
        %v2934 = vadd.f32 %v2930, %v2933
        %v2935 = vrcp.pop %v2934
        %v2936 = vmul.f32 %v2925, %v2935
        %v2937 = vmul.f32 %v2928, %v2935
        %v2938 = vpack.c.bf16 %v2936, %v2936
        %v2939 = vld [vmem:[#allocation5] sm:$0xf]
        %v2940 = vld [vmem:[#allocation5 + $0x4] sm:$0xf]
        %v2941 = vld [vmem:[#allocation5 + $0x8] sm:$0xf]
        %v2942 = vld [vmem:[#allocation5 + $0xc] sm:$0xf]
        %v2943 = vld [vmem:[#allocation5 + $0x10] sm:$0xf]
        %v2944 = vld [vmem:[#allocation5 + $0x14] sm:$0xf]
        %v2945 = vld [vmem:[#allocation5 + $0x18] sm:$0xf]
        %v2946 = vld [vmem:[#allocation5 + $0x1c] sm:$0xf]
        %v2947 = vld [vmem:[#allocation5 + $0x20] sm:$0xf]
        %v2948 = vld [vmem:[#allocation5 + $0x24] sm:$0xf]
        %v2949 = vld [vmem:[#allocation5 + $0x28] sm:$0xf]
        %v2950 = vld [vmem:[#allocation5 + $0x2c] sm:$0xf]
        %v2951 = vld [vmem:[#allocation5 + $0x30] sm:$0xf]
        %v2952 = vld [vmem:[#allocation5 + $0x34] sm:$0xf]
        %v2953 = vld [vmem:[#allocation5 + $0x38] sm:$0xf]
        %v2954 = vld [vmem:[#allocation5 + $0x3c] sm:$0xf]
        %v2955 = vpack.c.bf16 %v2937, %v2937
        %v2956 = vld [vmem:[#allocation3] sm:$0xf]
        %v2958 = vunpack.c.l.b16 %v2956
        %v2959 = vpack.c.b16 %v2958, %v2958
        %2960 = vrot.lane.b32.xlu0 %v2959, 104
        %v2961 = vpop.permute.xlu0 %2960
        %v2963 = vsel %vm1594, %v2955, 0
        %v2966 = vsel %vm1811, %v2961, 0
        %2968 = vmatprep.subr.bf16.mxu0 0
        %2969 = vmatpush1.bf16.msra.mxu0 0
        %2970 = vmatprep.subr.bf16.mxu0 0
        %2971 = vmatpush1.bf16.msra.mxu0 0
        %2972 = vmatprep.subr.bf16.mxu0 0
        %2973 = vmatpush1.bf16.msra.mxu0 0
        %2974 = vmatprep.subr.bf16.mxu0 0
        %2975 = vmatpush1.bf16.msra.mxu0 0
        %2976 = vmatprep.subr.bf16.mxu0 0
        %2977 = vmatpush1.bf16.msra.mxu0 0
        %2978 = vmatprep.subr.bf16.mxu0 0
        %2979 = vmatpush1.bf16.msra.mxu0 0
        %2980 = vmatprep.subr.bf16.mxu0 0
        %2981 = vmatpush1.bf16.msra.mxu0 0
        %2982 = vmatprep.subr.bf16.mxu0 0
        %2983 = vmatpush1.bf16.msra.mxu0 %v2966
        %2984 = vmatprep.subr.bf16.mxu0 0
        %2985 = vmatpush2.bf16.msra.mxu0 0
        %2986 = vmatprep.subr.bf16.mxu0 0
        %2987 = vmatpush2.bf16.msra.mxu0 0
        %2988 = vmatprep.subr.bf16.mxu0 0
        %2989 = vmatpush2.bf16.msra.mxu0 0
        %2990 = vmatprep.subr.bf16.mxu0 0
        %2991 = vmatpush2.bf16.msra.mxu0 0
        %2992 = vmatprep.subr.bf16.mxu0 0
        %2993 = vmatpush2.bf16.msra.mxu0 0
        %2994 = vmatprep.subr.bf16.mxu0 0
        %2995 = vmatpush2.bf16.msra.mxu0 0
        %2996 = vmatprep.subr.bf16.mxu0 0
        %2997 = vmatpush2.bf16.msra.mxu0 0
        %2998 = vmatprep.subr.bf16.mxu0 0
        %2999 = vmatpush2.bf16.msra.mxu0 0
        %3000 = vmatprep.mubr.bf16.mxu0 0
        %3001 = vmatmul.mubr.bf16.gmra.mxu0 %v2963
        %v3002 = vpop.f32.mrf.mxu0
        %v3003 = vadd.f32 0.0, %v3002
        %v3004 = vpop.f32.mrf.mxu0
        %v3005 = vpop.f32.mrf.mxu0
        %v3006 = vpop.f32.mrf.mxu0
        %3007 = vdwg.mxu0
        %v3024 = vunpack.c.l.b16 %v2939
        %v3025 = vunpack.c.l.b16 %v2940
        %v3026 = vunpack.c.l.b16 %v2941
        %v3027 = vunpack.c.l.b16 %v2942
        %v3028 = vunpack.c.l.b16 %v2943
        %v3029 = vunpack.c.l.b16 %v2944
        %v3030 = vunpack.c.l.b16 %v2945
        %v3031 = vunpack.c.l.b16 %v2946
        %v3032 = vunpack.c.l.b16 %v2947
        %v3033 = vunpack.c.l.b16 %v2948
        %v3034 = vunpack.c.l.b16 %v2949
        %v3035 = vunpack.c.l.b16 %v2950
        %v3036 = vunpack.c.l.b16 %v2951
        %v3037 = vunpack.c.l.b16 %v2952
        %v3038 = vunpack.c.l.b16 %v2953
        %v3039 = vunpack.c.l.b16 %v2954
        %v3040 = vpack.c.b16 %v3025, %v3024
        %v3041 = vpack.c.b16 %v3027, %v3026
        %v3042 = vpack.c.b16 %v3029, %v3028
        %v3043 = vpack.c.b16 %v3031, %v3030
        %v3044 = vpack.c.b16 %v3033, %v3032
        %v3045 = vpack.c.b16 %v3035, %v3034
        %v3046 = vpack.c.b16 %v3037, %v3036
        %v3047 = vpack.c.b16 %v3039, %v3038
        %3048 = vrot.lane.b32.xlu0 %v3040, 104
        %v3049 = vpop.permute.xlu0 %3048
        %3050 = vrot.lane.b32.xlu0 %v3041, 104
        %v3051 = vpop.permute.xlu0 %3050
        %3052 = vrot.lane.b32.xlu0 %v3042, 104
        %v3053 = vpop.permute.xlu0 %3052
        %3054 = vrot.lane.b32.xlu0 %v3043, 104
        %v3055 = vpop.permute.xlu0 %3054
        %3056 = vrot.lane.b32.xlu0 %v3044, 104
        %v3057 = vpop.permute.xlu0 %3056
        %3058 = vrot.lane.b32.xlu0 %v3045, 104
        %v3059 = vpop.permute.xlu0 %3058
        %3060 = vrot.lane.b32.xlu0 %v3046, 104
        %v3061 = vpop.permute.xlu0 %3060
        %3062 = vrot.lane.b32.xlu0 %v3047, 104
        %v3063 = vpop.permute.xlu0 %3062
        %3072 = vmatprep.subr.bf16.mxu0 0
        %3073 = vmatpush1.bf16.msra.mxu0 %v3063
        %3074 = vmatprep.subr.bf16.mxu0 0
        %3075 = vmatpush1.bf16.msra.mxu0 %v3061
        %3076 = vmatprep.subr.bf16.mxu0 0
        %3077 = vmatpush1.bf16.msra.mxu0 %v3059
        %3078 = vmatprep.subr.bf16.mxu0 0
        %3079 = vmatpush1.bf16.msra.mxu0 %v3057
        %3080 = vmatprep.subr.bf16.mxu0 0
        %3081 = vmatpush1.bf16.msra.mxu0 %v3055
        %3082 = vmatprep.subr.bf16.mxu0 0
        %3083 = vmatpush1.bf16.msra.mxu0 %v3053
        %3084 = vmatprep.subr.bf16.mxu0 0
        %3085 = vmatpush1.bf16.msra.mxu0 %v3051
        %3086 = vmatprep.subr.bf16.mxu0 0
        %3087 = vmatpush1.bf16.msra.mxu0 %v3049
        %3088 = vmatprep.subr.bf16.mxu0 0
        %3089 = vmatpush2.bf16.msra.mxu0 0
        %3090 = vmatprep.subr.bf16.mxu0 0
        %3091 = vmatpush2.bf16.msra.mxu0 0
        %3092 = vmatprep.subr.bf16.mxu0 0
        %3093 = vmatpush2.bf16.msra.mxu0 0
        %3094 = vmatprep.subr.bf16.mxu0 0
        %3095 = vmatpush2.bf16.msra.mxu0 0
        %3096 = vmatprep.subr.bf16.mxu0 0
        %3097 = vmatpush2.bf16.msra.mxu0 0
        %3098 = vmatprep.subr.bf16.mxu0 0
        %3099 = vmatpush2.bf16.msra.mxu0 0
        %3100 = vmatprep.subr.bf16.mxu0 0
        %3101 = vmatpush2.bf16.msra.mxu0 0
        %3102 = vmatprep.subr.bf16.mxu0 0
        %3103 = vmatpush2.bf16.msra.mxu0 0
        %3104 = vmatprep.mubr.bf16.mxu0 0
        %3105 = vmatmul.mubr.bf16.gmra.mxu0 %v2938
        %v3106 = vpop.f32.mrf.mxu0
        %v3107 = vadd.f32 %v3003, %v3106
        %v3108 = vpop.f32.mrf.mxu0
        %v3109 = vpop.f32.mrf.mxu0
        %v3110 = vpop.f32.mrf.mxu0
        %3111 = vdwg.mxu0
        %3113 = vrot.lane.b32.xlu0 %v3107, 24
        %v3114 = vpop.permute.xlu0 %3113
        %vm3116 = vcmask 261312
        %3117 = vst.msk [vmem:[#allocation6] sm:$0xff] %vm3116, %v3114
        %v3118 = vld [vmem:[#allocation6] sm:$0xff]
        %v3119 = vpack.c.bf16 %v3118, %v3118
        %v3120 = vld [vmem:[%s16] sm:$0xf]
        %v3121 = vld [vmem:[%s16 + $0x4] sm:$0xf]
        %v3122 = vld [vmem:[%s16 + $0x8] sm:$0xf]
        %v3123 = vld [vmem:[%s16 + $0xc] sm:$0xf]
        %v3124 = vld [vmem:[%s17] sm:$0x1]
        %v3126 = vlaneseq
        %v3127 = vshrl.u32 %v3126, 7
        %v3128 = vsub.s32 0, %v3127
        %v3129 = vrot.slane %v3124, %v3128
        %v3135 = vunpack.c.l.b16 %v3120
        %v3136 = vunpack.c.l.b16 %v3121
        %v3137 = vunpack.c.l.b16 %v3122
        %v3138 = vunpack.c.l.b16 %v3123
        %v3139 = vpack.c.b16 %v3136, %v3135
        %v3140 = vpack.c.b16 %v3138, %v3137
        %v3144 = vsel %vm1336, %v3119, 0
        %3146 = vmatprep.subr.bf16.mxu0 0
        %3147 = vmatpush1.bf16.msra.mxu0 0
        %3148 = vmatprep.subr.bf16.mxu0 0
        %3149 = vmatpush1.bf16.msra.mxu0 0
        %3150 = vmatprep.subr.bf16.mxu0 0
        %3151 = vmatpush1.bf16.msra.mxu0 0
        %3152 = vmatprep.subr.bf16.mxu0 0
        %3153 = vmatpush1.bf16.msra.mxu0 0
        %3154 = vmatprep.subr.bf16.mxu0 0
        %3155 = vmatpush1.bf16.msra.mxu0 0
        %3156 = vmatprep.subr.bf16.mxu0 0
        %3157 = vmatpush1.bf16.msra.mxu0 0
        %3158 = vmatprep.subr.bf16.mxu0 0
        %3159 = vmatpush1.bf16.msra.mxu0 %v3140
        %3160 = vmatprep.subr.bf16.mxu0 0
        %3161 = vmatpush1.bf16.msra.mxu0 %v3139
        %3162 = vmatprep.subr.bf16.mxu0 0
        %3163 = vmatpush2.bf16.msra.mxu0 0
        %3164 = vmatprep.subr.bf16.mxu0 0
        %3165 = vmatpush2.bf16.msra.mxu0 0
        %3166 = vmatprep.subr.bf16.mxu0 0
        %3167 = vmatpush2.bf16.msra.mxu0 0
        %3168 = vmatprep.subr.bf16.mxu0 0
        %3169 = vmatpush2.bf16.msra.mxu0 0
        %3170 = vmatprep.subr.bf16.mxu0 0
        %3171 = vmatpush2.bf16.msra.mxu0 0
        %3172 = vmatprep.subr.bf16.mxu0 0
        %3173 = vmatpush2.bf16.msra.mxu0 0
        %3174 = vmatprep.subr.bf16.mxu0 0
        %3175 = vmatpush2.bf16.msra.mxu0 0
        %3176 = vmatprep.subr.bf16.mxu0 0
        %3177 = vmatpush2.bf16.msra.mxu0 0
        %3178 = vmatprep.mubr.bf16.mxu0 0
        %3179 = vmatmul.mubr.bf16.gmra.mxu0 %v3144
        %v3180 = vpop.f32.mrf.mxu0
        %v3181 = vadd.f32 %v3129, %v3180
        %v3182 = vpop.f32.mrf.mxu0
        %v3183 = vpop.f32.mrf.mxu0
        %v3184 = vpop.f32.mrf.mxu0
        %3185 = vdwg.mxu0
        %v3186 = vadd.f32 %v3181, %v1335
        %v3187 = vsel %vm1336, %v3186, 0.0
        %3188 = vadd.xlane.f32.xlu0 %v3187
        %v3189 = vpop.xlane.xlu0 %3188
        %v3190 = vmul.f32 %v3189, %v1340
        %v3191 = vsub.f32 %v3186, %v3190
        %v3192 = vmul.f32 %v3191, %v3191
        %v3193 = vsel %vm1336, %v3192, 0.0
        %3194 = vadd.xlane.f32.xlu0 %v3193
        %v3195 = vpop.xlane.xlu0 %3194
        %v3196 = vmul.f32 %v3195, %v1340
        %v3197 = vadd.f32 %v3196, 1e-05
        %v3198 = vrsqrt.pop %v3197
        %v3199 = vmul.f32 %v3191, %v3198
        %v3200 = vld [vmem:[%s18] sm:$0x1]
        %v3202 = vlaneseq
        %v3203 = vshrl.u32 %v3202, 7
        %v3204 = vsub.s32 0, %v3203
        %v3205 = vrot.slane %v3200, %v3204
        %v3207 = vmul.f32 %v3199, %v3205
        %v3208 = vld [vmem:[%s19] sm:$0x1]
        %v3210 = vlaneseq
        %v3211 = vshrl.u32 %v3210, 7
        %v3212 = vsub.s32 0, %v3211
        %v3213 = vrot.slane %v3208, %v3212
        %v3215 = vadd.f32 %v3207, %v3213
        %v3216 = vpack.c.bf16 %v3215, %v3215
        %v3217 = vld [vmem:[%s20] sm:$0xf]
        %v3218 = vld [vmem:[%s20 + $0x4] sm:$0xf]
        %v3219 = vld [vmem:[%s20 + $0x8] sm:$0xf]
        %v3220 = vld [vmem:[%s20 + $0xc] sm:$0xf]
        %v3221 = vld [vmem:[%s21] sm:$0x1]
        %v3223 = vlaneseq
        %v3224 = vshrl.u32 %v3223, 7
        %v3225 = vsub.s32 0, %v3224
        %v3226 = vrot.slane %v3221, %v3225
        %v3232 = vunpack.c.l.b16 %v3217
        %v3233 = vunpack.c.l.b16 %v3218
        %v3234 = vunpack.c.l.b16 %v3219
        %v3235 = vunpack.c.l.b16 %v3220
        %v3236 = vpack.c.b16 %v3233, %v3232
        %v3237 = vpack.c.b16 %v3235, %v3234
        %v3241 = vsel %vm1336, %v3216, 0
        %3243 = vmatprep.subr.bf16.mxu0 0
        %3244 = vmatpush1.bf16.msra.mxu0 0
        %3245 = vmatprep.subr.bf16.mxu0 0
        %3246 = vmatpush1.bf16.msra.mxu0 0
        %3247 = vmatprep.subr.bf16.mxu0 0
        %3248 = vmatpush1.bf16.msra.mxu0 0
        %3249 = vmatprep.subr.bf16.mxu0 0
        %3250 = vmatpush1.bf16.msra.mxu0 0
        %3251 = vmatprep.subr.bf16.mxu0 0
        %3252 = vmatpush1.bf16.msra.mxu0 0
        %3253 = vmatprep.subr.bf16.mxu0 0
        %3254 = vmatpush1.bf16.msra.mxu0 0
        %3255 = vmatprep.subr.bf16.mxu0 0
        %3256 = vmatpush1.bf16.msra.mxu0 %v3237
        %3257 = vmatprep.subr.bf16.mxu0 0
        %3258 = vmatpush1.bf16.msra.mxu0 %v3236
        %3259 = vmatprep.subr.bf16.mxu0 0
        %3260 = vmatpush2.bf16.msra.mxu0 0
        %3261 = vmatprep.subr.bf16.mxu0 0
        %3262 = vmatpush2.bf16.msra.mxu0 0
        %3263 = vmatprep.subr.bf16.mxu0 0
        %3264 = vmatpush2.bf16.msra.mxu0 0
        %3265 = vmatprep.subr.bf16.mxu0 0
        %3266 = vmatpush2.bf16.msra.mxu0 0
        %3267 = vmatprep.subr.bf16.mxu0 0
        %3268 = vmatpush2.bf16.msra.mxu0 0
        %3269 = vmatprep.subr.bf16.mxu0 0
        %3270 = vmatpush2.bf16.msra.mxu0 0
        %3271 = vmatprep.subr.bf16.mxu0 0
        %3272 = vmatpush2.bf16.msra.mxu0 0
        %3273 = vmatprep.subr.bf16.mxu0 0
        %3274 = vmatpush2.bf16.msra.mxu0 0
        %3275 = vmatprep.mubr.bf16.mxu0 0
        %3276 = vmatmul.mubr.bf16.gmra.mxu0 %v3241
        %v3277 = vpop.f32.mrf.mxu0
        %v3278 = vadd.f32 %v3226, %v3277
        %v3279 = vpop.f32.mrf.mxu0
        %v3280 = vpop.f32.mrf.mxu0
        %v3281 = vpop.f32.mrf.mxu0
        %3282 = vdwg.mxu0
        %v3283 = vmul.f32 %v3278, 0.5
        %v3284 = vmul.f32 %v3278, 0.044715
        %v3285 = vmul.f32 %v3284, %v3278
        %v3286 = vmul.f32 %v3285, %v3278
        %v3287 = vadd.f32 %v3278, %v3286
        %v3288 = vmul.f32 %v3287, 0.7978846
        %v3289 = vtanh.pop %v3288
        %v3290 = vadd.f32 %v3289, 1.0
        %v3291 = vmul.f32 %v3283, %v3290
        %v3292 = vpack.c.bf16 %v3291, %v3291
        %v3293 = vld [vmem:[%s22] sm:$0xf]
        %v3294 = vld [vmem:[%s22 + $0x4] sm:$0xf]
        %v3295 = vld [vmem:[%s22 + $0x8] sm:$0xf]
        %v3296 = vld [vmem:[%s22 + $0xc] sm:$0xf]
        %v3297 = vld [vmem:[%s22 + $0x10] sm:$0xf]
        %v3298 = vld [vmem:[%s22 + $0x14] sm:$0xf]
        %v3299 = vld [vmem:[%s22 + $0x18] sm:$0xf]
        %v3300 = vld [vmem:[%s22 + $0x1c] sm:$0xf]
        %v3301 = vld [vmem:[%s22 + $0x20] sm:$0xf]
        %v3302 = vld [vmem:[%s22 + $0x24] sm:$0xf]
        %v3303 = vld [vmem:[%s22 + $0x28] sm:$0xf]
        %v3304 = vld [vmem:[%s22 + $0x2c] sm:$0xf]
        %v3305 = vld [vmem:[%s22 + $0x30] sm:$0xf]
        %v3306 = vld [vmem:[%s22 + $0x34] sm:$0xf]
        %v3307 = vld [vmem:[%s22 + $0x38] sm:$0xf]
        %v3308 = vld [vmem:[%s22 + $0x3c] sm:$0xf]
        %v3309 = vld [vmem:[%s23] sm:$0x1]
        %v3311 = vlaneseq
        %v3312 = vshrl.u32 %v3311, 7
        %v3313 = vsub.s32 0, %v3312
        %v3314 = vrot.slane %v3309, %v3313
        %v3332 = vunpack.c.l.b16 %v3293
        %v3333 = vunpack.c.l.b16 %v3294
        %v3334 = vunpack.c.l.b16 %v3295
        %v3335 = vunpack.c.l.b16 %v3296
        %v3336 = vunpack.c.l.b16 %v3297
        %v3337 = vunpack.c.l.b16 %v3298
        %v3338 = vunpack.c.l.b16 %v3299
        %v3339 = vunpack.c.l.b16 %v3300
        %v3340 = vunpack.c.l.b16 %v3301
        %v3341 = vunpack.c.l.b16 %v3302
        %v3342 = vunpack.c.l.b16 %v3303
        %v3343 = vunpack.c.l.b16 %v3304
        %v3344 = vunpack.c.l.b16 %v3305
        %v3345 = vunpack.c.l.b16 %v3306
        %v3346 = vunpack.c.l.b16 %v3307
        %v3347 = vunpack.c.l.b16 %v3308
        %v3348 = vpack.c.b16 %v3333, %v3332
        %v3349 = vpack.c.b16 %v3335, %v3334
        %v3350 = vpack.c.b16 %v3337, %v3336
        %v3351 = vpack.c.b16 %v3339, %v3338
        %v3352 = vpack.c.b16 %v3341, %v3340
        %v3353 = vpack.c.b16 %v3343, %v3342
        %v3354 = vpack.c.b16 %v3345, %v3344
        %v3355 = vpack.c.b16 %v3347, %v3346
        %3364 = vmatprep.subr.bf16.mxu0 0
        %3365 = vmatpush1.bf16.msra.mxu0 %v3355
        %3366 = vmatprep.subr.bf16.mxu0 0
        %3367 = vmatpush1.bf16.msra.mxu0 %v3354
        %3368 = vmatprep.subr.bf16.mxu0 0
        %3369 = vmatpush1.bf16.msra.mxu0 %v3353
        %3370 = vmatprep.subr.bf16.mxu0 0
        %3371 = vmatpush1.bf16.msra.mxu0 %v3352
        %3372 = vmatprep.subr.bf16.mxu0 0
        %3373 = vmatpush1.bf16.msra.mxu0 %v3351
        %3374 = vmatprep.subr.bf16.mxu0 0
        %3375 = vmatpush1.bf16.msra.mxu0 %v3350
        %3376 = vmatprep.subr.bf16.mxu0 0
        %3377 = vmatpush1.bf16.msra.mxu0 %v3349
        %3378 = vmatprep.subr.bf16.mxu0 0
        %3379 = vmatpush1.bf16.msra.mxu0 %v3348
        %3380 = vmatprep.subr.bf16.mxu0 0
        %3381 = vmatpush2.bf16.msra.mxu0 0
        %3382 = vmatprep.subr.bf16.mxu0 0
        %3383 = vmatpush2.bf16.msra.mxu0 0
        %3384 = vmatprep.subr.bf16.mxu0 0
        %3385 = vmatpush2.bf16.msra.mxu0 0
        %3386 = vmatprep.subr.bf16.mxu0 0
        %3387 = vmatpush2.bf16.msra.mxu0 0
        %3388 = vmatprep.subr.bf16.mxu0 0
        %3389 = vmatpush2.bf16.msra.mxu0 0
        %3390 = vmatprep.subr.bf16.mxu0 0
        %3391 = vmatpush2.bf16.msra.mxu0 0
        %3392 = vmatprep.subr.bf16.mxu0 0
        %3393 = vmatpush2.bf16.msra.mxu0 0
        %3394 = vmatprep.subr.bf16.mxu0 0
        %3395 = vmatpush2.bf16.msra.mxu0 0
        %3396 = vmatprep.mubr.bf16.mxu0 0
        %3397 = vmatmul.mubr.bf16.gmra.mxu0 %v3292
        %v3398 = vpop.f32.mrf.mxu0
        %v3399 = vadd.f32 %v3314, %v3398
        %v3400 = vpop.f32.mrf.mxu0
        %v3401 = vpop.f32.mrf.mxu0
        %v3402 = vpop.f32.mrf.mxu0
        %3403 = vdwg.mxu0
        %v3404 = vadd.f32 %v3399, %v3186
        %3405 = vst.msk [vmem:[%s820] sm:$0xff] %vm1336, %v3404
        %s3406 = sand.u32 %s591, 1
        %s3407 = scalar_lea.sflag [#allocation8], %s3406
        %s3408 = sand.u32 %s591, 1
        %s3409 = smul.addr %s3408, 8
        %s3410 = scalar_lea.vmem [#allocation7], %s3409
        %s3411 = sand.u32 %s619, 1
        %s3412 = scalar_lea.sflag [#allocation10], %s3411
        %s3413 = sand.u32 %s619, 1
        %s3414 = smul.addr %s3413, 8
        %s3415 = scalar_lea.vmem [#allocation9], %s3414
        // Predicated region
        $region121: #{tpu_custom_call.1} parent=115 // pred_check
          %p3416 = pneg %p601
        $region122: #{tpu_custom_call.1} parent=115 // pred_check_branch
          %3418 = sbr.rel (%p3416) target = $region124
        $region123: #{tpu_custom_call.1} parent=115 // pred_region
          %s3420 = ssub.s32 128, 128
          %3421 = vsyncadd %s3407, %s3420
          %s3422 = sadd.s32 %s48, %s47
          %s3423 = smul.addr %s3422, 128
          %s3424 = scalar_lea.hbm %s24, %s3423
          %s3426 = sshll.u32 %s3410, 4
          %s3427 = int_to_ptr.vmem [resolvable:$true] %s3426
          %3429 = dma.vmem_to_hbm [thread:$0]  %s3427, 128, %s3424, %s3407
        $region124: #{tpu_custom_call.1} parent=115 // pred_fallthru
          _
        // Predicated region
        $region125: #{tpu_custom_call.1} parent=115 // pred_check
          %p3430 = pneg %p629
        $region126: #{tpu_custom_call.1} parent=115 // pred_check_branch
          %3432 = sbr.rel (%p3430) target = $region128
        $region127: #{tpu_custom_call.1} parent=115 // pred_region
          %s3434 = ssub.s32 128, 128
          %3435 = vsyncadd %s3412, %s3434
          %s3436 = sadd.s32 %s48, %s47
          %s3437 = smul.addr %s3436, 128
          %s3438 = scalar_lea.hbm %s25, %s3437
          %s3440 = sshll.u32 %s3415, 4
          %s3441 = int_to_ptr.vmem [resolvable:$true] %s3440
          %3443 = dma.vmem_to_hbm [thread:$0]  %s3441, 128, %s3438, %s3412
        $region128: #{tpu_custom_call.1} parent=115 // pred_fallthru
          _
      $region116: #{tpu_custom_call.1} parent=5 // pred_fallthru
        _
      %p3444 = scmp.le.s32.totalorder 2, %s38
      // Predicated region
      $region129: #{tpu_custom_call.1} parent=5 // pred_check
        %p3445 = pneg %p3444
      $region130: #{tpu_custom_call.1} parent=5 // pred_check_branch
        %3447 = sbr.rel (%p3445) target = $region132
      $region131: #{tpu_custom_call.1} parent=5 // pred_region
        %s3448 = ssub.s32 %s38, 2
        // Predicated region
        $region133: #{tpu_custom_call.1} parent=131 // pred_check
          %p3449 = pneg %p607
        $region134: #{tpu_custom_call.1} parent=131 // pred_check_branch
          %3451 = sbr.rel (%p3449) target = $region136
        $region135: #{tpu_custom_call.1} parent=131 // pred_region
          %s3452 = sand.u32 %s592, 1
          %s3453 = scalar_lea.sflag [#allocation8], %s3452
          %s3454 = sand.u32 %s592, 1
          %s3455 = smul.addr %s3454, 8
          %s3456 = scalar_lea.vmem [#allocation7], %s3455
          %3457 = dma.done %s3453, 128
        $region136: #{tpu_custom_call.1} parent=131 // pred_fallthru
          _
        // Predicated region
        $region137: #{tpu_custom_call.1} parent=131 // pred_check
          %p3458 = pneg %p635
        $region138: #{tpu_custom_call.1} parent=131 // pred_check_branch
          %3460 = sbr.rel (%p3458) target = $region140
        $region139: #{tpu_custom_call.1} parent=131 // pred_region
          %s3461 = sand.u32 %s620, 1
          %s3462 = scalar_lea.sflag [#allocation10], %s3461
          %s3463 = sand.u32 %s620, 1
          %s3464 = smul.addr %s3463, 8
          %s3465 = scalar_lea.vmem [#allocation9], %s3464
          %3466 = dma.done %s3462, 128
        $region140: #{tpu_custom_call.1} parent=131 // pred_fallthru
          _
      $region132: #{tpu_custom_call.1} parent=5 // pred_fallthru
        _
    $region6: #{tpu_custom_call.1} parent=1 // loop_footer
      %s42 = sadd.s32 1, %s38
    $region7: #{tpu_custom_call.1} parent=1 // loop_footer_branch
      %37 = sbr.rel target = $region3
    $region8: #{tpu_custom_call.1} parent=1 // loop_exit
      _
    %3467 = vsyncpa [#allocation8], 1
    %s3468 = scalar_lea.sflag [#allocation8], 1
    %3469 = vsyncpa %s3468, 1
    %3470 = vsyncpa [#allocation10], 1
    %s3471 = scalar_lea.sflag [#allocation10], 1
    %3472 = vsyncpa %s3471, 1

</llo_original>
